<compile_context>
chip_gen: v6e
topology: v6e:2x2x1
jax: 0.10.0
libtpu: 0.0.40
codegen_flags: <defaults>
</compile_context>

<pallas_src>
import jax
import jax.numpy as jnp
from jax.experimental import pallas as pl
from jax.experimental.pallas import tpu as pltpu

INPUT_SIZE = 784
H1, H2, H3 = 1024, 512, 256
N_CLASS = 10
N_OUT_PAD = 128          # fc4 padded to a lane-dense width
DROP_P = 0.3
LEAKY_SLOPE = 0.2


def _leaky_relu(h):
    return jnp.where(h > 0, h, jnp.float32(LEAKY_SLOPE) * h)


def discriminator_kernel(x_ref, m1_ref, m2_ref, m3_ref,
                         w1_ref, b1_ref, w2_ref, b2_ref,
                         w3_ref, b3_ref, w4_ref, b4_ref,
                         o_ref):
    # fc1 -> leaky_relu(0.2) -> dropout(0.3)
    h = jnp.dot(x_ref[...].astype(jnp.bfloat16), w1_ref[...],
                preferred_element_type=jnp.float32) + b1_ref[...]
    h = _leaky_relu(h) * m1_ref[...]

    # fc2 -> leaky_relu(0.2) -> dropout(0.3)
    h = jnp.dot(h.astype(jnp.bfloat16), w2_ref[...],
                preferred_element_type=jnp.float32) + b2_ref[...]
    h = _leaky_relu(h) * m2_ref[...]

    # fc3 -> leaky_relu(0.2) -> dropout(0.3)
    h = jnp.dot(h.astype(jnp.bfloat16), w3_ref[...],
                preferred_element_type=jnp.float32) + b3_ref[...]
    h = _leaky_relu(h) * m3_ref[...]

    # fc4 (zero-padded to 128 cols) -> sigmoid
    logits = jnp.dot(h.astype(jnp.bfloat16), w4_ref[...],
                     preferred_element_type=jnp.float32) + b4_ref[...]
    o_ref[...] = jax.nn.sigmoid(logits)


def _round_up(n, m):
    return ((n + m - 1) // m) * m


@jax.jit
def discriminator_forward(x, params, dropout_rng):
    """x: (B, 784) float32. Returns (B * N_CLASS,) like torch .flatten()."""
    B = x.shape[0]
    w1, b1, w2, b2, w3, b3, w4, b4 = params

    # Batch tile: multiples of 8 (one sublane) for tiny batches, 256 for large
    # batches (aligned to v6e/v7x 256-wide MXU; also a multiple of v5e's 128).
    TB = _round_up(B, 8) if B <= 256 else 256
    B_pad = _round_up(B, TB)
    grid = (B_pad // TB,)

    x_p = jnp.pad(x.astype(jnp.float32), ((0, B_pad - B), (0, 0)))

    # Pre-scaled Bernoulli keep masks (F.dropout semantics, training=True).
    k1, k2, k3 = jax.random.split(dropout_rng, 3)
    scale = jnp.float32(1.0 / (1.0 - DROP_P))
    m1 = (jax.random.uniform(k1, (B_pad, H1)) >= DROP_P).astype(jnp.float32) * scale
    m2 = (jax.random.uniform(k2, (B_pad, H2)) >= DROP_P).astype(jnp.float32) * scale
    m3 = (jax.random.uniform(k3, (B_pad, H3)) >= DROP_P).astype(jnp.float32) * scale

    def act_spec(n):                      # tiled over the batch axis
        return pl.BlockSpec((TB, n), lambda i: (i, 0))

    def resident_spec(r, c):              # weights/biases stay VMEM-resident
        return pl.BlockSpec((r, c), lambda i: (0, 0))

    flops = 2 * B_pad * (INPUT_SIZE * H1 + H1 * H2 + H2 * H3 + H3 * N_OUT_PAD)
    bytes_accessed = (
        sum(int(a.size) * a.dtype.itemsize
            for a in (w1, b1, w2, b2, w3, b3, w4, b4))
        + int(x_p.size) * 4 + int(m1.size) * 4 + int(m2.size) * 4
        + int(m3.size) * 4 + B_pad * N_OUT_PAD * 4)

    out = pl.pallas_call(
        discriminator_kernel,
        out_shape=jax.ShapeDtypeStruct((B_pad, N_OUT_PAD), jnp.float32),
        grid=grid,
        in_specs=[
            act_spec(INPUT_SIZE),                        # x
            act_spec(H1), act_spec(H2), act_spec(H3),    # dropout masks
            resident_spec(INPUT_SIZE, H1), resident_spec(1, H1),   # fc1
            resident_spec(H1, H2), resident_spec(1, H2),           # fc2
            resident_spec(H2, H3), resident_spec(1, H3),           # fc3
            resident_spec(H3, N_OUT_PAD), resident_spec(1, N_OUT_PAD),  # fc4
        ],
        out_specs=act_spec(N_OUT_PAD),
        compiler_params=pltpu.CompilerParams(
            dimension_semantics=("parallel",),
            vmem_limit_bytes=48 * 1024 * 1024),   # < v7x's 64 MiB physical
        cost_estimate=pl.CostEstimate(
            flops=flops,
            transcendentals=B_pad * N_OUT_PAD,
            bytes_accessed=bytes_accessed),
    )(x_p, m1, m2, m3, w1, b1, w2, b2, w3, b3, w4, b4)

    return out[:B, :N_CLASS].reshape(-1)   # torch .flatten()


def init_params(key):
    """torch nn.Linear-style init: U[-1/sqrt(fan_in), +1/sqrt(fan_in)].
    Weights stored as (in_features, out_features) bf16; biases (1, out) f32.
    The last layer is zero-padded from N_CLASS=10 to N_OUT_PAD=128 columns."""
    dims = [(INPUT_SIZE, H1), (H1, H2), (H2, H3), (H3, N_CLASS)]
    params = []
    for layer, (fan_in, fan_out) in enumerate(dims):
        key, kw, kb = jax.random.split(key, 3)
        bound = 1.0 / float(fan_in) ** 0.5
        w = jax.random.uniform(kw, (fan_in, fan_out), jnp.float32, -bound, bound)
        b = jax.random.uniform(kb, (1, fan_out), jnp.float32, -bound, bound)
        if layer == len(dims) - 1:        # lane-dense padding of fc4
            w = jnp.pad(w, ((0, 0), (0, N_OUT_PAD - fan_out)))
            b = jnp.pad(b, ((0, 0), (0, N_OUT_PAD - fan_out)))
        params.extend([w.astype(jnp.bfloat16), b.astype(jnp.float32)])
    return tuple(params)


if __name__ == "__main__":
    key = jax.random.PRNGKey(0)
    k_params, k_x, k_drop = jax.random.split(key, 3)

    params = init_params(k_params)

    B = 2
    x = jax.random.normal(k_x, (B, INPUT_SIZE), jnp.float32)

    y = discriminator_forward(x, params, k_drop)
    jax.block_until_ready(y)

    assert y.shape == (B * N_CLASS,)
    assert bool(jnp.all((y >= 0.0) & (y <= 1.0)))
    print("KERNEL_OK")
</pallas_src>

<mosaic_0001>
module attributes {stable_mosaic.version = 11 : i64} {
  func.func @discriminator_kernel(%arg0: i32, %arg1: memref<8x784xf32, #tpu.memory_space<vmem>>, %arg2: memref<8x1024xf32, #tpu.memory_space<vmem>>, %arg3: memref<8x512xf32, #tpu.memory_space<vmem>>, %arg4: memref<8x256xf32, #tpu.memory_space<vmem>>, %arg5: memref<784x1024xbf16, #tpu.memory_space<vmem>>, %arg6: memref<1x1024xf32, #tpu.memory_space<vmem>>, %arg7: memref<1024x512xbf16, #tpu.memory_space<vmem>>, %arg8: memref<1x512xf32, #tpu.memory_space<vmem>>, %arg9: memref<512x256xbf16, #tpu.memory_space<vmem>>, %arg10: memref<1x256xf32, #tpu.memory_space<vmem>>, %arg11: memref<256x128xbf16, #tpu.memory_space<vmem>>, %arg12: memref<1x128xf32, #tpu.memory_space<vmem>>, %arg13: memref<8x128xf32, #tpu.memory_space<vmem>>) attributes {dimension_semantics = [#tpu.dimension_semantics<parallel>], iteration_bounds = array<i64: 1>, scalar_prefetch = 0 : i64, scratch_operands = 0 : i64, tpu.core_type = #tpu.core_type<tc>, window_params = [{transform_indices = @transform_0, window_bounds = array<i64: 8, 784>}, {transform_indices = @transform_1, window_bounds = array<i64: 8, 1024>}, {transform_indices = @transform_2, window_bounds = array<i64: 8, 512>}, {transform_indices = @transform_3, window_bounds = array<i64: 8, 256>}, {pipeline_mode = #tpu.pipeline_mode<synchronous>, transform_indices = @transform_4, window_bounds = array<i64: 784, 1024>}, {pipeline_mode = #tpu.pipeline_mode<synchronous>, transform_indices = @transform_5, window_bounds = array<i64: 1, 1024>}, {pipeline_mode = #tpu.pipeline_mode<synchronous>, transform_indices = @transform_6, window_bounds = array<i64: 1024, 512>}, {pipeline_mode = #tpu.pipeline_mode<synchronous>, transform_indices = @transform_7, window_bounds = array<i64: 1, 512>}, {pipeline_mode = #tpu.pipeline_mode<synchronous>, transform_indices = @transform_8, window_bounds = array<i64: 512, 256>}, {pipeline_mode = #tpu.pipeline_mode<synchronous>, transform_indices = @transform_9, window_bounds = array<i64: 1, 256>}, {pipeline_mode = #tpu.pipeline_mode<synchronous>, transform_indices = @transform_10, window_bounds = array<i64: 256, 128>}, {pipeline_mode = #tpu.pipeline_mode<synchronous>, transform_indices = @transform_11, window_bounds = array<i64: 1, 128>}, {transform_indices = @transform_12, window_bounds = array<i64: 8, 128>}]} {
    %c0 = arith.constant 0 : index
    %c0_0 = arith.constant 0 : index
    %0 = vector.load %arg1[%c0, %c0_0] : memref<8x784xf32, #tpu.memory_space<vmem>>, vector<8x784xf32>
    %1 = arith.truncf %0 : vector<8x784xf32> to vector<8x784xbf16>
    %c0_1 = arith.constant 0 : index
    %c0_2 = arith.constant 0 : index
    %2 = vector.load %arg5[%c0_1, %c0_2] : memref<784x1024xbf16, #tpu.memory_space<vmem>>, vector<784x1024xbf16>
    %cst = arith.constant dense<0.000000e+00> : vector<8x1024xf32>
    %3 = tpu.matmul %1, %2, %cst {dimension_numbers = #tpu.dot_dimension_numbers<[1], [0], [0], [1], [0, 0, 1, 1], [], []>} : vector<8x784xbf16>, vector<784x1024xbf16>, vector<8x1024xf32> -> vector<8x1024xf32>
    %c0_3 = arith.constant 0 : index
    %c0_4 = arith.constant 0 : index
    %4 = vector.load %arg6[%c0_3, %c0_4] : memref<1x1024xf32, #tpu.memory_space<vmem>>, vector<1x1024xf32>
    %5 = vector.broadcast %4 : vector<1x1024xf32> to vector<8x1024xf32>
    %6 = arith.addf %3, %5 : vector<8x1024xf32>
    %cst_5 = arith.constant 0.000000e+00 : f32
    %7 = vector.broadcast %cst_5 : f32 to vector<8x1024xf32>
    %8 = arith.cmpf ogt, %6, %7 : vector<8x1024xf32>
    %cst_6 = arith.constant 2.000000e-01 : f32
    %9 = vector.broadcast %cst_6 : f32 to vector<8x1024xf32>
    %10 = arith.mulf %9, %6 : vector<8x1024xf32>
    %11 = arith.select %8, %6, %10 : vector<8x1024xi1>, vector<8x1024xf32>
    %c0_7 = arith.constant 0 : index
    %c0_8 = arith.constant 0 : index
    %12 = vector.load %arg2[%c0_7, %c0_8] : memref<8x1024xf32, #tpu.memory_space<vmem>>, vector<8x1024xf32>
    %13 = arith.mulf %11, %12 : vector<8x1024xf32>
    %14 = arith.truncf %13 : vector<8x1024xf32> to vector<8x1024xbf16>
    %c0_9 = arith.constant 0 : index
    %c0_10 = arith.constant 0 : index
    %15 = vector.load %arg7[%c0_9, %c0_10] : memref<1024x512xbf16, #tpu.memory_space<vmem>>, vector<1024x512xbf16>
    %cst_11 = arith.constant dense<0.000000e+00> : vector<8x512xf32>
    %16 = tpu.matmul %14, %15, %cst_11 {dimension_numbers = #tpu.dot_dimension_numbers<[1], [0], [0], [1], [0, 0, 1, 1], [], []>} : vector<8x1024xbf16>, vector<1024x512xbf16>, vector<8x512xf32> -> vector<8x512xf32>
    %c0_12 = arith.constant 0 : index
    %c0_13 = arith.constant 0 : index
    %17 = vector.load %arg8[%c0_12, %c0_13] : memref<1x512xf32, #tpu.memory_space<vmem>>, vector<1x512xf32>
    %18 = vector.broadcast %17 : vector<1x512xf32> to vector<8x512xf32>
    %19 = arith.addf %16, %18 : vector<8x512xf32>
    %cst_14 = arith.constant 0.000000e+00 : f32
    %20 = vector.broadcast %cst_14 : f32 to vector<8x512xf32>
    %21 = arith.cmpf ogt, %19, %20 : vector<8x512xf32>
    %cst_15 = arith.constant 2.000000e-01 : f32
    %22 = vector.broadcast %cst_15 : f32 to vector<8x512xf32>
    %23 = arith.mulf %22, %19 : vector<8x512xf32>
    %24 = arith.select %21, %19, %23 : vector<8x512xi1>, vector<8x512xf32>
    %c0_16 = arith.constant 0 : index
    %c0_17 = arith.constant 0 : index
    %25 = vector.load %arg3[%c0_16, %c0_17] : memref<8x512xf32, #tpu.memory_space<vmem>>, vector<8x512xf32>
    %26 = arith.mulf %24, %25 : vector<8x512xf32>
    %27 = arith.truncf %26 : vector<8x512xf32> to vector<8x512xbf16>
    %c0_18 = arith.constant 0 : index
    %c0_19 = arith.constant 0 : index
    %28 = vector.load %arg9[%c0_18, %c0_19] : memref<512x256xbf16, #tpu.memory_space<vmem>>, vector<512x256xbf16>
    %cst_20 = arith.constant dense<0.000000e+00> : vector<8x256xf32>
    %29 = tpu.matmul %27, %28, %cst_20 {dimension_numbers = #tpu.dot_dimension_numbers<[1], [0], [0], [1], [0, 0, 1, 1], [], []>} : vector<8x512xbf16>, vector<512x256xbf16>, vector<8x256xf32> -> vector<8x256xf32>
    %c0_21 = arith.constant 0 : index
    %c0_22 = arith.constant 0 : index
    %30 = vector.load %arg10[%c0_21, %c0_22] : memref<1x256xf32, #tpu.memory_space<vmem>>, vector<1x256xf32>
    %31 = vector.broadcast %30 : vector<1x256xf32> to vector<8x256xf32>
    %32 = arith.addf %29, %31 : vector<8x256xf32>
    %cst_23 = arith.constant 0.000000e+00 : f32
    %33 = vector.broadcast %cst_23 : f32 to vector<8x256xf32>
    %34 = arith.cmpf ogt, %32, %33 : vector<8x256xf32>
    %cst_24 = arith.constant 2.000000e-01 : f32
    %35 = vector.broadcast %cst_24 : f32 to vector<8x256xf32>
    %36 = arith.mulf %35, %32 : vector<8x256xf32>
    %37 = arith.select %34, %32, %36 : vector<8x256xi1>, vector<8x256xf32>
    %c0_25 = arith.constant 0 : index
    %c0_26 = arith.constant 0 : index
    %38 = vector.load %arg4[%c0_25, %c0_26] : memref<8x256xf32, #tpu.memory_space<vmem>>, vector<8x256xf32>
    %39 = arith.mulf %37, %38 : vector<8x256xf32>
    %40 = arith.truncf %39 : vector<8x256xf32> to vector<8x256xbf16>
    %c0_27 = arith.constant 0 : index
    %c0_28 = arith.constant 0 : index
    %41 = vector.load %arg11[%c0_27, %c0_28] : memref<256x128xbf16, #tpu.memory_space<vmem>>, vector<256x128xbf16>
    %cst_29 = arith.constant dense<0.000000e+00> : vector<8x128xf32>
    %42 = tpu.matmul %40, %41, %cst_29 {dimension_numbers = #tpu.dot_dimension_numbers<[1], [0], [0], [1], [0, 0, 1, 1], [], []>} : vector<8x256xbf16>, vector<256x128xbf16>, vector<8x128xf32> -> vector<8x128xf32>
    %c0_30 = arith.constant 0 : index
    %c0_31 = arith.constant 0 : index
    %43 = vector.load %arg12[%c0_30, %c0_31] : memref<1x128xf32, #tpu.memory_space<vmem>>, vector<1x128xf32>
    %44 = vector.broadcast %43 : vector<1x128xf32> to vector<8x128xf32>
    %45 = arith.addf %42, %44 : vector<8x128xf32>
    %46 = arith.negf %45 : vector<8x128xf32>
    %47 = math.exp %46 : vector<8x128xf32>
    %cst_32 = arith.constant 1.000000e+00 : f32
    %48 = vector.broadcast %cst_32 : f32 to vector<8x128xf32>
    %49 = arith.addf %48, %47 : vector<8x128xf32>
    %50 = arith.divf %48, %49 : vector<8x128xf32>
    %c0_33 = arith.constant 0 : index
    %c0_34 = arith.constant 0 : index
    %51 = vector.load %arg13[%c0_33, %c0_34] : memref<8x128xf32, #tpu.memory_space<vmem>>, vector<8x128xf32>
    tpu.vector_store %arg13[%c0_33, %c0_34], %50 {strides = array<i32>} : memref<8x128xf32, #tpu.memory_space<vmem>>, vector<8x128xf32>,
    return
  }
  func.func @transform_0(%arg0: i32) -> (i32, i32) {
    %c0_i32 = arith.constant 0 : i32
    %c0_i32_0 = arith.constant 0 : i32
    return %arg0, %c0_i32 : i32, i32
  }
  func.func @transform_1(%arg0: i32) -> (i32, i32) {
    %c0_i32 = arith.constant 0 : i32
    %c0_i32_0 = arith.constant 0 : i32
    return %arg0, %c0_i32 : i32, i32
  }
  func.func @transform_2(%arg0: i32) -> (i32, i32) {
    %c0_i32 = arith.constant 0 : i32
    %c0_i32_0 = arith.constant 0 : i32
    return %arg0, %c0_i32 : i32, i32
  }
  func.func @transform_3(%arg0: i32) -> (i32, i32) {
    %c0_i32 = arith.constant 0 : i32
    %c0_i32_0 = arith.constant 0 : i32
    return %arg0, %c0_i32 : i32, i32
  }
  func.func @transform_4(%arg0: i32) -> (i32, i32) {
    %c0_i32 = arith.constant 0 : i32
    %c0_i32_0 = arith.constant 0 : i32
    %c0_i32_1 = arith.constant 0 : i32
    return %c0_i32, %c0_i32_0 : i32, i32
  }
  func.func @transform_5(%arg0: i32) -> (i32, i32) {
    %c0_i32 = arith.constant 0 : i32
    %c0_i32_0 = arith.constant 0 : i32
    %c0_i32_1 = arith.constant 0 : i32
    return %c0_i32, %c0_i32_0 : i32, i32
  }
  func.func @transform_6(%arg0: i32) -> (i32, i32) {
    %c0_i32 = arith.constant 0 : i32
    %c0_i32_0 = arith.constant 0 : i32
    %c0_i32_1 = arith.constant 0 : i32
    return %c0_i32, %c0_i32_0 : i32, i32
  }
  func.func @transform_7(%arg0: i32) -> (i32, i32) {
    %c0_i32 = arith.constant 0 : i32
    %c0_i32_0 = arith.constant 0 : i32
    %c0_i32_1 = arith.constant 0 : i32
    return %c0_i32, %c0_i32_0 : i32, i32
  }
  func.func @transform_8(%arg0: i32) -> (i32, i32) {
    %c0_i32 = arith.constant 0 : i32
    %c0_i32_0 = arith.constant 0 : i32
    %c0_i32_1 = arith.constant 0 : i32
    return %c0_i32, %c0_i32_0 : i32, i32
  }
  func.func @transform_9(%arg0: i32) -> (i32, i32) {
    %c0_i32 = arith.constant 0 : i32
    %c0_i32_0 = arith.constant 0 : i32
    %c0_i32_1 = arith.constant 0 : i32
    return %c0_i32, %c0_i32_0 : i32, i32
  }
  func.func @transform_10(%arg0: i32) -> (i32, i32) {
    %c0_i32 = arith.constant 0 : i32
    %c0_i32_0 = arith.constant 0 : i32
    %c0_i32_1 = arith.constant 0 : i32
    return %c0_i32, %c0_i32_0 : i32, i32
  }
  func.func @transform_11(%arg0: i32) -> (i32, i32) {
    %c0_i32 = arith.constant 0 : i32
    %c0_i32_0 = arith.constant 0 : i32
    %c0_i32_1 = arith.constant 0 : i32
    return %c0_i32, %c0_i32_0 : i32, i32
  }
  func.func @transform_12(%arg0: i32) -> (i32, i32) {
    %c0_i32 = arith.constant 0 : i32
    %c0_i32_0 = arith.constant 0 : i32
    return %arg0, %c0_i32 : i32, i32
  }
}

</mosaic_0001>

<llo_original>
// kernel: discriminator_forward.3
$region0: #{discriminator_forward.3}
  #allocation0 [shape = 'u32[]', space=smem, size = 0x4, offset = 0x4, fixed_abs, tag = 'smem constant byte address 0x4 - core index']
  #allocation1 [shape = 'u32[144,128]{1,0:T(1,128)}', space=vmem, size = 0x12000, scoped, tag = 'internal scratch']
  %s0 = inlined_call_operand.vmem [shape: f32[8,784], index: 0, kind: input, shape index: {}]
  %s1 = inlined_call_operand.vmem [shape: f32[8,1024], index: 1, kind: input, shape index: {}]
  %s2 = inlined_call_operand.vmem [shape: f32[8,512], index: 2, kind: input, shape index: {}]
  %s3 = inlined_call_operand.vmem [shape: f32[8,256], index: 3, kind: input, shape index: {}]
  %s4 = inlined_call_operand.hbm [shape: bf16[784,1024], index: 4, kind: input, shape index: {}]
  %s5 = inlined_call_operand.hbm [shape: f32[1,1024], index: 5, kind: input, shape index: {}]
  %s6 = inlined_call_operand.hbm [shape: bf16[1024,512], index: 6, kind: input, shape index: {}]
  %s7 = inlined_call_operand.hbm [shape: f32[1,512], index: 7, kind: input, shape index: {}]
  %s8 = inlined_call_operand.hbm [shape: bf16[512,256], index: 8, kind: input, shape index: {}]
  %s9 = inlined_call_operand.hbm [shape: f32[1,256], index: 9, kind: input, shape index: {}]
  %s10 = inlined_call_operand.hbm [shape: bf16[256,128], index: 10, kind: input, shape index: {}]
  %s11 = inlined_call_operand.hbm [shape: f32[1,128], index: 11, kind: input, shape index: {}]
  %s12 = inlined_call_operand.vmem [shape: f32[8,128], index: 12, kind: output, shape index: {}]
  %s13 = sld [smem:[#allocation0]]
  $region90: #{discriminator_forward.3} parent=0
    _
  %s15 = ssub.s32 1, %s13
  %s16 = scalar_select 0, %s15, %s13
  $region1: #{discriminator_forward.3} parent=0
    #allocation2 [shape = 'u8[1605632]{0}', space=vmem, size = 0x188000, scoped, tag = 'input window, operand 4, single buffered']
    #allocation3 [shape = 's32[1]{0}', space=sflag, size = 0x4, scoped, tag = 'scoped memory for discriminator_forward.3']
    #allocation4 [shape = 'u8[4096]{0}', space=vmem, size = 0x1000, scoped, tag = 'input window, operand 5, single buffered']
    #allocation5 [shape = 's32[1]{0}', space=sflag, size = 0x4, scoped, tag = 'scoped memory for discriminator_forward.3']
    #allocation6 [shape = 'u8[1048576]{0}', space=vmem, size = 0x100000, scoped, tag = 'input window, operand 6, single buffered']
    #allocation7 [shape = 'u8[2048]{0}', space=vmem, size = 0x800, scoped, tag = 'input window, operand 7, single buffered']
    #allocation8 [shape = 's32[1]{0}', space=sflag, size = 0x4, scoped, tag = 'scoped memory for discriminator_forward.3']
    #allocation9 [shape = 'u8[262144]{0}', space=vmem, size = 0x40000, scoped, tag = 'input window, operand 8, single buffered']
    #allocation10 [shape = 'u8[1024]{0}', space=vmem, size = 0x400, scoped, tag = 'input window, operand 9, single buffered']
    #allocation11 [shape = 's32[1]{0}', space=sflag, size = 0x4, scoped, tag = 'scoped memory for discriminator_forward.3']
    #allocation12 [shape = 'u8[65536]{0}', space=vmem, size = 0x10000, scoped, tag = 'input window, operand 10, single buffered']
    #allocation13 [shape = 'u8[512]{0}', space=vmem, size = 0x400, scoped, tag = 'input window, operand 11, single buffered']
    #allocation14 [shape = 's32[1]{0}', space=sflag, size = 0x4, scoped, tag = 'scoped memory for discriminator_forward.3']
    %17 = vsyncpa [#allocation3], 0
    %18 = vsyncpa [#allocation5], 0
    %19 = vsyncpa [#allocation8], 0
    %20 = vsyncpa [#allocation11], 0
    %21 = vsyncpa [#allocation14], 0
    // Predicated region
    $region2: #{discriminator_forward.3} parent=1 // pred_check
      _
    $region3: #{discriminator_forward.3} parent=1 // pred_check_branch
      %23 = sbr.rel (0) target = $region5
    $region4: #{discriminator_forward.3} parent=1 // pred_region
      _
    $region5: #{discriminator_forward.3} parent=1 // pred_fallthru
      _
    // Predicated region
    $region6: #{discriminator_forward.3} parent=1 // pred_check
      _
    $region7: #{discriminator_forward.3} parent=1 // pred_check_branch
      %25 = sbr.rel (0) target = $region9
    $region8: #{discriminator_forward.3} parent=1 // pred_region
      _
    $region9: #{discriminator_forward.3} parent=1 // pred_fallthru
      _
    // Predicated region
    $region10: #{discriminator_forward.3} parent=1 // pred_check
      _
    $region11: #{discriminator_forward.3} parent=1 // pred_check_branch
      %27 = sbr.rel (0) target = $region13
    $region12: #{discriminator_forward.3} parent=1 // pred_region
      _
    $region13: #{discriminator_forward.3} parent=1 // pred_fallthru
      _
    // Predicated region
    $region14: #{discriminator_forward.3} parent=1 // pred_check
      _
    $region15: #{discriminator_forward.3} parent=1 // pred_check_branch
      %29 = sbr.rel (0) target = $region17
    $region16: #{discriminator_forward.3} parent=1 // pred_region
      _
    $region17: #{discriminator_forward.3} parent=1 // pred_fallthru
      _
    // Predicated region
    $region18: #{discriminator_forward.3} parent=1 // pred_check
      _
    $region19: #{discriminator_forward.3} parent=1 // pred_check_branch
      %31 = sbr.rel (0) target = $region21
    $region20: #{discriminator_forward.3} parent=1 // pred_region
      %s33 = ssub.s32 50176, 50176
      %34 = vsyncadd [#allocation3], %s33
      %s35 = sshll.u32 [#allocation2], 4
      %s36 = int_to_ptr.vmem [resolvable:$true] %s35
      %41 = dma.hbm_to_vmem [thread:$0]  %s4, 50176, %s36, [#allocation3], 512, 512, 32
    $region21: #{discriminator_forward.3} parent=1 // pred_fallthru
      _
    // Predicated region
    $region22: #{discriminator_forward.3} parent=1 // pred_check
      _
    $region23: #{discriminator_forward.3} parent=1 // pred_check_branch
      %43 = sbr.rel (0) target = $region25
    $region24: #{discriminator_forward.3} parent=1 // pred_region
      %s45 = ssub.s32 128, 128
      %46 = vsyncadd [#allocation5], %s45
      %s48 = sshll.u32 [#allocation4], 4
      %s49 = int_to_ptr.vmem [resolvable:$true] %s48
      %51 = dma.hbm_to_vmem [thread:$0]  %s5, 128, %s49, [#allocation5]
    $region25: #{discriminator_forward.3} parent=1 // pred_fallthru
      _
    // Predicated region
    $region26: #{discriminator_forward.3} parent=1 // pred_check
      _
    $region27: #{discriminator_forward.3} parent=1 // pred_check_branch
      %53 = sbr.rel (0) target = $region29
    $region28: #{discriminator_forward.3} parent=1 // pred_region
      %s55 = ssub.s32 32768, 32768
      %56 = vsyncadd [#allocation5], %s55
      %s57 = sshll.u32 [#allocation6], 4
      %s58 = int_to_ptr.vmem [resolvable:$true] %s57
      %63 = dma.hbm_to_vmem [thread:$0]  %s6, 32768, %s58, [#allocation5], 256, 256, 16
    $region29: #{discriminator_forward.3} parent=1 // pred_fallthru
      _
    // Predicated region
    $region30: #{discriminator_forward.3} parent=1 // pred_check
      _
    $region31: #{discriminator_forward.3} parent=1 // pred_check_branch
      %65 = sbr.rel (0) target = $region33
    $region32: #{discriminator_forward.3} parent=1 // pred_region
      %s67 = ssub.s32 64, 64
      %68 = vsyncadd [#allocation8], %s67
      %s70 = sshll.u32 [#allocation7], 4
      %s71 = int_to_ptr.vmem [resolvable:$true] %s70
      %73 = dma.hbm_to_vmem [thread:$0]  %s7, 64, %s71, [#allocation8]
    $region33: #{discriminator_forward.3} parent=1 // pred_fallthru
      _
    // Predicated region
    $region34: #{discriminator_forward.3} parent=1 // pred_check
      _
    $region35: #{discriminator_forward.3} parent=1 // pred_check_branch
      %75 = sbr.rel (0) target = $region37
    $region36: #{discriminator_forward.3} parent=1 // pred_region
      %s77 = ssub.s32 8192, 8192
      %78 = vsyncadd [#allocation8], %s77
      %s79 = sshll.u32 [#allocation9], 4
      %s80 = int_to_ptr.vmem [resolvable:$true] %s79
      %85 = dma.hbm_to_vmem [thread:$0]  %s8, 8192, %s80, [#allocation8], 128, 128, 8
    $region37: #{discriminator_forward.3} parent=1 // pred_fallthru
      _
    // Predicated region
    $region38: #{discriminator_forward.3} parent=1 // pred_check
      _
    $region39: #{discriminator_forward.3} parent=1 // pred_check_branch
      %87 = sbr.rel (0) target = $region41
    $region40: #{discriminator_forward.3} parent=1 // pred_region
      %s89 = ssub.s32 32, 32
      %90 = vsyncadd [#allocation11], %s89
      %s92 = sshll.u32 [#allocation10], 4
      %s93 = int_to_ptr.vmem [resolvable:$true] %s92
      %95 = dma.hbm_to_vmem [thread:$0]  %s9, 32, %s93, [#allocation11]
    $region41: #{discriminator_forward.3} parent=1 // pred_fallthru
      _
    // Predicated region
    $region42: #{discriminator_forward.3} parent=1 // pred_check
      _
    $region43: #{discriminator_forward.3} parent=1 // pred_check_branch
      %97 = sbr.rel (0) target = $region45
    $region44: #{discriminator_forward.3} parent=1 // pred_region
      %s99 = ssub.s32 2048, 2048
      %100 = vsyncadd [#allocation11], %s99
      %s101 = sshll.u32 [#allocation12], 4
      %s102 = int_to_ptr.vmem [resolvable:$true] %s101
      %107 = dma.hbm_to_vmem [thread:$0]  %s10, 2048, %s102, [#allocation11], 64, 64, 4
    $region45: #{discriminator_forward.3} parent=1 // pred_fallthru
      _
    // Predicated region
    $region46: #{discriminator_forward.3} parent=1 // pred_check
      _
    $region47: #{discriminator_forward.3} parent=1 // pred_check_branch
      %109 = sbr.rel (0) target = $region49
    $region48: #{discriminator_forward.3} parent=1 // pred_region
      %s111 = ssub.s32 16, 16
      %112 = vsyncadd [#allocation14], %s111
      %s114 = sshll.u32 [#allocation13], 4
      %s115 = int_to_ptr.vmem [resolvable:$true] %s114
      %117 = dma.hbm_to_vmem [thread:$0]  %s11, 16, %s115, [#allocation14]
    $region49: #{discriminator_forward.3} parent=1 // pred_fallthru
      _
    // Predicated region
    $region50: #{discriminator_forward.3} parent=1 // pred_check
      _
    $region51: #{discriminator_forward.3} parent=1 // pred_check_branch
      %119 = sbr.rel (0) target = $region53
    $region52: #{discriminator_forward.3} parent=1 // pred_region
      %120 = dma.done [#allocation3], 50176
    $region53: #{discriminator_forward.3} parent=1 // pred_fallthru
      _
    // Predicated region
    $region54: #{discriminator_forward.3} parent=1 // pred_check
      _
    $region55: #{discriminator_forward.3} parent=1 // pred_check_branch
      %122 = sbr.rel (0) target = $region57
    $region56: #{discriminator_forward.3} parent=1 // pred_region
      %123 = dma.done [#allocation5], 128
    $region57: #{discriminator_forward.3} parent=1 // pred_fallthru
      _
    // Predicated region
    $region58: #{discriminator_forward.3} parent=1 // pred_check
      _
    $region59: #{discriminator_forward.3} parent=1 // pred_check_branch
      %125 = sbr.rel (0) target = $region61
    $region60: #{discriminator_forward.3} parent=1 // pred_region
      %126 = dma.done [#allocation5], 32768
    $region61: #{discriminator_forward.3} parent=1 // pred_fallthru
      _
    // Predicated region
    $region62: #{discriminator_forward.3} parent=1 // pred_check
      _
    $region63: #{discriminator_forward.3} parent=1 // pred_check_branch
      %128 = sbr.rel (0) target = $region65
    $region64: #{discriminator_forward.3} parent=1 // pred_region
      %129 = dma.done [#allocation8], 64
    $region65: #{discriminator_forward.3} parent=1 // pred_fallthru
      _
    // Predicated region
    $region66: #{discriminator_forward.3} parent=1 // pred_check
      _
    $region67: #{discriminator_forward.3} parent=1 // pred_check_branch
      %131 = sbr.rel (0) target = $region69
    $region68: #{discriminator_forward.3} parent=1 // pred_region
      %132 = dma.done [#allocation8], 8192
    $region69: #{discriminator_forward.3} parent=1 // pred_fallthru
      _
    // Predicated region
    $region70: #{discriminator_forward.3} parent=1 // pred_check
      _
    $region71: #{discriminator_forward.3} parent=1 // pred_check_branch
      %134 = sbr.rel (0) target = $region73
    $region72: #{discriminator_forward.3} parent=1 // pred_region
      %135 = dma.done [#allocation11], 32
    $region73: #{discriminator_forward.3} parent=1 // pred_fallthru
      _
    // Predicated region
    $region74: #{discriminator_forward.3} parent=1 // pred_check
      _
    $region75: #{discriminator_forward.3} parent=1 // pred_check_branch
      %137 = sbr.rel (0) target = $region77
    $region76: #{discriminator_forward.3} parent=1 // pred_region
      %138 = dma.done [#allocation11], 2048
    $region77: #{discriminator_forward.3} parent=1 // pred_fallthru
      _
    // Predicated region
    $region78: #{discriminator_forward.3} parent=1 // pred_check
      _
    $region79: #{discriminator_forward.3} parent=1 // pred_check_branch
      %140 = sbr.rel (0) target = $region81
    $region80: #{discriminator_forward.3} parent=1 // pred_region
      %141 = dma.done [#allocation14], 16
    $region81: #{discriminator_forward.3} parent=1 // pred_fallthru
      _
    %v143 = vld [vmem:[%s0] sm:$0xff]
    %v144 = vld [vmem:[%s0 + $0x8] sm:$0xff]
    %v145 = vld [vmem:[%s0 + $0x10] sm:$0xff]
    %v146 = vld [vmem:[%s0 + $0x18] sm:$0xff]
    %v147 = vld [vmem:[%s0 + $0x20] sm:$0xff]
    %v148 = vld [vmem:[%s0 + $0x28] sm:$0xff]
    %v149 = vld [vmem:[%s0 + $0x30] sm:$0xff]
    %v150 = vpack.c.bf16 %v143, %v143
    %v151 = vpack.c.bf16 %v144, %v144
    %v152 = vpack.c.bf16 %v145, %v145
    %v153 = vpack.c.bf16 %v146, %v146
    %v154 = vpack.c.bf16 %v147, %v147
    %v155 = vpack.c.bf16 %v148, %v148
    %v156 = vpack.c.bf16 %v149, %v149
    %v157 = vld [vmem:[#allocation2] sm:$0xff]
    %v158 = vld [vmem:[#allocation2 + $0x8] sm:$0xff]
    %v159 = vld [vmem:[#allocation2 + $0x10] sm:$0xff]
    %v160 = vld [vmem:[#allocation2 + $0x18] sm:$0xff]
    %v161 = vld [vmem:[#allocation2 + $0x20] sm:$0xff]
    %v162 = vld [vmem:[#allocation2 + $0x28] sm:$0xff]
    %v163 = vld [vmem:[#allocation2 + $0x30] sm:$0xff]
    %v164 = vld [vmem:[#allocation2 + $0x38] sm:$0xff]
    %v165 = vld [vmem:[#allocation2 + $0x40] sm:$0xff]
    %v166 = vld [vmem:[#allocation2 + $0x48] sm:$0xff]
    %v167 = vld [vmem:[#allocation2 + $0x50] sm:$0xff]
    %v168 = vld [vmem:[#allocation2 + $0x58] sm:$0xff]
    %v169 = vld [vmem:[#allocation2 + $0x60] sm:$0xff]
    %v170 = vld [vmem:[#allocation2 + $0x68] sm:$0xff]
    %v171 = vld [vmem:[#allocation2 + $0x70] sm:$0xff]
    %v172 = vld [vmem:[#allocation2 + $0x78] sm:$0xff]
    %v173 = vld [vmem:[#allocation2 + $0x80] sm:$0xff]
    %v174 = vld [vmem:[#allocation2 + $0x88] sm:$0xff]
    %v175 = vld [vmem:[#allocation2 + $0x90] sm:$0xff]
    %v176 = vld [vmem:[#allocation2 + $0x98] sm:$0xff]
    %v177 = vld [vmem:[#allocation2 + $0xa0] sm:$0xff]
    %v178 = vld [vmem:[#allocation2 + $0xa8] sm:$0xff]
    %v179 = vld [vmem:[#allocation2 + $0xb0] sm:$0xff]
    %v180 = vld [vmem:[#allocation2 + $0xb8] sm:$0xff]
    %v181 = vld [vmem:[#allocation2 + $0xc0] sm:$0xff]
    %v182 = vld [vmem:[#allocation2 + $0xc8] sm:$0xff]
    %v183 = vld [vmem:[#allocation2 + $0xd0] sm:$0xff]
    %v184 = vld [vmem:[#allocation2 + $0xd8] sm:$0xff]
    %v185 = vld [vmem:[#allocation2 + $0xe0] sm:$0xff]
    %v186 = vld [vmem:[#allocation2 + $0xe8] sm:$0xff]
    %v187 = vld [vmem:[#allocation2 + $0xf0] sm:$0xff]
    %v188 = vld [vmem:[#allocation2 + $0xf8] sm:$0xff]
    %v189 = vld [vmem:[#allocation2 + $0x100] sm:$0xff]
    %v190 = vld [vmem:[#allocation2 + $0x108] sm:$0xff]
    %v191 = vld [vmem:[#allocation2 + $0x110] sm:$0xff]
    %v192 = vld [vmem:[#allocation2 + $0x118] sm:$0xff]
    %v193 = vld [vmem:[#allocation2 + $0x120] sm:$0xff]
    %v194 = vld [vmem:[#allocation2 + $0x128] sm:$0xff]
    %v195 = vld [vmem:[#allocation2 + $0x130] sm:$0xff]
    %v196 = vld [vmem:[#allocation2 + $0x138] sm:$0xff]
    %v197 = vld [vmem:[#allocation2 + $0x140] sm:$0xff]
    %v198 = vld [vmem:[#allocation2 + $0x148] sm:$0xff]
    %v199 = vld [vmem:[#allocation2 + $0x150] sm:$0xff]
    %v200 = vld [vmem:[#allocation2 + $0x158] sm:$0xff]
    %v201 = vld [vmem:[#allocation2 + $0x160] sm:$0xff]
    %v202 = vld [vmem:[#allocation2 + $0x168] sm:$0xff]
    %v203 = vld [vmem:[#allocation2 + $0x170] sm:$0xff]
    %v204 = vld [vmem:[#allocation2 + $0x178] sm:$0xff]
    %v205 = vld [vmem:[#allocation2 + $0x180] sm:$0xff]
    %v206 = vld [vmem:[#allocation2 + $0x188] sm:$0xff]
    %v207 = vld [vmem:[#allocation2 + $0x190] sm:$0xff]
    %v208 = vld [vmem:[#allocation2 + $0x198] sm:$0xff]
    %v209 = vld [vmem:[#allocation2 + $0x1a0] sm:$0xff]
    %v210 = vld [vmem:[#allocation2 + $0x1a8] sm:$0xff]
    %v211 = vld [vmem:[#allocation2 + $0x1b0] sm:$0xff]
    %v212 = vld [vmem:[#allocation2 + $0x1b8] sm:$0xff]
    %v213 = vld [vmem:[#allocation2 + $0x1c0] sm:$0xff]
    %v214 = vld [vmem:[#allocation2 + $0x1c8] sm:$0xff]
    %v215 = vld [vmem:[#allocation2 + $0x1d0] sm:$0xff]
    %v216 = vld [vmem:[#allocation2 + $0x1d8] sm:$0xff]
    %v217 = vld [vmem:[#allocation2 + $0x1e0] sm:$0xff]
    %v218 = vld [vmem:[#allocation2 + $0x1e8] sm:$0xff]
    %v219 = vld [vmem:[#allocation2 + $0x1f0] sm:$0xff]
    %v220 = vld [vmem:[#allocation2 + $0x1f8] sm:$0xff]
    %v221 = vld [vmem:[#allocation2 + $0x200] sm:$0xff]
    %v222 = vld [vmem:[#allocation2 + $0x208] sm:$0xff]
    %v223 = vld [vmem:[#allocation2 + $0x210] sm:$0xff]
    %v224 = vld [vmem:[#allocation2 + $0x218] sm:$0xff]
    %v225 = vld [vmem:[#allocation2 + $0x220] sm:$0xff]
    %v226 = vld [vmem:[#allocation2 + $0x228] sm:$0xff]
    %v227 = vld [vmem:[#allocation2 + $0x230] sm:$0xff]
    %v228 = vld [vmem:[#allocation2 + $0x238] sm:$0xff]
    %v229 = vld [vmem:[#allocation2 + $0x240] sm:$0xff]
    %v230 = vld [vmem:[#allocation2 + $0x248] sm:$0xff]
    %v231 = vld [vmem:[#allocation2 + $0x250] sm:$0xff]
    %v232 = vld [vmem:[#allocation2 + $0x258] sm:$0xff]
    %v233 = vld [vmem:[#allocation2 + $0x260] sm:$0xff]
    %v234 = vld [vmem:[#allocation2 + $0x268] sm:$0xff]
    %v235 = vld [vmem:[#allocation2 + $0x270] sm:$0xff]
    %v236 = vld [vmem:[#allocation2 + $0x278] sm:$0xff]
    %v237 = vld [vmem:[#allocation2 + $0x280] sm:$0xff]
    %v238 = vld [vmem:[#allocation2 + $0x288] sm:$0xff]
    %v239 = vld [vmem:[#allocation2 + $0x290] sm:$0xff]
    %v240 = vld [vmem:[#allocation2 + $0x298] sm:$0xff]
    %v241 = vld [vmem:[#allocation2 + $0x2a0] sm:$0xff]
    %v242 = vld [vmem:[#allocation2 + $0x2a8] sm:$0xff]
    %v243 = vld [vmem:[#allocation2 + $0x2b0] sm:$0xff]
    %v244 = vld [vmem:[#allocation2 + $0x2b8] sm:$0xff]
    %v245 = vld [vmem:[#allocation2 + $0x2c0] sm:$0xff]
    %v246 = vld [vmem:[#allocation2 + $0x2c8] sm:$0xff]
    %v247 = vld [vmem:[#allocation2 + $0x2d0] sm:$0xff]
    %v248 = vld [vmem:[#allocation2 + $0x2d8] sm:$0xff]
    %v249 = vld [vmem:[#allocation2 + $0x2e0] sm:$0xff]
    %v250 = vld [vmem:[#allocation2 + $0x2e8] sm:$0xff]
    %v251 = vld [vmem:[#allocation2 + $0x2f0] sm:$0xff]
    %v252 = vld [vmem:[#allocation2 + $0x2f8] sm:$0xff]
    %v253 = vld [vmem:[#allocation2 + $0x300] sm:$0xff]
    %v254 = vld [vmem:[#allocation2 + $0x308] sm:$0xff]
    %v255 = vld [vmem:[#allocation2 + $0x310] sm:$0xff]
    %v256 = vld [vmem:[#allocation2 + $0x318] sm:$0xff]
    %v257 = vld [vmem:[#allocation2 + $0x320] sm:$0xff]
    %v258 = vld [vmem:[#allocation2 + $0x328] sm:$0xff]
    %v259 = vld [vmem:[#allocation2 + $0x330] sm:$0xff]
    %v260 = vld [vmem:[#allocation2 + $0x338] sm:$0xff]
    %v261 = vld [vmem:[#allocation2 + $0x340] sm:$0xff]
    %v262 = vld [vmem:[#allocation2 + $0x348] sm:$0xff]
    %v263 = vld [vmem:[#allocation2 + $0x350] sm:$0xff]
    %v264 = vld [vmem:[#allocation2 + $0x358] sm:$0xff]
    %v265 = vld [vmem:[#allocation2 + $0x360] sm:$0xff]
    %v266 = vld [vmem:[#allocation2 + $0x368] sm:$0xff]
    %v267 = vld [vmem:[#allocation2 + $0x370] sm:$0xff]
    %v268 = vld [vmem:[#allocation2 + $0x378] sm:$0xff]
    %v269 = vld [vmem:[#allocation2 + $0x380] sm:$0xff]
    %v270 = vld [vmem:[#allocation2 + $0x388] sm:$0xff]
    %v271 = vld [vmem:[#allocation2 + $0x390] sm:$0xff]
    %v272 = vld [vmem:[#allocation2 + $0x398] sm:$0xff]
    %v273 = vld [vmem:[#allocation2 + $0x3a0] sm:$0xff]
    %v274 = vld [vmem:[#allocation2 + $0x3a8] sm:$0xff]
    %v275 = vld [vmem:[#allocation2 + $0x3b0] sm:$0xff]
    %v276 = vld [vmem:[#allocation2 + $0x3b8] sm:$0xff]
    %v277 = vld [vmem:[#allocation2 + $0x3c0] sm:$0xff]
    %v278 = vld [vmem:[#allocation2 + $0x3c8] sm:$0xff]
    %v279 = vld [vmem:[#allocation2 + $0x3d0] sm:$0xff]
    %v280 = vld [vmem:[#allocation2 + $0x3d8] sm:$0xff]
    %v281 = vld [vmem:[#allocation2 + $0x3e0] sm:$0xff]
    %v282 = vld [vmem:[#allocation2 + $0x3e8] sm:$0xff]
    %v283 = vld [vmem:[#allocation2 + $0x3f0] sm:$0xff]
    %v284 = vld [vmem:[#allocation2 + $0x3f8] sm:$0xff]
    %v285 = vld [vmem:[#allocation2 + $0x400] sm:$0xff]
    %v286 = vld [vmem:[#allocation2 + $0x408] sm:$0xff]
    %v287 = vld [vmem:[#allocation2 + $0x410] sm:$0xff]
    %v288 = vld [vmem:[#allocation2 + $0x418] sm:$0xff]
    %v289 = vld [vmem:[#allocation2 + $0x420] sm:$0xff]
    %v290 = vld [vmem:[#allocation2 + $0x428] sm:$0xff]
    %v291 = vld [vmem:[#allocation2 + $0x430] sm:$0xff]
    %v292 = vld [vmem:[#allocation2 + $0x438] sm:$0xff]
    %v293 = vld [vmem:[#allocation2 + $0x440] sm:$0xff]
    %v294 = vld [vmem:[#allocation2 + $0x448] sm:$0xff]
    %v295 = vld [vmem:[#allocation2 + $0x450] sm:$0xff]
    %v296 = vld [vmem:[#allocation2 + $0x458] sm:$0xff]
    %v297 = vld [vmem:[#allocation2 + $0x460] sm:$0xff]
    %v298 = vld [vmem:[#allocation2 + $0x468] sm:$0xff]
    %v299 = vld [vmem:[#allocation2 + $0x470] sm:$0xff]
    %v300 = vld [vmem:[#allocation2 + $0x478] sm:$0xff]
    %v301 = vld [vmem:[#allocation2 + $0x480] sm:$0xff]
    %v302 = vld [vmem:[#allocation2 + $0x488] sm:$0xff]
    %v303 = vld [vmem:[#allocation2 + $0x490] sm:$0xff]
    %v304 = vld [vmem:[#allocation2 + $0x498] sm:$0xff]
    %v305 = vld [vmem:[#allocation2 + $0x4a0] sm:$0xff]
    %v306 = vld [vmem:[#allocation2 + $0x4a8] sm:$0xff]
    %v307 = vld [vmem:[#allocation2 + $0x4b0] sm:$0xff]
    %v308 = vld [vmem:[#allocation2 + $0x4b8] sm:$0xff]
    %v309 = vld [vmem:[#allocation2 + $0x4c0] sm:$0xff]
    %v310 = vld [vmem:[#allocation2 + $0x4c8] sm:$0xff]
    %v311 = vld [vmem:[#allocation2 + $0x4d0] sm:$0xff]
    %v312 = vld [vmem:[#allocation2 + $0x4d8] sm:$0xff]
    %v313 = vld [vmem:[#allocation2 + $0x4e0] sm:$0xff]
    %v314 = vld [vmem:[#allocation2 + $0x4e8] sm:$0xff]
    %v315 = vld [vmem:[#allocation2 + $0x4f0] sm:$0xff]
    %v316 = vld [vmem:[#allocation2 + $0x4f8] sm:$0xff]
    %v317 = vld [vmem:[#allocation2 + $0x500] sm:$0xff]
    %v318 = vld [vmem:[#allocation2 + $0x508] sm:$0xff]
    %v319 = vld [vmem:[#allocation2 + $0x510] sm:$0xff]
    %v320 = vld [vmem:[#allocation2 + $0x518] sm:$0xff]
    %v321 = vld [vmem:[#allocation2 + $0x520] sm:$0xff]
    %v322 = vld [vmem:[#allocation2 + $0x528] sm:$0xff]
    %v323 = vld [vmem:[#allocation2 + $0x530] sm:$0xff]
    %v324 = vld [vmem:[#allocation2 + $0x538] sm:$0xff]
    %v325 = vld [vmem:[#allocation2 + $0x540] sm:$0xff]
    %v326 = vld [vmem:[#allocation2 + $0x548] sm:$0xff]
    %v327 = vld [vmem:[#allocation2 + $0x550] sm:$0xff]
    %v328 = vld [vmem:[#allocation2 + $0x558] sm:$0xff]
    %v329 = vld [vmem:[#allocation2 + $0x560] sm:$0xff]
    %v330 = vld [vmem:[#allocation2 + $0x568] sm:$0xff]
    %v331 = vld [vmem:[#allocation2 + $0x570] sm:$0xff]
    %v332 = vld [vmem:[#allocation2 + $0x578] sm:$0xff]
    %v333 = vld [vmem:[#allocation2 + $0x580] sm:$0xff]
    %v334 = vld [vmem:[#allocation2 + $0x588] sm:$0xff]
    %v335 = vld [vmem:[#allocation2 + $0x590] sm:$0xff]
    %v336 = vld [vmem:[#allocation2 + $0x598] sm:$0xff]
    %v337 = vld [vmem:[#allocation2 + $0x5a0] sm:$0xff]
    %v338 = vld [vmem:[#allocation2 + $0x5a8] sm:$0xff]
    %v339 = vld [vmem:[#allocation2 + $0x5b0] sm:$0xff]
    %v340 = vld [vmem:[#allocation2 + $0x5b8] sm:$0xff]
    %v341 = vld [vmem:[#allocation2 + $0x5c0] sm:$0xff]
    %v342 = vld [vmem:[#allocation2 + $0x5c8] sm:$0xff]
    %v343 = vld [vmem:[#allocation2 + $0x5d0] sm:$0xff]
    %v344 = vld [vmem:[#allocation2 + $0x5d8] sm:$0xff]
    %v345 = vld [vmem:[#allocation2 + $0x5e0] sm:$0xff]
    %v346 = vld [vmem:[#allocation2 + $0x5e8] sm:$0xff]
    %v347 = vld [vmem:[#allocation2 + $0x5f0] sm:$0xff]
    %v348 = vld [vmem:[#allocation2 + $0x5f8] sm:$0xff]
    %v349 = vld [vmem:[#allocation2 + $0x600] sm:$0xff]
    %v350 = vld [vmem:[#allocation2 + $0x608] sm:$0xff]
    %v351 = vld [vmem:[#allocation2 + $0x610] sm:$0xff]
    %v352 = vld [vmem:[#allocation2 + $0x618] sm:$0xff]
    %v353 = vld [vmem:[#allocation2 + $0x620] sm:$0xff]
    %v354 = vld [vmem:[#allocation2 + $0x628] sm:$0xff]
    %v355 = vld [vmem:[#allocation2 + $0x630] sm:$0xff]
    %v356 = vld [vmem:[#allocation2 + $0x638] sm:$0xff]
    %v357 = vld [vmem:[#allocation2 + $0x640] sm:$0xff]
    %v358 = vld [vmem:[#allocation2 + $0x648] sm:$0xff]
    %v359 = vld [vmem:[#allocation2 + $0x650] sm:$0xff]
    %v360 = vld [vmem:[#allocation2 + $0x658] sm:$0xff]
    %v361 = vld [vmem:[#allocation2 + $0x660] sm:$0xff]
    %v362 = vld [vmem:[#allocation2 + $0x668] sm:$0xff]
    %v363 = vld [vmem:[#allocation2 + $0x670] sm:$0xff]
    %v364 = vld [vmem:[#allocation2 + $0x678] sm:$0xff]
    %v365 = vld [vmem:[#allocation2 + $0x680] sm:$0xff]
    %v366 = vld [vmem:[#allocation2 + $0x688] sm:$0xff]
    %v367 = vld [vmem:[#allocation2 + $0x690] sm:$0xff]
    %v368 = vld [vmem:[#allocation2 + $0x698] sm:$0xff]
    %v369 = vld [vmem:[#allocation2 + $0x6a0] sm:$0xff]
    %v370 = vld [vmem:[#allocation2 + $0x6a8] sm:$0xff]
    %v371 = vld [vmem:[#allocation2 + $0x6b0] sm:$0xff]
    %v372 = vld [vmem:[#allocation2 + $0x6b8] sm:$0xff]
    %v373 = vld [vmem:[#allocation2 + $0x6c0] sm:$0xff]
    %v374 = vld [vmem:[#allocation2 + $0x6c8] sm:$0xff]
    %v375 = vld [vmem:[#allocation2 + $0x6d0] sm:$0xff]
    %v376 = vld [vmem:[#allocation2 + $0x6d8] sm:$0xff]
    %v377 = vld [vmem:[#allocation2 + $0x6e0] sm:$0xff]
    %v378 = vld [vmem:[#allocation2 + $0x6e8] sm:$0xff]
    %v379 = vld [vmem:[#allocation2 + $0x6f0] sm:$0xff]
    %v380 = vld [vmem:[#allocation2 + $0x6f8] sm:$0xff]
    %v381 = vld [vmem:[#allocation2 + $0x700] sm:$0xff]
    %v382 = vld [vmem:[#allocation2 + $0x708] sm:$0xff]
    %v383 = vld [vmem:[#allocation2 + $0x710] sm:$0xff]
    %v384 = vld [vmem:[#allocation2 + $0x718] sm:$0xff]
    %v385 = vld [vmem:[#allocation2 + $0x720] sm:$0xff]
    %v386 = vld [vmem:[#allocation2 + $0x728] sm:$0xff]
    %v387 = vld [vmem:[#allocation2 + $0x730] sm:$0xff]
    %v388 = vld [vmem:[#allocation2 + $0x738] sm:$0xff]
    %v389 = vld [vmem:[#allocation2 + $0x740] sm:$0xff]
    %v390 = vld [vmem:[#allocation2 + $0x748] sm:$0xff]
    %v391 = vld [vmem:[#allocation2 + $0x750] sm:$0xff]
    %v392 = vld [vmem:[#allocation2 + $0x758] sm:$0xff]
    %v393 = vld [vmem:[#allocation2 + $0x760] sm:$0xff]
    %v394 = vld [vmem:[#allocation2 + $0x768] sm:$0xff]
    %v395 = vld [vmem:[#allocation2 + $0x770] sm:$0xff]
    %v396 = vld [vmem:[#allocation2 + $0x778] sm:$0xff]
    %v397 = vld [vmem:[#allocation2 + $0x780] sm:$0xff]
    %v398 = vld [vmem:[#allocation2 + $0x788] sm:$0xff]
    %v399 = vld [vmem:[#allocation2 + $0x790] sm:$0xff]
    %v400 = vld [vmem:[#allocation2 + $0x798] sm:$0xff]
    %v401 = vld [vmem:[#allocation2 + $0x7a0] sm:$0xff]
    %v402 = vld [vmem:[#allocation2 + $0x7a8] sm:$0xff]
    %v403 = vld [vmem:[#allocation2 + $0x7b0] sm:$0xff]
    %v404 = vld [vmem:[#allocation2 + $0x7b8] sm:$0xff]
    %v405 = vld [vmem:[#allocation2 + $0x7c0] sm:$0xff]
    %v406 = vld [vmem:[#allocation2 + $0x7c8] sm:$0xff]
    %v407 = vld [vmem:[#allocation2 + $0x7d0] sm:$0xff]
    %v408 = vld [vmem:[#allocation2 + $0x7d8] sm:$0xff]
    %v409 = vld [vmem:[#allocation2 + $0x7e0] sm:$0xff]
    %v410 = vld [vmem:[#allocation2 + $0x7e8] sm:$0xff]
    %v411 = vld [vmem:[#allocation2 + $0x7f0] sm:$0xff]
    %v412 = vld [vmem:[#allocation2 + $0x7f8] sm:$0xff]
    %v413 = vld [vmem:[#allocation2 + $0x800] sm:$0xff]
    %v414 = vld [vmem:[#allocation2 + $0x808] sm:$0xff]
    %v415 = vld [vmem:[#allocation2 + $0x810] sm:$0xff]
    %v416 = vld [vmem:[#allocation2 + $0x818] sm:$0xff]
    %v417 = vld [vmem:[#allocation2 + $0x820] sm:$0xff]
    %v418 = vld [vmem:[#allocation2 + $0x828] sm:$0xff]
    %v419 = vld [vmem:[#allocation2 + $0x830] sm:$0xff]
    %v420 = vld [vmem:[#allocation2 + $0x838] sm:$0xff]
    %v421 = vld [vmem:[#allocation2 + $0x840] sm:$0xff]
    %v422 = vld [vmem:[#allocation2 + $0x848] sm:$0xff]
    %v423 = vld [vmem:[#allocation2 + $0x850] sm:$0xff]
    %v424 = vld [vmem:[#allocation2 + $0x858] sm:$0xff]
    %v425 = vld [vmem:[#allocation2 + $0x860] sm:$0xff]
    %v426 = vld [vmem:[#allocation2 + $0x868] sm:$0xff]
    %v427 = vld [vmem:[#allocation2 + $0x870] sm:$0xff]
    %v428 = vld [vmem:[#allocation2 + $0x878] sm:$0xff]
    %v429 = vld [vmem:[#allocation2 + $0x880] sm:$0xff]
    %v430 = vld [vmem:[#allocation2 + $0x888] sm:$0xff]
    %v431 = vld [vmem:[#allocation2 + $0x890] sm:$0xff]
    %v432 = vld [vmem:[#allocation2 + $0x898] sm:$0xff]
    %v433 = vld [vmem:[#allocation2 + $0x8a0] sm:$0xff]
    %v434 = vld [vmem:[#allocation2 + $0x8a8] sm:$0xff]
    %v435 = vld [vmem:[#allocation2 + $0x8b0] sm:$0xff]
    %v436 = vld [vmem:[#allocation2 + $0x8b8] sm:$0xff]
    %v437 = vld [vmem:[#allocation2 + $0x8c0] sm:$0xff]
    %v438 = vld [vmem:[#allocation2 + $0x8c8] sm:$0xff]
    %v439 = vld [vmem:[#allocation2 + $0x8d0] sm:$0xff]
    %v440 = vld [vmem:[#allocation2 + $0x8d8] sm:$0xff]
    %v441 = vld [vmem:[#allocation2 + $0x8e0] sm:$0xff]
    %v442 = vld [vmem:[#allocation2 + $0x8e8] sm:$0xff]
    %v443 = vld [vmem:[#allocation2 + $0x8f0] sm:$0xff]
    %v444 = vld [vmem:[#allocation2 + $0x8f8] sm:$0xff]
    %v445 = vld [vmem:[#allocation2 + $0x900] sm:$0xff]
    %v446 = vld [vmem:[#allocation2 + $0x908] sm:$0xff]
    %v447 = vld [vmem:[#allocation2 + $0x910] sm:$0xff]
    %v448 = vld [vmem:[#allocation2 + $0x918] sm:$0xff]
    %v449 = vld [vmem:[#allocation2 + $0x920] sm:$0xff]
    %v450 = vld [vmem:[#allocation2 + $0x928] sm:$0xff]
    %v451 = vld [vmem:[#allocation2 + $0x930] sm:$0xff]
    %v452 = vld [vmem:[#allocation2 + $0x938] sm:$0xff]
    %v453 = vld [vmem:[#allocation2 + $0x940] sm:$0xff]
    %v454 = vld [vmem:[#allocation2 + $0x948] sm:$0xff]
    %v455 = vld [vmem:[#allocation2 + $0x950] sm:$0xff]
    %v456 = vld [vmem:[#allocation2 + $0x958] sm:$0xff]
    %v457 = vld [vmem:[#allocation2 + $0x960] sm:$0xff]
    %v458 = vld [vmem:[#allocation2 + $0x968] sm:$0xff]
    %v459 = vld [vmem:[#allocation2 + $0x970] sm:$0xff]
    %v460 = vld [vmem:[#allocation2 + $0x978] sm:$0xff]
    %v461 = vld [vmem:[#allocation2 + $0x980] sm:$0xff]
    %v462 = vld [vmem:[#allocation2 + $0x988] sm:$0xff]
    %v463 = vld [vmem:[#allocation2 + $0x990] sm:$0xff]
    %v464 = vld [vmem:[#allocation2 + $0x998] sm:$0xff]
    %v465 = vld [vmem:[#allocation2 + $0x9a0] sm:$0xff]
    %v466 = vld [vmem:[#allocation2 + $0x9a8] sm:$0xff]
    %v467 = vld [vmem:[#allocation2 + $0x9b0] sm:$0xff]
    %v468 = vld [vmem:[#allocation2 + $0x9b8] sm:$0xff]
    %v469 = vld [vmem:[#allocation2 + $0x9c0] sm:$0xff]
    %v470 = vld [vmem:[#allocation2 + $0x9c8] sm:$0xff]
    %v471 = vld [vmem:[#allocation2 + $0x9d0] sm:$0xff]
    %v472 = vld [vmem:[#allocation2 + $0x9d8] sm:$0xff]
    %v473 = vld [vmem:[#allocation2 + $0x9e0] sm:$0xff]
    %v474 = vld [vmem:[#allocation2 + $0x9e8] sm:$0xff]
    %v475 = vld [vmem:[#allocation2 + $0x9f0] sm:$0xff]
    %v476 = vld [vmem:[#allocation2 + $0x9f8] sm:$0xff]
    %v477 = vld [vmem:[#allocation2 + $0xa00] sm:$0xff]
    %v478 = vld [vmem:[#allocation2 + $0xa08] sm:$0xff]
    %v479 = vld [vmem:[#allocation2 + $0xa10] sm:$0xff]
    %v480 = vld [vmem:[#allocation2 + $0xa18] sm:$0xff]
    %v481 = vld [vmem:[#allocation2 + $0xa20] sm:$0xff]
    %v482 = vld [vmem:[#allocation2 + $0xa28] sm:$0xff]
    %v483 = vld [vmem:[#allocation2 + $0xa30] sm:$0xff]
    %v484 = vld [vmem:[#allocation2 + $0xa38] sm:$0xff]
    %v485 = vld [vmem:[#allocation2 + $0xa40] sm:$0xff]
    %v486 = vld [vmem:[#allocation2 + $0xa48] sm:$0xff]
    %v487 = vld [vmem:[#allocation2 + $0xa50] sm:$0xff]
    %v488 = vld [vmem:[#allocation2 + $0xa58] sm:$0xff]
    %v489 = vld [vmem:[#allocation2 + $0xa60] sm:$0xff]
    %v490 = vld [vmem:[#allocation2 + $0xa68] sm:$0xff]
    %v491 = vld [vmem:[#allocation2 + $0xa70] sm:$0xff]
    %v492 = vld [vmem:[#allocation2 + $0xa78] sm:$0xff]
    %v493 = vld [vmem:[#allocation2 + $0xa80] sm:$0xff]
    %v494 = vld [vmem:[#allocation2 + $0xa88] sm:$0xff]
    %v495 = vld [vmem:[#allocation2 + $0xa90] sm:$0xff]
    %v496 = vld [vmem:[#allocation2 + $0xa98] sm:$0xff]
    %v497 = vld [vmem:[#allocation2 + $0xaa0] sm:$0xff]
    %v498 = vld [vmem:[#allocation2 + $0xaa8] sm:$0xff]
    %v499 = vld [vmem:[#allocation2 + $0xab0] sm:$0xff]
    %v500 = vld [vmem:[#allocation2 + $0xab8] sm:$0xff]
    %v501 = vld [vmem:[#allocation2 + $0xac0] sm:$0xff]
    %v502 = vld [vmem:[#allocation2 + $0xac8] sm:$0xff]
    %v503 = vld [vmem:[#allocation2 + $0xad0] sm:$0xff]
    %v504 = vld [vmem:[#allocation2 + $0xad8] sm:$0xff]
    %v505 = vld [vmem:[#allocation2 + $0xae0] sm:$0xff]
    %v506 = vld [vmem:[#allocation2 + $0xae8] sm:$0xff]
    %v507 = vld [vmem:[#allocation2 + $0xaf0] sm:$0xff]
    %v508 = vld [vmem:[#allocation2 + $0xaf8] sm:$0xff]
    %v509 = vld [vmem:[#allocation2 + $0xb00] sm:$0xff]
    %v510 = vld [vmem:[#allocation2 + $0xb08] sm:$0xff]
    %v511 = vld [vmem:[#allocation2 + $0xb10] sm:$0xff]
    %v512 = vld [vmem:[#allocation2 + $0xb18] sm:$0xff]
    %v513 = vld [vmem:[#allocation2 + $0xb20] sm:$0xff]
    %v514 = vld [vmem:[#allocation2 + $0xb28] sm:$0xff]
    %v515 = vld [vmem:[#allocation2 + $0xb30] sm:$0xff]
    %v516 = vld [vmem:[#allocation2 + $0xb38] sm:$0xff]
    %v517 = vld [vmem:[#allocation2 + $0xb40] sm:$0xff]
    %v518 = vld [vmem:[#allocation2 + $0xb48] sm:$0xff]
    %v519 = vld [vmem:[#allocation2 + $0xb50] sm:$0xff]
    %v520 = vld [vmem:[#allocation2 + $0xb58] sm:$0xff]
    %v521 = vld [vmem:[#allocation2 + $0xb60] sm:$0xff]
    %v522 = vld [vmem:[#allocation2 + $0xb68] sm:$0xff]
    %v523 = vld [vmem:[#allocation2 + $0xb70] sm:$0xff]
    %v524 = vld [vmem:[#allocation2 + $0xb78] sm:$0xff]
    %v525 = vld [vmem:[#allocation2 + $0xb80] sm:$0xff]
    %v526 = vld [vmem:[#allocation2 + $0xb88] sm:$0xff]
    %v527 = vld [vmem:[#allocation2 + $0xb90] sm:$0xff]
    %v528 = vld [vmem:[#allocation2 + $0xb98] sm:$0xff]
    %v529 = vld [vmem:[#allocation2 + $0xba0] sm:$0xff]
    %v530 = vld [vmem:[#allocation2 + $0xba8] sm:$0xff]
    %v531 = vld [vmem:[#allocation2 + $0xbb0] sm:$0xff]
    %v532 = vld [vmem:[#allocation2 + $0xbb8] sm:$0xff]
    %v533 = vld [vmem:[#allocation2 + $0xbc0] sm:$0xff]
    %v534 = vld [vmem:[#allocation2 + $0xbc8] sm:$0xff]
    %v535 = vld [vmem:[#allocation2 + $0xbd0] sm:$0xff]
    %v536 = vld [vmem:[#allocation2 + $0xbd8] sm:$0xff]
    %v537 = vld [vmem:[#allocation2 + $0xbe0] sm:$0xff]
    %v538 = vld [vmem:[#allocation2 + $0xbe8] sm:$0xff]
    %v539 = vld [vmem:[#allocation2 + $0xbf0] sm:$0xff]
    %v540 = vld [vmem:[#allocation2 + $0xbf8] sm:$0xff]
    %v541 = vld [vmem:[#allocation2 + $0xc00] sm:$0xff]
    %v542 = vld [vmem:[#allocation2 + $0xc08] sm:$0xff]
    %v543 = vld [vmem:[#allocation2 + $0xc10] sm:$0xff]
    %v544 = vld [vmem:[#allocation2 + $0xc18] sm:$0xff]
    %v545 = vld [vmem:[#allocation2 + $0xc20] sm:$0xff]
    %v546 = vld [vmem:[#allocation2 + $0xc28] sm:$0xff]
    %v547 = vld [vmem:[#allocation2 + $0xc30] sm:$0xff]
    %v548 = vld [vmem:[#allocation2 + $0xc38] sm:$0xff]
    %v549 = vld [vmem:[#allocation4] sm:$0xff]
    %v551 = vlaneseq
    %v552 = vshrl.u32 %v551, 7
    %v553 = vsub.s32 0, %v552
    %v554 = vrot.slane %v549, %v553
    %v555 = vlaneseq
    %v556 = vshrl.u32 %v555, 7
    %v557 = vsub.s32 1, %v556
    %v558 = vrot.slane %v549, %v557
    %v559 = vlaneseq
    %v560 = vshrl.u32 %v559, 7
    %v561 = vsub.s32 2, %v560
    %v562 = vrot.slane %v549, %v561
    %v563 = vlaneseq
    %v564 = vshrl.u32 %v563, 7
    %v565 = vsub.s32 3, %v564
    %v566 = vrot.slane %v549, %v565
    %v567 = vlaneseq
    %v568 = vshrl.u32 %v567, 7
    %v569 = vsub.s32 4, %v568
    %v570 = vrot.slane %v549, %v569
    %v571 = vlaneseq
    %v572 = vshrl.u32 %v571, 7
    %v573 = vsub.s32 5, %v572
    %v574 = vrot.slane %v549, %v573
    %v575 = vlaneseq
    %v576 = vshrl.u32 %v575, 7
    %v577 = vsub.s32 6, %v576
    %v578 = vrot.slane %v549, %v577
    %v579 = vlaneseq
    %v580 = vshrl.u32 %v579, 7
    %v581 = vsub.s32 7, %v580
    %v582 = vrot.slane %v549, %v581
    %v983 = vunpack.c.l.b16 %v157
    %v984 = vunpack.c.h.b16 %v157
    %v985 = vunpack.c.l.b16 %v158
    %v986 = vunpack.c.h.b16 %v158
    %v987 = vunpack.c.l.b16 %v159
    %v988 = vunpack.c.h.b16 %v159
    %v989 = vunpack.c.l.b16 %v160
    %v990 = vunpack.c.h.b16 %v160
    %v991 = vunpack.c.l.b16 %v161
    %v992 = vunpack.c.h.b16 %v161
    %v993 = vunpack.c.l.b16 %v162
    %v994 = vunpack.c.h.b16 %v162
    %v995 = vunpack.c.l.b16 %v163
    %v996 = vunpack.c.h.b16 %v163
    %v997 = vunpack.c.l.b16 %v164
    %v998 = vunpack.c.h.b16 %v164
    %v999 = vunpack.c.l.b16 %v165
    %v1000 = vunpack.c.h.b16 %v165
    %v1001 = vunpack.c.l.b16 %v166
    %v1002 = vunpack.c.h.b16 %v166
    %v1003 = vunpack.c.l.b16 %v167
    %v1004 = vunpack.c.h.b16 %v167
    %v1005 = vunpack.c.l.b16 %v168
    %v1006 = vunpack.c.h.b16 %v168
    %v1007 = vunpack.c.l.b16 %v169
    %v1008 = vunpack.c.h.b16 %v169
    %v1009 = vunpack.c.l.b16 %v170
    %v1010 = vunpack.c.h.b16 %v170
    %v1011 = vunpack.c.l.b16 %v171
    %v1012 = vunpack.c.h.b16 %v171
    %v1013 = vunpack.c.l.b16 %v172
    %v1014 = vunpack.c.h.b16 %v172
    %v1015 = vunpack.c.l.b16 %v173
    %v1016 = vunpack.c.h.b16 %v173
    %v1017 = vunpack.c.l.b16 %v174
    %v1018 = vunpack.c.h.b16 %v174
    %v1019 = vunpack.c.l.b16 %v175
    %v1020 = vunpack.c.h.b16 %v175
    %v1021 = vunpack.c.l.b16 %v176
    %v1022 = vunpack.c.h.b16 %v176
    %v1023 = vunpack.c.l.b16 %v177
    %v1024 = vunpack.c.h.b16 %v177
    %v1025 = vunpack.c.l.b16 %v178
    %v1026 = vunpack.c.h.b16 %v178
    %v1027 = vunpack.c.l.b16 %v179
    %v1028 = vunpack.c.h.b16 %v179
    %v1029 = vunpack.c.l.b16 %v180
    %v1030 = vunpack.c.h.b16 %v180
    %v1031 = vunpack.c.l.b16 %v181
    %v1032 = vunpack.c.h.b16 %v181
    %v1033 = vunpack.c.l.b16 %v182
    %v1034 = vunpack.c.h.b16 %v182
    %v1035 = vunpack.c.l.b16 %v183
    %v1036 = vunpack.c.h.b16 %v183
    %v1037 = vunpack.c.l.b16 %v184
    %v1038 = vunpack.c.h.b16 %v184
    %v1039 = vunpack.c.l.b16 %v185
    %v1040 = vunpack.c.h.b16 %v185
    %v1041 = vunpack.c.l.b16 %v186
    %v1042 = vunpack.c.h.b16 %v186
    %v1043 = vunpack.c.l.b16 %v187
    %v1044 = vunpack.c.h.b16 %v187
    %v1045 = vunpack.c.l.b16 %v188
    %v1046 = vunpack.c.h.b16 %v188
    %v1047 = vunpack.c.l.b16 %v189
    %v1048 = vunpack.c.h.b16 %v189
    %v1049 = vunpack.c.l.b16 %v190
    %v1050 = vunpack.c.h.b16 %v190
    %v1051 = vunpack.c.l.b16 %v191
    %v1052 = vunpack.c.h.b16 %v191
    %v1053 = vunpack.c.l.b16 %v192
    %v1054 = vunpack.c.h.b16 %v192
    %v1055 = vunpack.c.l.b16 %v193
    %v1056 = vunpack.c.h.b16 %v193
    %v1057 = vunpack.c.l.b16 %v194
    %v1058 = vunpack.c.h.b16 %v194
    %v1059 = vunpack.c.l.b16 %v195
    %v1060 = vunpack.c.h.b16 %v195
    %v1061 = vunpack.c.l.b16 %v196
    %v1062 = vunpack.c.h.b16 %v196
    %v1063 = vunpack.c.l.b16 %v197
    %v1064 = vunpack.c.h.b16 %v197
    %v1065 = vunpack.c.l.b16 %v198
    %v1066 = vunpack.c.h.b16 %v198
    %v1067 = vunpack.c.l.b16 %v199
    %v1068 = vunpack.c.h.b16 %v199
    %v1069 = vunpack.c.l.b16 %v200
    %v1070 = vunpack.c.h.b16 %v200
    %v1071 = vunpack.c.l.b16 %v201
    %v1072 = vunpack.c.h.b16 %v201
    %v1073 = vunpack.c.l.b16 %v202
    %v1074 = vunpack.c.h.b16 %v202
    %v1075 = vunpack.c.l.b16 %v203
    %v1076 = vunpack.c.h.b16 %v203
    %v1077 = vunpack.c.l.b16 %v204
    %v1078 = vunpack.c.h.b16 %v204
    %v1079 = vunpack.c.l.b16 %v205
    %v1080 = vunpack.c.h.b16 %v205
    %v1081 = vunpack.c.l.b16 %v206
    %v1082 = vunpack.c.h.b16 %v206
    %v1083 = vunpack.c.l.b16 %v207
    %v1084 = vunpack.c.h.b16 %v207
    %v1085 = vunpack.c.l.b16 %v208
    %v1086 = vunpack.c.h.b16 %v208
    %v1087 = vunpack.c.l.b16 %v209
    %v1088 = vunpack.c.h.b16 %v209
    %v1089 = vunpack.c.l.b16 %v210
    %v1090 = vunpack.c.h.b16 %v210
    %v1091 = vunpack.c.l.b16 %v211
    %v1092 = vunpack.c.h.b16 %v211
    %v1093 = vunpack.c.l.b16 %v212
    %v1094 = vunpack.c.h.b16 %v212
    %v1095 = vunpack.c.l.b16 %v213
    %v1096 = vunpack.c.h.b16 %v213
    %v1097 = vunpack.c.l.b16 %v214
    %v1098 = vunpack.c.h.b16 %v214
    %v1099 = vunpack.c.l.b16 %v215
    %v1100 = vunpack.c.h.b16 %v215
    %v1101 = vunpack.c.l.b16 %v216
    %v1102 = vunpack.c.h.b16 %v216
    %v1103 = vunpack.c.l.b16 %v217
    %v1104 = vunpack.c.h.b16 %v217
    %v1105 = vunpack.c.l.b16 %v218
    %v1106 = vunpack.c.h.b16 %v218
    %v1107 = vunpack.c.l.b16 %v219
    %v1108 = vunpack.c.h.b16 %v219
    %v1109 = vunpack.c.l.b16 %v220
    %v1110 = vunpack.c.h.b16 %v220
    %v1111 = vunpack.c.l.b16 %v221
    %v1112 = vunpack.c.h.b16 %v221
    %v1113 = vunpack.c.l.b16 %v222
    %v1114 = vunpack.c.h.b16 %v222
    %v1115 = vunpack.c.l.b16 %v223
    %v1116 = vunpack.c.h.b16 %v223
    %v1117 = vunpack.c.l.b16 %v224
    %v1118 = vunpack.c.h.b16 %v224
    %v1119 = vunpack.c.l.b16 %v225
    %v1120 = vunpack.c.h.b16 %v225
    %v1121 = vunpack.c.l.b16 %v226
    %v1122 = vunpack.c.h.b16 %v226
    %v1123 = vunpack.c.l.b16 %v227
    %v1124 = vunpack.c.h.b16 %v227
    %v1125 = vunpack.c.l.b16 %v228
    %v1126 = vunpack.c.h.b16 %v228
    %v1127 = vunpack.c.l.b16 %v229
    %v1128 = vunpack.c.h.b16 %v229
    %v1129 = vunpack.c.l.b16 %v230
    %v1130 = vunpack.c.h.b16 %v230
    %v1131 = vunpack.c.l.b16 %v231
    %v1132 = vunpack.c.h.b16 %v231
    %v1133 = vunpack.c.l.b16 %v232
    %v1134 = vunpack.c.h.b16 %v232
    %v1135 = vunpack.c.l.b16 %v233
    %v1136 = vunpack.c.h.b16 %v233
    %v1137 = vunpack.c.l.b16 %v234
    %v1138 = vunpack.c.h.b16 %v234
    %v1139 = vunpack.c.l.b16 %v235
    %v1140 = vunpack.c.h.b16 %v235
    %v1141 = vunpack.c.l.b16 %v236
    %v1142 = vunpack.c.h.b16 %v236
    %v1143 = vunpack.c.l.b16 %v237
    %v1144 = vunpack.c.h.b16 %v237
    %v1145 = vunpack.c.l.b16 %v238
    %v1146 = vunpack.c.h.b16 %v238
    %v1147 = vunpack.c.l.b16 %v239
    %v1148 = vunpack.c.h.b16 %v239
    %v1149 = vunpack.c.l.b16 %v240
    %v1150 = vunpack.c.h.b16 %v240
    %v1151 = vunpack.c.l.b16 %v241
    %v1152 = vunpack.c.h.b16 %v241
    %v1153 = vunpack.c.l.b16 %v242
    %v1154 = vunpack.c.h.b16 %v242
    %v1155 = vunpack.c.l.b16 %v243
    %v1156 = vunpack.c.h.b16 %v243
    %v1157 = vunpack.c.l.b16 %v244
    %v1158 = vunpack.c.h.b16 %v244
    %v1159 = vunpack.c.l.b16 %v245
    %v1160 = vunpack.c.h.b16 %v245
    %v1161 = vunpack.c.l.b16 %v246
    %v1162 = vunpack.c.h.b16 %v246
    %v1163 = vunpack.c.l.b16 %v247
    %v1164 = vunpack.c.h.b16 %v247
    %v1165 = vunpack.c.l.b16 %v248
    %v1166 = vunpack.c.h.b16 %v248
    %v1167 = vunpack.c.l.b16 %v249
    %v1168 = vunpack.c.h.b16 %v249
    %v1169 = vunpack.c.l.b16 %v250
    %v1170 = vunpack.c.h.b16 %v250
    %v1171 = vunpack.c.l.b16 %v251
    %v1172 = vunpack.c.h.b16 %v251
    %v1173 = vunpack.c.l.b16 %v252
    %v1174 = vunpack.c.h.b16 %v252
    %v1175 = vunpack.c.l.b16 %v253
    %v1176 = vunpack.c.h.b16 %v253
    %v1177 = vunpack.c.l.b16 %v254
    %v1178 = vunpack.c.h.b16 %v254
    %v1179 = vunpack.c.l.b16 %v255
    %v1180 = vunpack.c.h.b16 %v255
    %v1181 = vunpack.c.l.b16 %v256
    %v1182 = vunpack.c.h.b16 %v256
    %v1183 = vunpack.c.l.b16 %v257
    %v1184 = vunpack.c.h.b16 %v257
    %v1185 = vunpack.c.l.b16 %v258
    %v1186 = vunpack.c.h.b16 %v258
    %v1187 = vunpack.c.l.b16 %v259
    %v1188 = vunpack.c.h.b16 %v259
    %v1189 = vunpack.c.l.b16 %v260
    %v1190 = vunpack.c.h.b16 %v260
    %v1191 = vunpack.c.l.b16 %v261
    %v1192 = vunpack.c.h.b16 %v261
    %v1193 = vunpack.c.l.b16 %v262
    %v1194 = vunpack.c.h.b16 %v262
    %v1195 = vunpack.c.l.b16 %v263
    %v1196 = vunpack.c.h.b16 %v263
    %v1197 = vunpack.c.l.b16 %v264
    %v1198 = vunpack.c.h.b16 %v264
    %v1199 = vunpack.c.l.b16 %v265
    %v1200 = vunpack.c.h.b16 %v265
    %v1201 = vunpack.c.l.b16 %v266
    %v1202 = vunpack.c.h.b16 %v266
    %v1203 = vunpack.c.l.b16 %v267
    %v1204 = vunpack.c.h.b16 %v267
    %v1205 = vunpack.c.l.b16 %v268
    %v1206 = vunpack.c.h.b16 %v268
    %v1207 = vunpack.c.l.b16 %v269
    %v1208 = vunpack.c.h.b16 %v269
    %v1209 = vunpack.c.l.b16 %v270
    %v1210 = vunpack.c.h.b16 %v270
    %v1211 = vunpack.c.l.b16 %v271
    %v1212 = vunpack.c.h.b16 %v271
    %v1213 = vunpack.c.l.b16 %v272
    %v1214 = vunpack.c.h.b16 %v272
    %v1215 = vunpack.c.l.b16 %v273
    %v1216 = vunpack.c.h.b16 %v273
    %v1217 = vunpack.c.l.b16 %v274
    %v1218 = vunpack.c.h.b16 %v274
    %v1219 = vunpack.c.l.b16 %v275
    %v1220 = vunpack.c.h.b16 %v275
    %v1221 = vunpack.c.l.b16 %v276
    %v1222 = vunpack.c.h.b16 %v276
    %v1223 = vunpack.c.l.b16 %v277
    %v1224 = vunpack.c.h.b16 %v277
    %v1225 = vunpack.c.l.b16 %v278
    %v1226 = vunpack.c.h.b16 %v278
    %v1227 = vunpack.c.l.b16 %v279
    %v1228 = vunpack.c.h.b16 %v279
    %v1229 = vunpack.c.l.b16 %v280
    %v1230 = vunpack.c.h.b16 %v280
    %v1231 = vunpack.c.l.b16 %v281
    %v1232 = vunpack.c.h.b16 %v281
    %v1233 = vunpack.c.l.b16 %v282
    %v1234 = vunpack.c.h.b16 %v282
    %v1235 = vunpack.c.l.b16 %v283
    %v1236 = vunpack.c.h.b16 %v283
    %v1237 = vunpack.c.l.b16 %v284
    %v1238 = vunpack.c.h.b16 %v284
    %v1239 = vunpack.c.l.b16 %v285
    %v1240 = vunpack.c.h.b16 %v285
    %v1241 = vunpack.c.l.b16 %v286
    %v1242 = vunpack.c.h.b16 %v286
    %v1243 = vunpack.c.l.b16 %v287
    %v1244 = vunpack.c.h.b16 %v287
    %v1245 = vunpack.c.l.b16 %v288
    %v1246 = vunpack.c.h.b16 %v288
    %v1247 = vunpack.c.l.b16 %v289
    %v1248 = vunpack.c.h.b16 %v289
    %v1249 = vunpack.c.l.b16 %v290
    %v1250 = vunpack.c.h.b16 %v290
    %v1251 = vunpack.c.l.b16 %v291
    %v1252 = vunpack.c.h.b16 %v291
    %v1253 = vunpack.c.l.b16 %v292
    %v1254 = vunpack.c.h.b16 %v292
    %v1255 = vunpack.c.l.b16 %v293
    %v1256 = vunpack.c.h.b16 %v293
    %v1257 = vunpack.c.l.b16 %v294
    %v1258 = vunpack.c.h.b16 %v294
    %v1259 = vunpack.c.l.b16 %v295
    %v1260 = vunpack.c.h.b16 %v295
    %v1261 = vunpack.c.l.b16 %v296
    %v1262 = vunpack.c.h.b16 %v296
    %v1263 = vunpack.c.l.b16 %v297
    %v1264 = vunpack.c.h.b16 %v297
    %v1265 = vunpack.c.l.b16 %v298
    %v1266 = vunpack.c.h.b16 %v298
    %v1267 = vunpack.c.l.b16 %v299
    %v1268 = vunpack.c.h.b16 %v299
    %v1269 = vunpack.c.l.b16 %v300
    %v1270 = vunpack.c.h.b16 %v300
    %v1271 = vunpack.c.l.b16 %v301
    %v1272 = vunpack.c.h.b16 %v301
    %v1273 = vunpack.c.l.b16 %v302
    %v1274 = vunpack.c.h.b16 %v302
    %v1275 = vunpack.c.l.b16 %v303
    %v1276 = vunpack.c.h.b16 %v303
    %v1277 = vunpack.c.l.b16 %v304
    %v1278 = vunpack.c.h.b16 %v304
    %v1279 = vunpack.c.l.b16 %v305
    %v1280 = vunpack.c.h.b16 %v305
    %v1281 = vunpack.c.l.b16 %v306
    %v1282 = vunpack.c.h.b16 %v306
    %v1283 = vunpack.c.l.b16 %v307
    %v1284 = vunpack.c.h.b16 %v307
    %v1285 = vunpack.c.l.b16 %v308
    %v1286 = vunpack.c.h.b16 %v308
    %v1287 = vunpack.c.l.b16 %v309
    %v1288 = vunpack.c.h.b16 %v309
    %v1289 = vunpack.c.l.b16 %v310
    %v1290 = vunpack.c.h.b16 %v310
    %v1291 = vunpack.c.l.b16 %v311
    %v1292 = vunpack.c.h.b16 %v311
    %v1293 = vunpack.c.l.b16 %v312
    %v1294 = vunpack.c.h.b16 %v312
    %v1295 = vunpack.c.l.b16 %v313
    %v1296 = vunpack.c.h.b16 %v313
    %v1297 = vunpack.c.l.b16 %v314
    %v1298 = vunpack.c.h.b16 %v314
    %v1299 = vunpack.c.l.b16 %v315
    %v1300 = vunpack.c.h.b16 %v315
    %v1301 = vunpack.c.l.b16 %v316
    %v1302 = vunpack.c.h.b16 %v316
    %v1303 = vunpack.c.l.b16 %v317
    %v1304 = vunpack.c.h.b16 %v317
    %v1305 = vunpack.c.l.b16 %v318
    %v1306 = vunpack.c.h.b16 %v318
    %v1307 = vunpack.c.l.b16 %v319
    %v1308 = vunpack.c.h.b16 %v319
    %v1309 = vunpack.c.l.b16 %v320
    %v1310 = vunpack.c.h.b16 %v320
    %v1311 = vunpack.c.l.b16 %v321
    %v1312 = vunpack.c.h.b16 %v321
    %v1313 = vunpack.c.l.b16 %v322
    %v1314 = vunpack.c.h.b16 %v322
    %v1315 = vunpack.c.l.b16 %v323
    %v1316 = vunpack.c.h.b16 %v323
    %v1317 = vunpack.c.l.b16 %v324
    %v1318 = vunpack.c.h.b16 %v324
    %v1319 = vunpack.c.l.b16 %v325
    %v1320 = vunpack.c.h.b16 %v325
    %v1321 = vunpack.c.l.b16 %v326
    %v1322 = vunpack.c.h.b16 %v326
    %v1323 = vunpack.c.l.b16 %v327
    %v1324 = vunpack.c.h.b16 %v327
    %v1325 = vunpack.c.l.b16 %v328
    %v1326 = vunpack.c.h.b16 %v328
    %v1327 = vunpack.c.l.b16 %v329
    %v1328 = vunpack.c.h.b16 %v329
    %v1329 = vunpack.c.l.b16 %v330
    %v1330 = vunpack.c.h.b16 %v330
    %v1331 = vunpack.c.l.b16 %v331
    %v1332 = vunpack.c.h.b16 %v331
    %v1333 = vunpack.c.l.b16 %v332
    %v1334 = vunpack.c.h.b16 %v332
    %v1335 = vunpack.c.l.b16 %v333
    %v1336 = vunpack.c.h.b16 %v333
    %v1337 = vunpack.c.l.b16 %v334
    %v1338 = vunpack.c.h.b16 %v334
    %v1339 = vunpack.c.l.b16 %v335
    %v1340 = vunpack.c.h.b16 %v335
    %v1341 = vunpack.c.l.b16 %v336
    %v1342 = vunpack.c.h.b16 %v336
    %v1343 = vunpack.c.l.b16 %v337
    %v1344 = vunpack.c.h.b16 %v337
    %v1345 = vunpack.c.l.b16 %v338
    %v1346 = vunpack.c.h.b16 %v338
    %v1347 = vunpack.c.l.b16 %v339
    %v1348 = vunpack.c.h.b16 %v339
    %v1349 = vunpack.c.l.b16 %v340
    %v1350 = vunpack.c.h.b16 %v340
    %v1351 = vunpack.c.l.b16 %v341
    %v1352 = vunpack.c.h.b16 %v341
    %v1353 = vunpack.c.l.b16 %v342
    %v1354 = vunpack.c.h.b16 %v342
    %v1355 = vunpack.c.l.b16 %v343
    %v1356 = vunpack.c.h.b16 %v343
    %v1357 = vunpack.c.l.b16 %v344
    %v1358 = vunpack.c.h.b16 %v344
    %v1359 = vunpack.c.l.b16 %v345
    %v1360 = vunpack.c.h.b16 %v345
    %v1361 = vunpack.c.l.b16 %v346
    %v1362 = vunpack.c.h.b16 %v346
    %v1363 = vunpack.c.l.b16 %v347
    %v1364 = vunpack.c.h.b16 %v347
    %v1365 = vunpack.c.l.b16 %v348
    %v1366 = vunpack.c.h.b16 %v348
    %v1367 = vunpack.c.l.b16 %v349
    %v1368 = vunpack.c.h.b16 %v349
    %v1369 = vunpack.c.l.b16 %v350
    %v1370 = vunpack.c.h.b16 %v350
    %v1371 = vunpack.c.l.b16 %v351
    %v1372 = vunpack.c.h.b16 %v351
    %v1373 = vunpack.c.l.b16 %v352
    %v1374 = vunpack.c.h.b16 %v352
    %v1375 = vunpack.c.l.b16 %v353
    %v1376 = vunpack.c.h.b16 %v353
    %v1377 = vunpack.c.l.b16 %v354
    %v1378 = vunpack.c.h.b16 %v354
    %v1379 = vunpack.c.l.b16 %v355
    %v1380 = vunpack.c.h.b16 %v355
    %v1381 = vunpack.c.l.b16 %v356
    %v1382 = vunpack.c.h.b16 %v356
    %v1383 = vunpack.c.l.b16 %v357
    %v1384 = vunpack.c.h.b16 %v357
    %v1385 = vunpack.c.l.b16 %v358
    %v1386 = vunpack.c.h.b16 %v358
    %v1387 = vunpack.c.l.b16 %v359
    %v1388 = vunpack.c.h.b16 %v359
    %v1389 = vunpack.c.l.b16 %v360
    %v1390 = vunpack.c.h.b16 %v360
    %v1391 = vunpack.c.l.b16 %v361
    %v1392 = vunpack.c.h.b16 %v361
    %v1393 = vunpack.c.l.b16 %v362
    %v1394 = vunpack.c.h.b16 %v362
    %v1395 = vunpack.c.l.b16 %v363
    %v1396 = vunpack.c.h.b16 %v363
    %v1397 = vunpack.c.l.b16 %v364
    %v1398 = vunpack.c.h.b16 %v364
    %v1399 = vunpack.c.l.b16 %v365
    %v1400 = vunpack.c.h.b16 %v365
    %v1401 = vunpack.c.l.b16 %v366
    %v1402 = vunpack.c.h.b16 %v366
    %v1403 = vunpack.c.l.b16 %v367
    %v1404 = vunpack.c.h.b16 %v367
    %v1405 = vunpack.c.l.b16 %v368
    %v1406 = vunpack.c.h.b16 %v368
    %v1407 = vunpack.c.l.b16 %v369
    %v1408 = vunpack.c.h.b16 %v369
    %v1409 = vunpack.c.l.b16 %v370
    %v1410 = vunpack.c.h.b16 %v370
    %v1411 = vunpack.c.l.b16 %v371
    %v1412 = vunpack.c.h.b16 %v371
    %v1413 = vunpack.c.l.b16 %v372
    %v1414 = vunpack.c.h.b16 %v372
    %v1415 = vunpack.c.l.b16 %v373
    %v1416 = vunpack.c.h.b16 %v373
    %v1417 = vunpack.c.l.b16 %v374
    %v1418 = vunpack.c.h.b16 %v374
    %v1419 = vunpack.c.l.b16 %v375
    %v1420 = vunpack.c.h.b16 %v375
    %v1421 = vunpack.c.l.b16 %v376
    %v1422 = vunpack.c.h.b16 %v376
    %v1423 = vunpack.c.l.b16 %v377
    %v1424 = vunpack.c.h.b16 %v377
    %v1425 = vunpack.c.l.b16 %v378
    %v1426 = vunpack.c.h.b16 %v378
    %v1427 = vunpack.c.l.b16 %v379
    %v1428 = vunpack.c.h.b16 %v379
    %v1429 = vunpack.c.l.b16 %v380
    %v1430 = vunpack.c.h.b16 %v380
    %v1431 = vunpack.c.l.b16 %v381
    %v1432 = vunpack.c.h.b16 %v381
    %v1433 = vunpack.c.l.b16 %v382
    %v1434 = vunpack.c.h.b16 %v382
    %v1435 = vunpack.c.l.b16 %v383
    %v1436 = vunpack.c.h.b16 %v383
    %v1437 = vunpack.c.l.b16 %v384
    %v1438 = vunpack.c.h.b16 %v384
    %v1439 = vunpack.c.l.b16 %v385
    %v1440 = vunpack.c.h.b16 %v385
    %v1441 = vunpack.c.l.b16 %v386
    %v1442 = vunpack.c.h.b16 %v386
    %v1443 = vunpack.c.l.b16 %v387
    %v1444 = vunpack.c.h.b16 %v387
    %v1445 = vunpack.c.l.b16 %v388
    %v1446 = vunpack.c.h.b16 %v388
    %v1447 = vunpack.c.l.b16 %v389
    %v1448 = vunpack.c.h.b16 %v389
    %v1449 = vunpack.c.l.b16 %v390
    %v1450 = vunpack.c.h.b16 %v390
    %v1451 = vunpack.c.l.b16 %v391
    %v1452 = vunpack.c.h.b16 %v391
    %v1453 = vunpack.c.l.b16 %v392
    %v1454 = vunpack.c.h.b16 %v392
    %v1455 = vunpack.c.l.b16 %v393
    %v1456 = vunpack.c.h.b16 %v393
    %v1457 = vunpack.c.l.b16 %v394
    %v1458 = vunpack.c.h.b16 %v394
    %v1459 = vunpack.c.l.b16 %v395
    %v1460 = vunpack.c.h.b16 %v395
    %v1461 = vunpack.c.l.b16 %v396
    %v1462 = vunpack.c.h.b16 %v396
    %v1463 = vunpack.c.l.b16 %v397
    %v1464 = vunpack.c.h.b16 %v397
    %v1465 = vunpack.c.l.b16 %v398
    %v1466 = vunpack.c.h.b16 %v398
    %v1467 = vunpack.c.l.b16 %v399
    %v1468 = vunpack.c.h.b16 %v399
    %v1469 = vunpack.c.l.b16 %v400
    %v1470 = vunpack.c.h.b16 %v400
    %v1471 = vunpack.c.l.b16 %v401
    %v1472 = vunpack.c.h.b16 %v401
    %v1473 = vunpack.c.l.b16 %v402
    %v1474 = vunpack.c.h.b16 %v402
    %v1475 = vunpack.c.l.b16 %v403
    %v1476 = vunpack.c.h.b16 %v403
    %v1477 = vunpack.c.l.b16 %v404
    %v1478 = vunpack.c.h.b16 %v404
    %v1479 = vunpack.c.l.b16 %v405
    %v1480 = vunpack.c.h.b16 %v405
    %v1481 = vunpack.c.l.b16 %v406
    %v1482 = vunpack.c.h.b16 %v406
    %v1483 = vunpack.c.l.b16 %v407
    %v1484 = vunpack.c.h.b16 %v407
    %v1485 = vunpack.c.l.b16 %v408
    %v1486 = vunpack.c.h.b16 %v408
    %v1487 = vunpack.c.l.b16 %v409
    %v1488 = vunpack.c.h.b16 %v409
    %v1489 = vunpack.c.l.b16 %v410
    %v1490 = vunpack.c.h.b16 %v410
    %v1491 = vunpack.c.l.b16 %v411
    %v1492 = vunpack.c.h.b16 %v411
    %v1493 = vunpack.c.l.b16 %v412
    %v1494 = vunpack.c.h.b16 %v412
    %v1495 = vunpack.c.l.b16 %v413
    %v1496 = vunpack.c.h.b16 %v413
    %v1497 = vunpack.c.l.b16 %v414
    %v1498 = vunpack.c.h.b16 %v414
    %v1499 = vunpack.c.l.b16 %v415
    %v1500 = vunpack.c.h.b16 %v415
    %v1501 = vunpack.c.l.b16 %v416
    %v1502 = vunpack.c.h.b16 %v416
    %v1503 = vunpack.c.l.b16 %v417
    %v1504 = vunpack.c.h.b16 %v417
    %v1505 = vunpack.c.l.b16 %v418
    %v1506 = vunpack.c.h.b16 %v418
    %v1507 = vunpack.c.l.b16 %v419
    %v1508 = vunpack.c.h.b16 %v419
    %v1509 = vunpack.c.l.b16 %v420
    %v1510 = vunpack.c.h.b16 %v420
    %v1511 = vunpack.c.l.b16 %v421
    %v1512 = vunpack.c.h.b16 %v421
    %v1513 = vunpack.c.l.b16 %v422
    %v1514 = vunpack.c.h.b16 %v422
    %v1515 = vunpack.c.l.b16 %v423
    %v1516 = vunpack.c.h.b16 %v423
    %v1517 = vunpack.c.l.b16 %v424
    %v1518 = vunpack.c.h.b16 %v424
    %v1519 = vunpack.c.l.b16 %v425
    %v1520 = vunpack.c.h.b16 %v425
    %v1521 = vunpack.c.l.b16 %v426
    %v1522 = vunpack.c.h.b16 %v426
    %v1523 = vunpack.c.l.b16 %v427
    %v1524 = vunpack.c.h.b16 %v427
    %v1525 = vunpack.c.l.b16 %v428
    %v1526 = vunpack.c.h.b16 %v428
    %v1527 = vunpack.c.l.b16 %v429
    %v1528 = vunpack.c.h.b16 %v429
    %v1529 = vunpack.c.l.b16 %v430
    %v1530 = vunpack.c.h.b16 %v430
    %v1531 = vunpack.c.l.b16 %v431
    %v1532 = vunpack.c.h.b16 %v431
    %v1533 = vunpack.c.l.b16 %v432
    %v1534 = vunpack.c.h.b16 %v432
    %v1535 = vunpack.c.l.b16 %v433
    %v1536 = vunpack.c.h.b16 %v433
    %v1537 = vunpack.c.l.b16 %v434
    %v1538 = vunpack.c.h.b16 %v434
    %v1539 = vunpack.c.l.b16 %v435
    %v1540 = vunpack.c.h.b16 %v435
    %v1541 = vunpack.c.l.b16 %v436
    %v1542 = vunpack.c.h.b16 %v436
    %v1543 = vunpack.c.l.b16 %v437
    %v1544 = vunpack.c.h.b16 %v437
    %v1545 = vunpack.c.l.b16 %v438
    %v1546 = vunpack.c.h.b16 %v438
    %v1547 = vunpack.c.l.b16 %v439
    %v1548 = vunpack.c.h.b16 %v439
    %v1549 = vunpack.c.l.b16 %v440
    %v1550 = vunpack.c.h.b16 %v440
    %v1551 = vunpack.c.l.b16 %v441
    %v1552 = vunpack.c.h.b16 %v441
    %v1553 = vunpack.c.l.b16 %v442
    %v1554 = vunpack.c.h.b16 %v442
    %v1555 = vunpack.c.l.b16 %v443
    %v1556 = vunpack.c.h.b16 %v443
    %v1557 = vunpack.c.l.b16 %v444
    %v1558 = vunpack.c.h.b16 %v444
    %v1559 = vunpack.c.l.b16 %v445
    %v1560 = vunpack.c.h.b16 %v445
    %v1561 = vunpack.c.l.b16 %v446
    %v1562 = vunpack.c.h.b16 %v446
    %v1563 = vunpack.c.l.b16 %v447
    %v1564 = vunpack.c.h.b16 %v447
    %v1565 = vunpack.c.l.b16 %v448
    %v1566 = vunpack.c.h.b16 %v448
    %v1567 = vunpack.c.l.b16 %v449
    %v1568 = vunpack.c.h.b16 %v449
    %v1569 = vunpack.c.l.b16 %v450
    %v1570 = vunpack.c.h.b16 %v450
    %v1571 = vunpack.c.l.b16 %v451
    %v1572 = vunpack.c.h.b16 %v451
    %v1573 = vunpack.c.l.b16 %v452
    %v1574 = vunpack.c.h.b16 %v452
    %v1575 = vunpack.c.l.b16 %v453
    %v1576 = vunpack.c.h.b16 %v453
    %v1577 = vunpack.c.l.b16 %v454
    %v1578 = vunpack.c.h.b16 %v454
    %v1579 = vunpack.c.l.b16 %v455
    %v1580 = vunpack.c.h.b16 %v455
    %v1581 = vunpack.c.l.b16 %v456
    %v1582 = vunpack.c.h.b16 %v456
    %v1583 = vunpack.c.l.b16 %v457
    %v1584 = vunpack.c.h.b16 %v457
    %v1585 = vunpack.c.l.b16 %v458
    %v1586 = vunpack.c.h.b16 %v458
    %v1587 = vunpack.c.l.b16 %v459
    %v1588 = vunpack.c.h.b16 %v459
    %v1589 = vunpack.c.l.b16 %v460
    %v1590 = vunpack.c.h.b16 %v460
    %v1591 = vunpack.c.l.b16 %v461
    %v1592 = vunpack.c.h.b16 %v461
    %v1593 = vunpack.c.l.b16 %v462
    %v1594 = vunpack.c.h.b16 %v462
    %v1595 = vunpack.c.l.b16 %v463
    %v1596 = vunpack.c.h.b16 %v463
    %v1597 = vunpack.c.l.b16 %v464
    %v1598 = vunpack.c.h.b16 %v464
    %v1599 = vunpack.c.l.b16 %v465
    %v1600 = vunpack.c.h.b16 %v465
    %v1601 = vunpack.c.l.b16 %v466
    %v1602 = vunpack.c.h.b16 %v466
    %v1603 = vunpack.c.l.b16 %v467
    %v1604 = vunpack.c.h.b16 %v467
    %v1605 = vunpack.c.l.b16 %v468
    %v1606 = vunpack.c.h.b16 %v468
    %v1607 = vunpack.c.l.b16 %v469
    %v1608 = vunpack.c.h.b16 %v469
    %v1609 = vunpack.c.l.b16 %v470
    %v1610 = vunpack.c.h.b16 %v470
    %v1611 = vunpack.c.l.b16 %v471
    %v1612 = vunpack.c.h.b16 %v471
    %v1613 = vunpack.c.l.b16 %v472
    %v1614 = vunpack.c.h.b16 %v472
    %v1615 = vunpack.c.l.b16 %v473
    %v1616 = vunpack.c.h.b16 %v473
    %v1617 = vunpack.c.l.b16 %v474
    %v1618 = vunpack.c.h.b16 %v474
    %v1619 = vunpack.c.l.b16 %v475
    %v1620 = vunpack.c.h.b16 %v475
    %v1621 = vunpack.c.l.b16 %v476
    %v1622 = vunpack.c.h.b16 %v476
    %v1623 = vunpack.c.l.b16 %v477
    %v1624 = vunpack.c.h.b16 %v477
    %v1625 = vunpack.c.l.b16 %v478
    %v1626 = vunpack.c.h.b16 %v478
    %v1627 = vunpack.c.l.b16 %v479
    %v1628 = vunpack.c.h.b16 %v479
    %v1629 = vunpack.c.l.b16 %v480
    %v1630 = vunpack.c.h.b16 %v480
    %v1631 = vunpack.c.l.b16 %v481
    %v1632 = vunpack.c.h.b16 %v481
    %v1633 = vunpack.c.l.b16 %v482
    %v1634 = vunpack.c.h.b16 %v482
    %v1635 = vunpack.c.l.b16 %v483
    %v1636 = vunpack.c.h.b16 %v483
    %v1637 = vunpack.c.l.b16 %v484
    %v1638 = vunpack.c.h.b16 %v484
    %v1639 = vunpack.c.l.b16 %v485
    %v1640 = vunpack.c.h.b16 %v485
    %v1641 = vunpack.c.l.b16 %v486
    %v1642 = vunpack.c.h.b16 %v486
    %v1643 = vunpack.c.l.b16 %v487
    %v1644 = vunpack.c.h.b16 %v487
    %v1645 = vunpack.c.l.b16 %v488
    %v1646 = vunpack.c.h.b16 %v488
    %v1647 = vunpack.c.l.b16 %v489
    %v1648 = vunpack.c.h.b16 %v489
    %v1649 = vunpack.c.l.b16 %v490
    %v1650 = vunpack.c.h.b16 %v490
    %v1651 = vunpack.c.l.b16 %v491
    %v1652 = vunpack.c.h.b16 %v491
    %v1653 = vunpack.c.l.b16 %v492
    %v1654 = vunpack.c.h.b16 %v492
    %v1655 = vunpack.c.l.b16 %v493
    %v1656 = vunpack.c.h.b16 %v493
    %v1657 = vunpack.c.l.b16 %v494
    %v1658 = vunpack.c.h.b16 %v494
    %v1659 = vunpack.c.l.b16 %v495
    %v1660 = vunpack.c.h.b16 %v495
    %v1661 = vunpack.c.l.b16 %v496
    %v1662 = vunpack.c.h.b16 %v496
    %v1663 = vunpack.c.l.b16 %v497
    %v1664 = vunpack.c.h.b16 %v497
    %v1665 = vunpack.c.l.b16 %v498
    %v1666 = vunpack.c.h.b16 %v498
    %v1667 = vunpack.c.l.b16 %v499
    %v1668 = vunpack.c.h.b16 %v499
    %v1669 = vunpack.c.l.b16 %v500
    %v1670 = vunpack.c.h.b16 %v500
    %v1671 = vunpack.c.l.b16 %v501
    %v1672 = vunpack.c.h.b16 %v501
    %v1673 = vunpack.c.l.b16 %v502
    %v1674 = vunpack.c.h.b16 %v502
    %v1675 = vunpack.c.l.b16 %v503
    %v1676 = vunpack.c.h.b16 %v503
    %v1677 = vunpack.c.l.b16 %v504
    %v1678 = vunpack.c.h.b16 %v504
    %v1679 = vunpack.c.l.b16 %v505
    %v1680 = vunpack.c.h.b16 %v505
    %v1681 = vunpack.c.l.b16 %v506
    %v1682 = vunpack.c.h.b16 %v506
    %v1683 = vunpack.c.l.b16 %v507
    %v1684 = vunpack.c.h.b16 %v507
    %v1685 = vunpack.c.l.b16 %v508
    %v1686 = vunpack.c.h.b16 %v508
    %v1687 = vunpack.c.l.b16 %v509
    %v1688 = vunpack.c.h.b16 %v509
    %v1689 = vunpack.c.l.b16 %v510
    %v1690 = vunpack.c.h.b16 %v510
    %v1691 = vunpack.c.l.b16 %v511
    %v1692 = vunpack.c.h.b16 %v511
    %v1693 = vunpack.c.l.b16 %v512
    %v1694 = vunpack.c.h.b16 %v512
    %v1695 = vunpack.c.l.b16 %v513
    %v1696 = vunpack.c.h.b16 %v513
    %v1697 = vunpack.c.l.b16 %v514
    %v1698 = vunpack.c.h.b16 %v514
    %v1699 = vunpack.c.l.b16 %v515
    %v1700 = vunpack.c.h.b16 %v515
    %v1701 = vunpack.c.l.b16 %v516
    %v1702 = vunpack.c.h.b16 %v516
    %v1703 = vunpack.c.l.b16 %v517
    %v1704 = vunpack.c.h.b16 %v517
    %v1705 = vunpack.c.l.b16 %v518
    %v1706 = vunpack.c.h.b16 %v518
    %v1707 = vunpack.c.l.b16 %v519
    %v1708 = vunpack.c.h.b16 %v519
    %v1709 = vunpack.c.l.b16 %v520
    %v1710 = vunpack.c.h.b16 %v520
    %v1711 = vunpack.c.l.b16 %v521
    %v1712 = vunpack.c.h.b16 %v521
    %v1713 = vunpack.c.l.b16 %v522
    %v1714 = vunpack.c.h.b16 %v522
    %v1715 = vunpack.c.l.b16 %v523
    %v1716 = vunpack.c.h.b16 %v523
    %v1717 = vunpack.c.l.b16 %v524
    %v1718 = vunpack.c.h.b16 %v524
    %v1719 = vunpack.c.l.b16 %v525
    %v1720 = vunpack.c.h.b16 %v525
    %v1721 = vunpack.c.l.b16 %v526
    %v1722 = vunpack.c.h.b16 %v526
    %v1723 = vunpack.c.l.b16 %v527
    %v1724 = vunpack.c.h.b16 %v527
    %v1725 = vunpack.c.l.b16 %v528
    %v1726 = vunpack.c.h.b16 %v528
    %v1727 = vunpack.c.l.b16 %v529
    %v1728 = vunpack.c.h.b16 %v529
    %v1729 = vunpack.c.l.b16 %v530
    %v1730 = vunpack.c.h.b16 %v530
    %v1731 = vunpack.c.l.b16 %v531
    %v1732 = vunpack.c.h.b16 %v531
    %v1733 = vunpack.c.l.b16 %v532
    %v1734 = vunpack.c.h.b16 %v532
    %v1735 = vunpack.c.l.b16 %v533
    %v1736 = vunpack.c.h.b16 %v533
    %v1737 = vunpack.c.l.b16 %v534
    %v1738 = vunpack.c.h.b16 %v534
    %v1739 = vunpack.c.l.b16 %v535
    %v1740 = vunpack.c.h.b16 %v535
    %v1741 = vunpack.c.l.b16 %v536
    %v1742 = vunpack.c.h.b16 %v536
    %v1743 = vunpack.c.l.b16 %v537
    %v1744 = vunpack.c.h.b16 %v537
    %v1745 = vunpack.c.l.b16 %v538
    %v1746 = vunpack.c.h.b16 %v538
    %v1747 = vunpack.c.l.b16 %v539
    %v1748 = vunpack.c.h.b16 %v539
    %v1749 = vunpack.c.l.b16 %v540
    %v1750 = vunpack.c.h.b16 %v540
    %v1751 = vunpack.c.l.b16 %v541
    %v1752 = vunpack.c.h.b16 %v541
    %v1753 = vunpack.c.l.b16 %v542
    %v1754 = vunpack.c.h.b16 %v542
    %v1755 = vunpack.c.l.b16 %v543
    %v1756 = vunpack.c.h.b16 %v543
    %v1757 = vunpack.c.l.b16 %v544
    %v1758 = vunpack.c.h.b16 %v544
    %v1759 = vunpack.c.l.b16 %v545
    %v1760 = vunpack.c.h.b16 %v545
    %v1761 = vunpack.c.l.b16 %v546
    %v1762 = vunpack.c.h.b16 %v546
    %v1763 = vunpack.c.l.b16 %v547
    %v1764 = vunpack.c.h.b16 %v547
    %v1765 = vunpack.c.l.b16 %v548
    %v1766 = vunpack.c.h.b16 %v548
    %v1767 = vpack.c.b16 %v991, %v983
    %v1768 = vpack.c.b16 %v992, %v984
    %v1769 = vpack.c.b16 %v993, %v985
    %v1770 = vpack.c.b16 %v994, %v986
    %v1771 = vpack.c.b16 %v995, %v987
    %v1772 = vpack.c.b16 %v996, %v988
    %v1773 = vpack.c.b16 %v997, %v989
    %v1774 = vpack.c.b16 %v998, %v990
    %v1775 = vpack.c.b16 %v1007, %v999
    %v1776 = vpack.c.b16 %v1008, %v1000
    %v1777 = vpack.c.b16 %v1009, %v1001
    %v1778 = vpack.c.b16 %v1010, %v1002
    %v1779 = vpack.c.b16 %v1011, %v1003
    %v1780 = vpack.c.b16 %v1012, %v1004
    %v1781 = vpack.c.b16 %v1013, %v1005
    %v1782 = vpack.c.b16 %v1014, %v1006
    %v1783 = vpack.c.b16 %v1023, %v1015
    %v1784 = vpack.c.b16 %v1024, %v1016
    %v1785 = vpack.c.b16 %v1025, %v1017
    %v1786 = vpack.c.b16 %v1026, %v1018
    %v1787 = vpack.c.b16 %v1027, %v1019
    %v1788 = vpack.c.b16 %v1028, %v1020
    %v1789 = vpack.c.b16 %v1029, %v1021
    %v1790 = vpack.c.b16 %v1030, %v1022
    %v1791 = vpack.c.b16 %v1039, %v1031
    %v1792 = vpack.c.b16 %v1040, %v1032
    %v1793 = vpack.c.b16 %v1041, %v1033
    %v1794 = vpack.c.b16 %v1042, %v1034
    %v1795 = vpack.c.b16 %v1043, %v1035
    %v1796 = vpack.c.b16 %v1044, %v1036
    %v1797 = vpack.c.b16 %v1045, %v1037
    %v1798 = vpack.c.b16 %v1046, %v1038
    %v1799 = vpack.c.b16 %v1055, %v1047
    %v1800 = vpack.c.b16 %v1056, %v1048
    %v1801 = vpack.c.b16 %v1057, %v1049
    %v1802 = vpack.c.b16 %v1058, %v1050
    %v1803 = vpack.c.b16 %v1059, %v1051
    %v1804 = vpack.c.b16 %v1060, %v1052
    %v1805 = vpack.c.b16 %v1061, %v1053
    %v1806 = vpack.c.b16 %v1062, %v1054
    %v1807 = vpack.c.b16 %v1071, %v1063
    %v1808 = vpack.c.b16 %v1072, %v1064
    %v1809 = vpack.c.b16 %v1073, %v1065
    %v1810 = vpack.c.b16 %v1074, %v1066
    %v1811 = vpack.c.b16 %v1075, %v1067
    %v1812 = vpack.c.b16 %v1076, %v1068
    %v1813 = vpack.c.b16 %v1077, %v1069
    %v1814 = vpack.c.b16 %v1078, %v1070
    %v1815 = vpack.c.b16 %v1087, %v1079
    %v1816 = vpack.c.b16 %v1088, %v1080
    %v1817 = vpack.c.b16 %v1089, %v1081
    %v1818 = vpack.c.b16 %v1090, %v1082
    %v1819 = vpack.c.b16 %v1091, %v1083
    %v1820 = vpack.c.b16 %v1092, %v1084
    %v1821 = vpack.c.b16 %v1093, %v1085
    %v1822 = vpack.c.b16 %v1094, %v1086
    %v1823 = vpack.c.b16 %v1103, %v1095
    %v1824 = vpack.c.b16 %v1104, %v1096
    %v1825 = vpack.c.b16 %v1105, %v1097
    %v1826 = vpack.c.b16 %v1106, %v1098
    %v1827 = vpack.c.b16 %v1107, %v1099
    %v1828 = vpack.c.b16 %v1108, %v1100
    %v1829 = vpack.c.b16 %v1109, %v1101
    %v1830 = vpack.c.b16 %v1110, %v1102
    %v1831 = vpack.c.b16 %v1119, %v1111
    %v1832 = vpack.c.b16 %v1120, %v1112
    %v1833 = vpack.c.b16 %v1121, %v1113
    %v1834 = vpack.c.b16 %v1122, %v1114
    %v1835 = vpack.c.b16 %v1123, %v1115
    %v1836 = vpack.c.b16 %v1124, %v1116
    %v1837 = vpack.c.b16 %v1125, %v1117
    %v1838 = vpack.c.b16 %v1126, %v1118
    %v1839 = vpack.c.b16 %v1135, %v1127
    %v1840 = vpack.c.b16 %v1136, %v1128
    %v1841 = vpack.c.b16 %v1137, %v1129
    %v1842 = vpack.c.b16 %v1138, %v1130
    %v1843 = vpack.c.b16 %v1139, %v1131
    %v1844 = vpack.c.b16 %v1140, %v1132
    %v1845 = vpack.c.b16 %v1141, %v1133
    %v1846 = vpack.c.b16 %v1142, %v1134
    %v1847 = vpack.c.b16 %v1151, %v1143
    %v1848 = vpack.c.b16 %v1152, %v1144
    %v1849 = vpack.c.b16 %v1153, %v1145
    %v1850 = vpack.c.b16 %v1154, %v1146
    %v1851 = vpack.c.b16 %v1155, %v1147
    %v1852 = vpack.c.b16 %v1156, %v1148
    %v1853 = vpack.c.b16 %v1157, %v1149
    %v1854 = vpack.c.b16 %v1158, %v1150
    %v1855 = vpack.c.b16 %v1167, %v1159
    %v1856 = vpack.c.b16 %v1168, %v1160
    %v1857 = vpack.c.b16 %v1169, %v1161
    %v1858 = vpack.c.b16 %v1170, %v1162
    %v1859 = vpack.c.b16 %v1171, %v1163
    %v1860 = vpack.c.b16 %v1172, %v1164
    %v1861 = vpack.c.b16 %v1173, %v1165
    %v1862 = vpack.c.b16 %v1174, %v1166
    %v1863 = vpack.c.b16 %v1183, %v1175
    %v1864 = vpack.c.b16 %v1184, %v1176
    %v1865 = vpack.c.b16 %v1185, %v1177
    %v1866 = vpack.c.b16 %v1186, %v1178
    %v1867 = vpack.c.b16 %v1187, %v1179
    %v1868 = vpack.c.b16 %v1188, %v1180
    %v1869 = vpack.c.b16 %v1189, %v1181
    %v1870 = vpack.c.b16 %v1190, %v1182
    %v1871 = vpack.c.b16 %v1199, %v1191
    %v1872 = vpack.c.b16 %v1200, %v1192
    %v1873 = vpack.c.b16 %v1201, %v1193
    %v1874 = vpack.c.b16 %v1202, %v1194
    %v1875 = vpack.c.b16 %v1203, %v1195
    %v1876 = vpack.c.b16 %v1204, %v1196
    %v1877 = vpack.c.b16 %v1205, %v1197
    %v1878 = vpack.c.b16 %v1206, %v1198
    %v1879 = vpack.c.b16 %v1215, %v1207
    %v1880 = vpack.c.b16 %v1216, %v1208
    %v1881 = vpack.c.b16 %v1217, %v1209
    %v1882 = vpack.c.b16 %v1218, %v1210
    %v1883 = vpack.c.b16 %v1219, %v1211
    %v1884 = vpack.c.b16 %v1220, %v1212
    %v1885 = vpack.c.b16 %v1221, %v1213
    %v1886 = vpack.c.b16 %v1222, %v1214
    %v1887 = vpack.c.b16 %v1231, %v1223
    %v1888 = vpack.c.b16 %v1232, %v1224
    %v1889 = vpack.c.b16 %v1233, %v1225
    %v1890 = vpack.c.b16 %v1234, %v1226
    %v1891 = vpack.c.b16 %v1235, %v1227
    %v1892 = vpack.c.b16 %v1236, %v1228
    %v1893 = vpack.c.b16 %v1237, %v1229
    %v1894 = vpack.c.b16 %v1238, %v1230
    %v1895 = vpack.c.b16 %v1247, %v1239
    %v1896 = vpack.c.b16 %v1248, %v1240
    %v1897 = vpack.c.b16 %v1249, %v1241
    %v1898 = vpack.c.b16 %v1250, %v1242
    %v1899 = vpack.c.b16 %v1251, %v1243
    %v1900 = vpack.c.b16 %v1252, %v1244
    %v1901 = vpack.c.b16 %v1253, %v1245
    %v1902 = vpack.c.b16 %v1254, %v1246
    %v1903 = vpack.c.b16 %v1263, %v1255
    %v1904 = vpack.c.b16 %v1264, %v1256
    %v1905 = vpack.c.b16 %v1265, %v1257
    %v1906 = vpack.c.b16 %v1266, %v1258
    %v1907 = vpack.c.b16 %v1267, %v1259
    %v1908 = vpack.c.b16 %v1268, %v1260
    %v1909 = vpack.c.b16 %v1269, %v1261
    %v1910 = vpack.c.b16 %v1270, %v1262
    %v1911 = vpack.c.b16 %v1279, %v1271
    %v1912 = vpack.c.b16 %v1280, %v1272
    %v1913 = vpack.c.b16 %v1281, %v1273
    %v1914 = vpack.c.b16 %v1282, %v1274
    %v1915 = vpack.c.b16 %v1283, %v1275
    %v1916 = vpack.c.b16 %v1284, %v1276
    %v1917 = vpack.c.b16 %v1285, %v1277
    %v1918 = vpack.c.b16 %v1286, %v1278
    %v1919 = vpack.c.b16 %v1295, %v1287
    %v1920 = vpack.c.b16 %v1296, %v1288
    %v1921 = vpack.c.b16 %v1297, %v1289
    %v1922 = vpack.c.b16 %v1298, %v1290
    %v1923 = vpack.c.b16 %v1299, %v1291
    %v1924 = vpack.c.b16 %v1300, %v1292
    %v1925 = vpack.c.b16 %v1301, %v1293
    %v1926 = vpack.c.b16 %v1302, %v1294
    %v1927 = vpack.c.b16 %v1311, %v1303
    %v1928 = vpack.c.b16 %v1312, %v1304
    %v1929 = vpack.c.b16 %v1313, %v1305
    %v1930 = vpack.c.b16 %v1314, %v1306
    %v1931 = vpack.c.b16 %v1315, %v1307
    %v1932 = vpack.c.b16 %v1316, %v1308
    %v1933 = vpack.c.b16 %v1317, %v1309
    %v1934 = vpack.c.b16 %v1318, %v1310
    %v1935 = vpack.c.b16 %v1327, %v1319
    %v1936 = vpack.c.b16 %v1328, %v1320
    %v1937 = vpack.c.b16 %v1329, %v1321
    %v1938 = vpack.c.b16 %v1330, %v1322
    %v1939 = vpack.c.b16 %v1331, %v1323
    %v1940 = vpack.c.b16 %v1332, %v1324
    %v1941 = vpack.c.b16 %v1333, %v1325
    %v1942 = vpack.c.b16 %v1334, %v1326
    %v1943 = vpack.c.b16 %v1343, %v1335
    %v1944 = vpack.c.b16 %v1344, %v1336
    %v1945 = vpack.c.b16 %v1345, %v1337
    %v1946 = vpack.c.b16 %v1346, %v1338
    %v1947 = vpack.c.b16 %v1347, %v1339
    %v1948 = vpack.c.b16 %v1348, %v1340
    %v1949 = vpack.c.b16 %v1349, %v1341
    %v1950 = vpack.c.b16 %v1350, %v1342
    %v1951 = vpack.c.b16 %v1359, %v1351
    %v1952 = vpack.c.b16 %v1360, %v1352
    %v1953 = vpack.c.b16 %v1361, %v1353
    %v1954 = vpack.c.b16 %v1362, %v1354
    %v1955 = vpack.c.b16 %v1363, %v1355
    %v1956 = vpack.c.b16 %v1364, %v1356
    %v1957 = vpack.c.b16 %v1365, %v1357
    %v1958 = vpack.c.b16 %v1366, %v1358
    %v1959 = vpack.c.b16 %v1375, %v1367
    %v1960 = vpack.c.b16 %v1376, %v1368
    %v1961 = vpack.c.b16 %v1377, %v1369
    %v1962 = vpack.c.b16 %v1378, %v1370
    %v1963 = vpack.c.b16 %v1379, %v1371
    %v1964 = vpack.c.b16 %v1380, %v1372
    %v1965 = vpack.c.b16 %v1381, %v1373
    %v1966 = vpack.c.b16 %v1382, %v1374
    %v1967 = vpack.c.b16 %v1391, %v1383
    %v1968 = vpack.c.b16 %v1392, %v1384
    %v1969 = vpack.c.b16 %v1393, %v1385
    %v1970 = vpack.c.b16 %v1394, %v1386
    %v1971 = vpack.c.b16 %v1395, %v1387
    %v1972 = vpack.c.b16 %v1396, %v1388
    %v1973 = vpack.c.b16 %v1397, %v1389
    %v1974 = vpack.c.b16 %v1398, %v1390
    %v1975 = vpack.c.b16 %v1407, %v1399
    %v1976 = vpack.c.b16 %v1408, %v1400
    %v1977 = vpack.c.b16 %v1409, %v1401
    %v1978 = vpack.c.b16 %v1410, %v1402
    %v1979 = vpack.c.b16 %v1411, %v1403
    %v1980 = vpack.c.b16 %v1412, %v1404
    %v1981 = vpack.c.b16 %v1413, %v1405
    %v1982 = vpack.c.b16 %v1414, %v1406
    %v1983 = vpack.c.b16 %v1423, %v1415
    %v1984 = vpack.c.b16 %v1424, %v1416
    %v1985 = vpack.c.b16 %v1425, %v1417
    %v1986 = vpack.c.b16 %v1426, %v1418
    %v1987 = vpack.c.b16 %v1427, %v1419
    %v1988 = vpack.c.b16 %v1428, %v1420
    %v1989 = vpack.c.b16 %v1429, %v1421
    %v1990 = vpack.c.b16 %v1430, %v1422
    %v1991 = vpack.c.b16 %v1439, %v1431
    %v1992 = vpack.c.b16 %v1440, %v1432
    %v1993 = vpack.c.b16 %v1441, %v1433
    %v1994 = vpack.c.b16 %v1442, %v1434
    %v1995 = vpack.c.b16 %v1443, %v1435
    %v1996 = vpack.c.b16 %v1444, %v1436
    %v1997 = vpack.c.b16 %v1445, %v1437
    %v1998 = vpack.c.b16 %v1446, %v1438
    %v1999 = vpack.c.b16 %v1455, %v1447
    %v2000 = vpack.c.b16 %v1456, %v1448
    %v2001 = vpack.c.b16 %v1457, %v1449
    %v2002 = vpack.c.b16 %v1458, %v1450
    %v2003 = vpack.c.b16 %v1459, %v1451
    %v2004 = vpack.c.b16 %v1460, %v1452
    %v2005 = vpack.c.b16 %v1461, %v1453
    %v2006 = vpack.c.b16 %v1462, %v1454
    %v2007 = vpack.c.b16 %v1471, %v1463
    %v2008 = vpack.c.b16 %v1472, %v1464
    %v2009 = vpack.c.b16 %v1473, %v1465
    %v2010 = vpack.c.b16 %v1474, %v1466
    %v2011 = vpack.c.b16 %v1475, %v1467
    %v2012 = vpack.c.b16 %v1476, %v1468
    %v2013 = vpack.c.b16 %v1477, %v1469
    %v2014 = vpack.c.b16 %v1478, %v1470
    %v2015 = vpack.c.b16 %v1487, %v1479
    %v2016 = vpack.c.b16 %v1488, %v1480
    %v2017 = vpack.c.b16 %v1489, %v1481
    %v2018 = vpack.c.b16 %v1490, %v1482
    %v2019 = vpack.c.b16 %v1491, %v1483
    %v2020 = vpack.c.b16 %v1492, %v1484
    %v2021 = vpack.c.b16 %v1493, %v1485
    %v2022 = vpack.c.b16 %v1494, %v1486
    %v2023 = vpack.c.b16 %v1503, %v1495
    %v2024 = vpack.c.b16 %v1504, %v1496
    %v2025 = vpack.c.b16 %v1505, %v1497
    %v2026 = vpack.c.b16 %v1506, %v1498
    %v2027 = vpack.c.b16 %v1507, %v1499
    %v2028 = vpack.c.b16 %v1508, %v1500
    %v2029 = vpack.c.b16 %v1509, %v1501
    %v2030 = vpack.c.b16 %v1510, %v1502
    %v2031 = vpack.c.b16 %v1519, %v1511
    %v2032 = vpack.c.b16 %v1520, %v1512
    %v2033 = vpack.c.b16 %v1521, %v1513
    %v2034 = vpack.c.b16 %v1522, %v1514
    %v2035 = vpack.c.b16 %v1523, %v1515
    %v2036 = vpack.c.b16 %v1524, %v1516
    %v2037 = vpack.c.b16 %v1525, %v1517
    %v2038 = vpack.c.b16 %v1526, %v1518
    %v2039 = vpack.c.b16 %v1535, %v1527
    %v2040 = vpack.c.b16 %v1536, %v1528
    %v2041 = vpack.c.b16 %v1537, %v1529
    %v2042 = vpack.c.b16 %v1538, %v1530
    %v2043 = vpack.c.b16 %v1539, %v1531
    %v2044 = vpack.c.b16 %v1540, %v1532
    %v2045 = vpack.c.b16 %v1541, %v1533
    %v2046 = vpack.c.b16 %v1542, %v1534
    %v2047 = vpack.c.b16 %v1551, %v1543
    %v2048 = vpack.c.b16 %v1552, %v1544
    %v2049 = vpack.c.b16 %v1553, %v1545
    %v2050 = vpack.c.b16 %v1554, %v1546
    %v2051 = vpack.c.b16 %v1555, %v1547
    %v2052 = vpack.c.b16 %v1556, %v1548
    %v2053 = vpack.c.b16 %v1557, %v1549
    %v2054 = vpack.c.b16 %v1558, %v1550
    %v2055 = vpack.c.b16 %v1567, %v1559
    %v2056 = vpack.c.b16 %v1568, %v1560
    %v2057 = vpack.c.b16 %v1569, %v1561
    %v2058 = vpack.c.b16 %v1570, %v1562
    %v2059 = vpack.c.b16 %v1571, %v1563
    %v2060 = vpack.c.b16 %v1572, %v1564
    %v2061 = vpack.c.b16 %v1573, %v1565
    %v2062 = vpack.c.b16 %v1574, %v1566
    %v2063 = vpack.c.b16 %v1583, %v1575
    %v2064 = vpack.c.b16 %v1584, %v1576
    %v2065 = vpack.c.b16 %v1585, %v1577
    %v2066 = vpack.c.b16 %v1586, %v1578
    %v2067 = vpack.c.b16 %v1587, %v1579
    %v2068 = vpack.c.b16 %v1588, %v1580
    %v2069 = vpack.c.b16 %v1589, %v1581
    %v2070 = vpack.c.b16 %v1590, %v1582
    %v2071 = vpack.c.b16 %v1599, %v1591
    %v2072 = vpack.c.b16 %v1600, %v1592
    %v2073 = vpack.c.b16 %v1601, %v1593
    %v2074 = vpack.c.b16 %v1602, %v1594
    %v2075 = vpack.c.b16 %v1603, %v1595
    %v2076 = vpack.c.b16 %v1604, %v1596
    %v2077 = vpack.c.b16 %v1605, %v1597
    %v2078 = vpack.c.b16 %v1606, %v1598
    %v2079 = vpack.c.b16 %v1615, %v1607
    %v2080 = vpack.c.b16 %v1616, %v1608
    %v2081 = vpack.c.b16 %v1617, %v1609
    %v2082 = vpack.c.b16 %v1618, %v1610
    %v2083 = vpack.c.b16 %v1619, %v1611
    %v2084 = vpack.c.b16 %v1620, %v1612
    %v2085 = vpack.c.b16 %v1621, %v1613
    %v2086 = vpack.c.b16 %v1622, %v1614
    %v2087 = vpack.c.b16 %v1631, %v1623
    %v2088 = vpack.c.b16 %v1632, %v1624
    %v2089 = vpack.c.b16 %v1633, %v1625
    %v2090 = vpack.c.b16 %v1634, %v1626
    %v2091 = vpack.c.b16 %v1635, %v1627
    %v2092 = vpack.c.b16 %v1636, %v1628
    %v2093 = vpack.c.b16 %v1637, %v1629
    %v2094 = vpack.c.b16 %v1638, %v1630
    %v2095 = vpack.c.b16 %v1647, %v1639
    %v2096 = vpack.c.b16 %v1648, %v1640
    %v2097 = vpack.c.b16 %v1649, %v1641
    %v2098 = vpack.c.b16 %v1650, %v1642
    %v2099 = vpack.c.b16 %v1651, %v1643
    %v2100 = vpack.c.b16 %v1652, %v1644
    %v2101 = vpack.c.b16 %v1653, %v1645
    %v2102 = vpack.c.b16 %v1654, %v1646
    %v2103 = vpack.c.b16 %v1663, %v1655
    %v2104 = vpack.c.b16 %v1664, %v1656
    %v2105 = vpack.c.b16 %v1665, %v1657
    %v2106 = vpack.c.b16 %v1666, %v1658
    %v2107 = vpack.c.b16 %v1667, %v1659
    %v2108 = vpack.c.b16 %v1668, %v1660
    %v2109 = vpack.c.b16 %v1669, %v1661
    %v2110 = vpack.c.b16 %v1670, %v1662
    %v2111 = vpack.c.b16 %v1679, %v1671
    %v2112 = vpack.c.b16 %v1680, %v1672
    %v2113 = vpack.c.b16 %v1681, %v1673
    %v2114 = vpack.c.b16 %v1682, %v1674
    %v2115 = vpack.c.b16 %v1683, %v1675
    %v2116 = vpack.c.b16 %v1684, %v1676
    %v2117 = vpack.c.b16 %v1685, %v1677
    %v2118 = vpack.c.b16 %v1686, %v1678
    %v2119 = vpack.c.b16 %v1695, %v1687
    %v2120 = vpack.c.b16 %v1696, %v1688
    %v2121 = vpack.c.b16 %v1697, %v1689
    %v2122 = vpack.c.b16 %v1698, %v1690
    %v2123 = vpack.c.b16 %v1699, %v1691
    %v2124 = vpack.c.b16 %v1700, %v1692
    %v2125 = vpack.c.b16 %v1701, %v1693
    %v2126 = vpack.c.b16 %v1702, %v1694
    %v2127 = vpack.c.b16 %v1711, %v1703
    %v2128 = vpack.c.b16 %v1712, %v1704
    %v2129 = vpack.c.b16 %v1713, %v1705
    %v2130 = vpack.c.b16 %v1714, %v1706
    %v2131 = vpack.c.b16 %v1715, %v1707
    %v2132 = vpack.c.b16 %v1716, %v1708
    %v2133 = vpack.c.b16 %v1717, %v1709
    %v2134 = vpack.c.b16 %v1718, %v1710
    %v2135 = vpack.c.b16 %v1727, %v1719
    %v2136 = vpack.c.b16 %v1728, %v1720
    %v2137 = vpack.c.b16 %v1729, %v1721
    %v2138 = vpack.c.b16 %v1730, %v1722
    %v2139 = vpack.c.b16 %v1731, %v1723
    %v2140 = vpack.c.b16 %v1732, %v1724
    %v2141 = vpack.c.b16 %v1733, %v1725
    %v2142 = vpack.c.b16 %v1734, %v1726
    %v2143 = vpack.c.b16 %v1743, %v1735
    %v2144 = vpack.c.b16 %v1744, %v1736
    %v2145 = vpack.c.b16 %v1745, %v1737
    %v2146 = vpack.c.b16 %v1746, %v1738
    %v2147 = vpack.c.b16 %v1747, %v1739
    %v2148 = vpack.c.b16 %v1748, %v1740
    %v2149 = vpack.c.b16 %v1749, %v1741
    %v2150 = vpack.c.b16 %v1750, %v1742
    %v2151 = vpack.c.b16 %v1759, %v1751
    %v2152 = vpack.c.b16 %v1760, %v1752
    %v2153 = vpack.c.b16 %v1761, %v1753
    %v2154 = vpack.c.b16 %v1762, %v1754
    %v2155 = vpack.c.b16 %v1763, %v1755
    %v2156 = vpack.c.b16 %v1764, %v1756
    %v2157 = vpack.c.b16 %v1765, %v1757
    %v2158 = vpack.c.b16 %v1766, %v1758
    %vm2551 = vcmask 130048
    %v2553 = vsel %vm2551, %v156, 0
    %2555 = vmatprep.subr.bf16.mxu0 %v1824
    %2556 = vmatpush1.bf16.msra.mxu0 %v1823
    %2557 = vmatprep.subr.bf16.mxu0 %v1816
    %2558 = vmatpush1.bf16.msra.mxu0 %v1815
    %2559 = vmatprep.subr.bf16.mxu0 %v1808
    %2560 = vmatpush1.bf16.msra.mxu0 %v1807
    %2561 = vmatprep.subr.bf16.mxu0 %v1800
    %2562 = vmatpush1.bf16.msra.mxu0 %v1799
    %2563 = vmatprep.subr.bf16.mxu0 %v1792
    %2564 = vmatpush1.bf16.msra.mxu0 %v1791
    %2565 = vmatprep.subr.bf16.mxu0 %v1784
    %2566 = vmatpush1.bf16.msra.mxu0 %v1783
    %2567 = vmatprep.subr.bf16.mxu0 %v1776
    %2568 = vmatpush1.bf16.msra.mxu0 %v1775
    %2569 = vmatprep.subr.bf16.mxu0 %v1768
    %2570 = vmatpush1.bf16.msra.mxu0 %v1767
    %2571 = vmatprep.subr.bf16.mxu0 %v1888
    %2572 = vmatpush2.bf16.msra.mxu0 %v1887
    %2573 = vmatprep.subr.bf16.mxu0 %v1880
    %2574 = vmatpush2.bf16.msra.mxu0 %v1879
    %2575 = vmatprep.subr.bf16.mxu0 %v1872
    %2576 = vmatpush2.bf16.msra.mxu0 %v1871
    %2577 = vmatprep.subr.bf16.mxu0 %v1864
    %2578 = vmatpush2.bf16.msra.mxu0 %v1863
    %2579 = vmatprep.subr.bf16.mxu0 %v1856
    %2580 = vmatpush2.bf16.msra.mxu0 %v1855
    %2581 = vmatprep.subr.bf16.mxu0 %v1848
    %2582 = vmatpush2.bf16.msra.mxu0 %v1847
    %2583 = vmatprep.subr.bf16.mxu0 %v1840
    %2584 = vmatpush2.bf16.msra.mxu0 %v1839
    %2585 = vmatprep.subr.bf16.mxu0 %v1832
    %2586 = vmatpush2.bf16.msra.mxu0 %v1831
    %2587 = vmatprep.mubr.bf16.mxu0 %v151
    %2588 = vmatmul.mubr.bf16.gmra.mxu0 %v150
    %v2589 = vpop.f32.mrf.mxu0
    %v2590 = vadd.f32 %v554, %v2589
    %v2591 = vpop.f32.mrf.mxu0
    %v2592 = vadd.f32 %v558, %v2591
    %v2593 = vpop.f32.mrf.mxu0
    %v2594 = vpop.f32.mrf.mxu0
    %2595 = vdwg.mxu0
    %2596 = vmatprep.subr.bf16.mxu0 %v1952
    %2597 = vmatpush1.bf16.msra.mxu0 %v1951
    %2598 = vmatprep.subr.bf16.mxu0 %v1944
    %2599 = vmatpush1.bf16.msra.mxu0 %v1943
    %2600 = vmatprep.subr.bf16.mxu0 %v1936
    %2601 = vmatpush1.bf16.msra.mxu0 %v1935
    %2602 = vmatprep.subr.bf16.mxu0 %v1928
    %2603 = vmatpush1.bf16.msra.mxu0 %v1927
    %2604 = vmatprep.subr.bf16.mxu0 %v1920
    %2605 = vmatpush1.bf16.msra.mxu0 %v1919
    %2606 = vmatprep.subr.bf16.mxu0 %v1912
    %2607 = vmatpush1.bf16.msra.mxu0 %v1911
    %2608 = vmatprep.subr.bf16.mxu0 %v1904
    %2609 = vmatpush1.bf16.msra.mxu0 %v1903
    %2610 = vmatprep.subr.bf16.mxu0 %v1896
    %2611 = vmatpush1.bf16.msra.mxu0 %v1895
    %2612 = vmatprep.subr.bf16.mxu0 %v2016
    %2613 = vmatpush2.bf16.msra.mxu0 %v2015
    %2614 = vmatprep.subr.bf16.mxu0 %v2008
    %2615 = vmatpush2.bf16.msra.mxu0 %v2007
    %2616 = vmatprep.subr.bf16.mxu0 %v2000
    %2617 = vmatpush2.bf16.msra.mxu0 %v1999
    %2618 = vmatprep.subr.bf16.mxu0 %v1992
    %2619 = vmatpush2.bf16.msra.mxu0 %v1991
    %2620 = vmatprep.subr.bf16.mxu0 %v1984
    %2621 = vmatpush2.bf16.msra.mxu0 %v1983
    %2622 = vmatprep.subr.bf16.mxu0 %v1976
    %2623 = vmatpush2.bf16.msra.mxu0 %v1975
    %2624 = vmatprep.subr.bf16.mxu0 %v1968
    %2625 = vmatpush2.bf16.msra.mxu0 %v1967
    %2626 = vmatprep.subr.bf16.mxu0 %v1960
    %2627 = vmatpush2.bf16.msra.mxu0 %v1959
    %2628 = vmatprep.mubr.bf16.mxu0 %v153
    %2629 = vmatmul.mubr.bf16.gmra.mxu0 %v152
    %v2630 = vpop.f32.mrf.mxu0
    %v2631 = vadd.f32 %v2590, %v2630
    %v2632 = vpop.f32.mrf.mxu0
    %v2633 = vadd.f32 %v2592, %v2632
    %v2634 = vpop.f32.mrf.mxu0
    %v2635 = vpop.f32.mrf.mxu0
    %2636 = vdwg.mxu0
    %2637 = vmatprep.subr.bf16.mxu0 %v2080
    %2638 = vmatpush1.bf16.msra.mxu0 %v2079
    %2639 = vmatprep.subr.bf16.mxu0 %v2072
    %2640 = vmatpush1.bf16.msra.mxu0 %v2071
    %2641 = vmatprep.subr.bf16.mxu0 %v2064
    %2642 = vmatpush1.bf16.msra.mxu0 %v2063
    %2643 = vmatprep.subr.bf16.mxu0 %v2056
    %2644 = vmatpush1.bf16.msra.mxu0 %v2055
    %2645 = vmatprep.subr.bf16.mxu0 %v2048
    %2646 = vmatpush1.bf16.msra.mxu0 %v2047
    %2647 = vmatprep.subr.bf16.mxu0 %v2040
    %2648 = vmatpush1.bf16.msra.mxu0 %v2039
    %2649 = vmatprep.subr.bf16.mxu0 %v2032
    %2650 = vmatpush1.bf16.msra.mxu0 %v2031
    %2651 = vmatprep.subr.bf16.mxu0 %v2024
    %2652 = vmatpush1.bf16.msra.mxu0 %v2023
    %2653 = vmatprep.subr.bf16.mxu0 %v2144
    %2654 = vmatpush2.bf16.msra.mxu0 %v2143
    %2655 = vmatprep.subr.bf16.mxu0 %v2136
    %2656 = vmatpush2.bf16.msra.mxu0 %v2135
    %2657 = vmatprep.subr.bf16.mxu0 %v2128
    %2658 = vmatpush2.bf16.msra.mxu0 %v2127
    %2659 = vmatprep.subr.bf16.mxu0 %v2120
    %2660 = vmatpush2.bf16.msra.mxu0 %v2119
    %2661 = vmatprep.subr.bf16.mxu0 %v2112
    %2662 = vmatpush2.bf16.msra.mxu0 %v2111
    %2663 = vmatprep.subr.bf16.mxu0 %v2104
    %2664 = vmatpush2.bf16.msra.mxu0 %v2103
    %2665 = vmatprep.subr.bf16.mxu0 %v2096
    %2666 = vmatpush2.bf16.msra.mxu0 %v2095
    %2667 = vmatprep.subr.bf16.mxu0 %v2088
    %2668 = vmatpush2.bf16.msra.mxu0 %v2087
    %2669 = vmatprep.mubr.bf16.mxu0 %v155
    %2670 = vmatmul.mubr.bf16.gmra.mxu0 %v154
    %v2671 = vpop.f32.mrf.mxu0
    %v2672 = vadd.f32 %v2631, %v2671
    %v2673 = vpop.f32.mrf.mxu0
    %v2674 = vadd.f32 %v2633, %v2673
    %v2675 = vpop.f32.mrf.mxu0
    %v2676 = vpop.f32.mrf.mxu0
    %2677 = vdwg.mxu0
    %2678 = vmatprep.subr.bf16.mxu0 0
    %2679 = vmatpush1.bf16.msra.mxu0 0
    %2680 = vmatprep.subr.bf16.mxu0 0
    %2681 = vmatpush1.bf16.msra.mxu0 0
    %2682 = vmatprep.subr.bf16.mxu0 0
    %2683 = vmatpush1.bf16.msra.mxu0 0
    %2684 = vmatprep.subr.bf16.mxu0 0
    %2685 = vmatpush1.bf16.msra.mxu0 0
    %2686 = vmatprep.subr.bf16.mxu0 0
    %2687 = vmatpush1.bf16.msra.mxu0 0
    %2688 = vmatprep.subr.bf16.mxu0 0
    %2689 = vmatpush1.bf16.msra.mxu0 0
    %2690 = vmatprep.subr.bf16.mxu0 0
    %2691 = vmatpush1.bf16.msra.mxu0 0
    %2692 = vmatprep.subr.bf16.mxu0 %v2152
    %2693 = vmatpush1.bf16.msra.mxu0 %v2151
    %2694 = vmatprep.subr.bf16.mxu0 0
    %2695 = vmatpush2.bf16.msra.mxu0 0
    %2696 = vmatprep.subr.bf16.mxu0 0
    %2697 = vmatpush2.bf16.msra.mxu0 0
    %2698 = vmatprep.subr.bf16.mxu0 0
    %2699 = vmatpush2.bf16.msra.mxu0 0
    %2700 = vmatprep.subr.bf16.mxu0 0
    %2701 = vmatpush2.bf16.msra.mxu0 0
    %2702 = vmatprep.subr.bf16.mxu0 0
    %2703 = vmatpush2.bf16.msra.mxu0 0
    %2704 = vmatprep.subr.bf16.mxu0 0
    %2705 = vmatpush2.bf16.msra.mxu0 0
    %2706 = vmatprep.subr.bf16.mxu0 0
    %2707 = vmatpush2.bf16.msra.mxu0 0
    %2708 = vmatprep.subr.bf16.mxu0 0
    %2709 = vmatpush2.bf16.msra.mxu0 0
    %2710 = vmatprep.mubr.bf16.mxu0 0
    %2711 = vmatmul.mubr.bf16.gmra.mxu0 %v2553
    %v2712 = vpop.f32.mrf.mxu0
    %v2713 = vadd.f32 %v2672, %v2712
    %v2714 = vpop.f32.mrf.mxu0
    %v2715 = vadd.f32 %v2674, %v2714
    %v2716 = vpop.f32.mrf.mxu0
    %v2717 = vpop.f32.mrf.mxu0
    %2718 = vdwg.mxu0
    %2719 = vmatprep.subr.bf16.mxu0 %v1826
    %2720 = vmatpush1.bf16.msra.mxu0 %v1825
    %2721 = vmatprep.subr.bf16.mxu0 %v1818
    %2722 = vmatpush1.bf16.msra.mxu0 %v1817
    %2723 = vmatprep.subr.bf16.mxu0 %v1810
    %2724 = vmatpush1.bf16.msra.mxu0 %v1809
    %2725 = vmatprep.subr.bf16.mxu0 %v1802
    %2726 = vmatpush1.bf16.msra.mxu0 %v1801
    %2727 = vmatprep.subr.bf16.mxu0 %v1794
    %2728 = vmatpush1.bf16.msra.mxu0 %v1793
    %2729 = vmatprep.subr.bf16.mxu0 %v1786
    %2730 = vmatpush1.bf16.msra.mxu0 %v1785
    %2731 = vmatprep.subr.bf16.mxu0 %v1778
    %2732 = vmatpush1.bf16.msra.mxu0 %v1777
    %2733 = vmatprep.subr.bf16.mxu0 %v1770
    %2734 = vmatpush1.bf16.msra.mxu0 %v1769
    %2735 = vmatprep.subr.bf16.mxu0 %v1890
    %2736 = vmatpush2.bf16.msra.mxu0 %v1889
    %2737 = vmatprep.subr.bf16.mxu0 %v1882
    %2738 = vmatpush2.bf16.msra.mxu0 %v1881
    %2739 = vmatprep.subr.bf16.mxu0 %v1874
    %2740 = vmatpush2.bf16.msra.mxu0 %v1873
    %2741 = vmatprep.subr.bf16.mxu0 %v1866
    %2742 = vmatpush2.bf16.msra.mxu0 %v1865
    %2743 = vmatprep.subr.bf16.mxu0 %v1858
    %2744 = vmatpush2.bf16.msra.mxu0 %v1857
    %2745 = vmatprep.subr.bf16.mxu0 %v1850
    %2746 = vmatpush2.bf16.msra.mxu0 %v1849
    %2747 = vmatprep.subr.bf16.mxu0 %v1842
    %2748 = vmatpush2.bf16.msra.mxu0 %v1841
    %2749 = vmatprep.subr.bf16.mxu0 %v1834
    %2750 = vmatpush2.bf16.msra.mxu0 %v1833
    %2751 = vmatprep.mubr.bf16.mxu0 %v151
    %2752 = vmatmul.mubr.bf16.gmra.mxu0 %v150
    %v2753 = vpop.f32.mrf.mxu0
    %v2754 = vadd.f32 %v562, %v2753
    %v2755 = vpop.f32.mrf.mxu0
    %v2756 = vadd.f32 %v566, %v2755
    %v2757 = vpop.f32.mrf.mxu0
    %v2758 = vpop.f32.mrf.mxu0
    %2759 = vdwg.mxu0
    %2760 = vmatprep.subr.bf16.mxu0 %v1954
    %2761 = vmatpush1.bf16.msra.mxu0 %v1953
    %2762 = vmatprep.subr.bf16.mxu0 %v1946
    %2763 = vmatpush1.bf16.msra.mxu0 %v1945
    %2764 = vmatprep.subr.bf16.mxu0 %v1938
    %2765 = vmatpush1.bf16.msra.mxu0 %v1937
    %2766 = vmatprep.subr.bf16.mxu0 %v1930
    %2767 = vmatpush1.bf16.msra.mxu0 %v1929
    %2768 = vmatprep.subr.bf16.mxu0 %v1922
    %2769 = vmatpush1.bf16.msra.mxu0 %v1921
    %2770 = vmatprep.subr.bf16.mxu0 %v1914
    %2771 = vmatpush1.bf16.msra.mxu0 %v1913
    %2772 = vmatprep.subr.bf16.mxu0 %v1906
    %2773 = vmatpush1.bf16.msra.mxu0 %v1905
    %2774 = vmatprep.subr.bf16.mxu0 %v1898
    %2775 = vmatpush1.bf16.msra.mxu0 %v1897
    %2776 = vmatprep.subr.bf16.mxu0 %v2018
    %2777 = vmatpush2.bf16.msra.mxu0 %v2017
    %2778 = vmatprep.subr.bf16.mxu0 %v2010
    %2779 = vmatpush2.bf16.msra.mxu0 %v2009
    %2780 = vmatprep.subr.bf16.mxu0 %v2002
    %2781 = vmatpush2.bf16.msra.mxu0 %v2001
    %2782 = vmatprep.subr.bf16.mxu0 %v1994
    %2783 = vmatpush2.bf16.msra.mxu0 %v1993
    %2784 = vmatprep.subr.bf16.mxu0 %v1986
    %2785 = vmatpush2.bf16.msra.mxu0 %v1985
    %2786 = vmatprep.subr.bf16.mxu0 %v1978
    %2787 = vmatpush2.bf16.msra.mxu0 %v1977
    %2788 = vmatprep.subr.bf16.mxu0 %v1970
    %2789 = vmatpush2.bf16.msra.mxu0 %v1969
    %2790 = vmatprep.subr.bf16.mxu0 %v1962
    %2791 = vmatpush2.bf16.msra.mxu0 %v1961
    %2792 = vmatprep.mubr.bf16.mxu0 %v153
    %2793 = vmatmul.mubr.bf16.gmra.mxu0 %v152
    %v2794 = vpop.f32.mrf.mxu0
    %v2795 = vadd.f32 %v2754, %v2794
    %v2796 = vpop.f32.mrf.mxu0
    %v2797 = vadd.f32 %v2756, %v2796
    %v2798 = vpop.f32.mrf.mxu0
    %v2799 = vpop.f32.mrf.mxu0
    %2800 = vdwg.mxu0
    %2801 = vmatprep.subr.bf16.mxu0 %v2082
    %2802 = vmatpush1.bf16.msra.mxu0 %v2081
    %2803 = vmatprep.subr.bf16.mxu0 %v2074
    %2804 = vmatpush1.bf16.msra.mxu0 %v2073
    %2805 = vmatprep.subr.bf16.mxu0 %v2066
    %2806 = vmatpush1.bf16.msra.mxu0 %v2065
    %2807 = vmatprep.subr.bf16.mxu0 %v2058
    %2808 = vmatpush1.bf16.msra.mxu0 %v2057
    %2809 = vmatprep.subr.bf16.mxu0 %v2050
    %2810 = vmatpush1.bf16.msra.mxu0 %v2049
    %2811 = vmatprep.subr.bf16.mxu0 %v2042
    %2812 = vmatpush1.bf16.msra.mxu0 %v2041
    %2813 = vmatprep.subr.bf16.mxu0 %v2034
    %2814 = vmatpush1.bf16.msra.mxu0 %v2033
    %2815 = vmatprep.subr.bf16.mxu0 %v2026
    %2816 = vmatpush1.bf16.msra.mxu0 %v2025
    %2817 = vmatprep.subr.bf16.mxu0 %v2146
    %2818 = vmatpush2.bf16.msra.mxu0 %v2145
    %2819 = vmatprep.subr.bf16.mxu0 %v2138
    %2820 = vmatpush2.bf16.msra.mxu0 %v2137
    %2821 = vmatprep.subr.bf16.mxu0 %v2130
    %2822 = vmatpush2.bf16.msra.mxu0 %v2129
    %2823 = vmatprep.subr.bf16.mxu0 %v2122
    %2824 = vmatpush2.bf16.msra.mxu0 %v2121
    %2825 = vmatprep.subr.bf16.mxu0 %v2114
    %2826 = vmatpush2.bf16.msra.mxu0 %v2113
    %2827 = vmatprep.subr.bf16.mxu0 %v2106
    %2828 = vmatpush2.bf16.msra.mxu0 %v2105
    %2829 = vmatprep.subr.bf16.mxu0 %v2098
    %2830 = vmatpush2.bf16.msra.mxu0 %v2097
    %2831 = vmatprep.subr.bf16.mxu0 %v2090
    %2832 = vmatpush2.bf16.msra.mxu0 %v2089
    %2833 = vmatprep.mubr.bf16.mxu0 %v155
    %2834 = vmatmul.mubr.bf16.gmra.mxu0 %v154
    %v2835 = vpop.f32.mrf.mxu0
    %v2836 = vadd.f32 %v2795, %v2835
    %v2837 = vpop.f32.mrf.mxu0
    %v2838 = vadd.f32 %v2797, %v2837
    %v2839 = vpop.f32.mrf.mxu0
    %v2840 = vpop.f32.mrf.mxu0
    %2841 = vdwg.mxu0
    %2842 = vmatprep.subr.bf16.mxu0 0
    %2843 = vmatpush1.bf16.msra.mxu0 0
    %2844 = vmatprep.subr.bf16.mxu0 0
    %2845 = vmatpush1.bf16.msra.mxu0 0
    %2846 = vmatprep.subr.bf16.mxu0 0
    %2847 = vmatpush1.bf16.msra.mxu0 0
    %2848 = vmatprep.subr.bf16.mxu0 0
    %2849 = vmatpush1.bf16.msra.mxu0 0
    %2850 = vmatprep.subr.bf16.mxu0 0
    %2851 = vmatpush1.bf16.msra.mxu0 0
    %2852 = vmatprep.subr.bf16.mxu0 0
    %2853 = vmatpush1.bf16.msra.mxu0 0
    %2854 = vmatprep.subr.bf16.mxu0 0
    %2855 = vmatpush1.bf16.msra.mxu0 0
    %2856 = vmatprep.subr.bf16.mxu0 %v2154
    %2857 = vmatpush1.bf16.msra.mxu0 %v2153
    %2858 = vmatprep.subr.bf16.mxu0 0
    %2859 = vmatpush2.bf16.msra.mxu0 0
    %2860 = vmatprep.subr.bf16.mxu0 0
    %2861 = vmatpush2.bf16.msra.mxu0 0
    %2862 = vmatprep.subr.bf16.mxu0 0
    %2863 = vmatpush2.bf16.msra.mxu0 0
    %2864 = vmatprep.subr.bf16.mxu0 0
    %2865 = vmatpush2.bf16.msra.mxu0 0
    %2866 = vmatprep.subr.bf16.mxu0 0
    %2867 = vmatpush2.bf16.msra.mxu0 0
    %2868 = vmatprep.subr.bf16.mxu0 0
    %2869 = vmatpush2.bf16.msra.mxu0 0
    %2870 = vmatprep.subr.bf16.mxu0 0
    %2871 = vmatpush2.bf16.msra.mxu0 0
    %2872 = vmatprep.subr.bf16.mxu0 0
    %2873 = vmatpush2.bf16.msra.mxu0 0
    %2874 = vmatprep.mubr.bf16.mxu0 0
    %2875 = vmatmul.mubr.bf16.gmra.mxu0 %v2553
    %v2876 = vpop.f32.mrf.mxu0
    %v2877 = vadd.f32 %v2836, %v2876
    %v2878 = vpop.f32.mrf.mxu0
    %v2879 = vadd.f32 %v2838, %v2878
    %v2880 = vpop.f32.mrf.mxu0
    %v2881 = vpop.f32.mrf.mxu0
    %2882 = vdwg.mxu0
    %2883 = vmatprep.subr.bf16.mxu0 %v1828
    %2884 = vmatpush1.bf16.msra.mxu0 %v1827
    %2885 = vmatprep.subr.bf16.mxu0 %v1820
    %2886 = vmatpush1.bf16.msra.mxu0 %v1819
    %2887 = vmatprep.subr.bf16.mxu0 %v1812
    %2888 = vmatpush1.bf16.msra.mxu0 %v1811
    %2889 = vmatprep.subr.bf16.mxu0 %v1804
    %2890 = vmatpush1.bf16.msra.mxu0 %v1803
    %2891 = vmatprep.subr.bf16.mxu0 %v1796
    %2892 = vmatpush1.bf16.msra.mxu0 %v1795
    %2893 = vmatprep.subr.bf16.mxu0 %v1788
    %2894 = vmatpush1.bf16.msra.mxu0 %v1787
    %2895 = vmatprep.subr.bf16.mxu0 %v1780
    %2896 = vmatpush1.bf16.msra.mxu0 %v1779
    %2897 = vmatprep.subr.bf16.mxu0 %v1772
    %2898 = vmatpush1.bf16.msra.mxu0 %v1771
    %2899 = vmatprep.subr.bf16.mxu0 %v1892
    %2900 = vmatpush2.bf16.msra.mxu0 %v1891
    %2901 = vmatprep.subr.bf16.mxu0 %v1884
    %2902 = vmatpush2.bf16.msra.mxu0 %v1883
    %2903 = vmatprep.subr.bf16.mxu0 %v1876
    %2904 = vmatpush2.bf16.msra.mxu0 %v1875
    %2905 = vmatprep.subr.bf16.mxu0 %v1868
    %2906 = vmatpush2.bf16.msra.mxu0 %v1867
    %2907 = vmatprep.subr.bf16.mxu0 %v1860
    %2908 = vmatpush2.bf16.msra.mxu0 %v1859
    %2909 = vmatprep.subr.bf16.mxu0 %v1852
    %2910 = vmatpush2.bf16.msra.mxu0 %v1851
    %2911 = vmatprep.subr.bf16.mxu0 %v1844
    %2912 = vmatpush2.bf16.msra.mxu0 %v1843
    %2913 = vmatprep.subr.bf16.mxu0 %v1836
    %2914 = vmatpush2.bf16.msra.mxu0 %v1835
    %2915 = vmatprep.mubr.bf16.mxu0 %v151
    %2916 = vmatmul.mubr.bf16.gmra.mxu0 %v150
    %v2917 = vpop.f32.mrf.mxu0
    %v2918 = vadd.f32 %v570, %v2917
    %v2919 = vpop.f32.mrf.mxu0
    %v2920 = vadd.f32 %v574, %v2919
    %v2921 = vpop.f32.mrf.mxu0
    %v2922 = vpop.f32.mrf.mxu0
    %2923 = vdwg.mxu0
    %2924 = vmatprep.subr.bf16.mxu0 %v1956
    %2925 = vmatpush1.bf16.msra.mxu0 %v1955
    %2926 = vmatprep.subr.bf16.mxu0 %v1948
    %2927 = vmatpush1.bf16.msra.mxu0 %v1947
    %2928 = vmatprep.subr.bf16.mxu0 %v1940
    %2929 = vmatpush1.bf16.msra.mxu0 %v1939
    %2930 = vmatprep.subr.bf16.mxu0 %v1932
    %2931 = vmatpush1.bf16.msra.mxu0 %v1931
    %2932 = vmatprep.subr.bf16.mxu0 %v1924
    %2933 = vmatpush1.bf16.msra.mxu0 %v1923
    %2934 = vmatprep.subr.bf16.mxu0 %v1916
    %2935 = vmatpush1.bf16.msra.mxu0 %v1915
    %2936 = vmatprep.subr.bf16.mxu0 %v1908
    %2937 = vmatpush1.bf16.msra.mxu0 %v1907
    %2938 = vmatprep.subr.bf16.mxu0 %v1900
    %2939 = vmatpush1.bf16.msra.mxu0 %v1899
    %2940 = vmatprep.subr.bf16.mxu0 %v2020
    %2941 = vmatpush2.bf16.msra.mxu0 %v2019
    %2942 = vmatprep.subr.bf16.mxu0 %v2012
    %2943 = vmatpush2.bf16.msra.mxu0 %v2011
    %2944 = vmatprep.subr.bf16.mxu0 %v2004
    %2945 = vmatpush2.bf16.msra.mxu0 %v2003
    %2946 = vmatprep.subr.bf16.mxu0 %v1996
    %2947 = vmatpush2.bf16.msra.mxu0 %v1995
    %2948 = vmatprep.subr.bf16.mxu0 %v1988
    %2949 = vmatpush2.bf16.msra.mxu0 %v1987
    %2950 = vmatprep.subr.bf16.mxu0 %v1980
    %2951 = vmatpush2.bf16.msra.mxu0 %v1979
    %2952 = vmatprep.subr.bf16.mxu0 %v1972
    %2953 = vmatpush2.bf16.msra.mxu0 %v1971
    %2954 = vmatprep.subr.bf16.mxu0 %v1964
    %2955 = vmatpush2.bf16.msra.mxu0 %v1963
    %2956 = vmatprep.mubr.bf16.mxu0 %v153
    %2957 = vmatmul.mubr.bf16.gmra.mxu0 %v152
    %v2958 = vpop.f32.mrf.mxu0
    %v2959 = vadd.f32 %v2918, %v2958
    %v2960 = vpop.f32.mrf.mxu0
    %v2961 = vadd.f32 %v2920, %v2960
    %v2962 = vpop.f32.mrf.mxu0
    %v2963 = vpop.f32.mrf.mxu0
    %2964 = vdwg.mxu0
    %2965 = vmatprep.subr.bf16.mxu0 %v2084
    %2966 = vmatpush1.bf16.msra.mxu0 %v2083
    %2967 = vmatprep.subr.bf16.mxu0 %v2076
    %2968 = vmatpush1.bf16.msra.mxu0 %v2075
    %2969 = vmatprep.subr.bf16.mxu0 %v2068
    %2970 = vmatpush1.bf16.msra.mxu0 %v2067
    %2971 = vmatprep.subr.bf16.mxu0 %v2060
    %2972 = vmatpush1.bf16.msra.mxu0 %v2059
    %2973 = vmatprep.subr.bf16.mxu0 %v2052
    %2974 = vmatpush1.bf16.msra.mxu0 %v2051
    %2975 = vmatprep.subr.bf16.mxu0 %v2044
    %2976 = vmatpush1.bf16.msra.mxu0 %v2043
    %2977 = vmatprep.subr.bf16.mxu0 %v2036
    %2978 = vmatpush1.bf16.msra.mxu0 %v2035
    %2979 = vmatprep.subr.bf16.mxu0 %v2028
    %2980 = vmatpush1.bf16.msra.mxu0 %v2027
    %2981 = vmatprep.subr.bf16.mxu0 %v2148
    %2982 = vmatpush2.bf16.msra.mxu0 %v2147
    %2983 = vmatprep.subr.bf16.mxu0 %v2140
    %2984 = vmatpush2.bf16.msra.mxu0 %v2139
    %2985 = vmatprep.subr.bf16.mxu0 %v2132
    %2986 = vmatpush2.bf16.msra.mxu0 %v2131
    %2987 = vmatprep.subr.bf16.mxu0 %v2124
    %2988 = vmatpush2.bf16.msra.mxu0 %v2123
    %2989 = vmatprep.subr.bf16.mxu0 %v2116
    %2990 = vmatpush2.bf16.msra.mxu0 %v2115
    %2991 = vmatprep.subr.bf16.mxu0 %v2108
    %2992 = vmatpush2.bf16.msra.mxu0 %v2107
    %2993 = vmatprep.subr.bf16.mxu0 %v2100
    %2994 = vmatpush2.bf16.msra.mxu0 %v2099
    %2995 = vmatprep.subr.bf16.mxu0 %v2092
    %2996 = vmatpush2.bf16.msra.mxu0 %v2091
    %2997 = vmatprep.mubr.bf16.mxu0 %v155
    %2998 = vmatmul.mubr.bf16.gmra.mxu0 %v154
    %v2999 = vpop.f32.mrf.mxu0
    %v3000 = vadd.f32 %v2959, %v2999
    %v3001 = vpop.f32.mrf.mxu0
    %v3002 = vadd.f32 %v2961, %v3001
    %v3003 = vpop.f32.mrf.mxu0
    %v3004 = vpop.f32.mrf.mxu0
    %3005 = vdwg.mxu0
    %3006 = vmatprep.subr.bf16.mxu0 0
    %3007 = vmatpush1.bf16.msra.mxu0 0
    %3008 = vmatprep.subr.bf16.mxu0 0
    %3009 = vmatpush1.bf16.msra.mxu0 0
    %3010 = vmatprep.subr.bf16.mxu0 0
    %3011 = vmatpush1.bf16.msra.mxu0 0
    %3012 = vmatprep.subr.bf16.mxu0 0
    %3013 = vmatpush1.bf16.msra.mxu0 0
    %3014 = vmatprep.subr.bf16.mxu0 0
    %3015 = vmatpush1.bf16.msra.mxu0 0
    %3016 = vmatprep.subr.bf16.mxu0 0
    %3017 = vmatpush1.bf16.msra.mxu0 0
    %3018 = vmatprep.subr.bf16.mxu0 0
    %3019 = vmatpush1.bf16.msra.mxu0 0
    %3020 = vmatprep.subr.bf16.mxu0 %v2156
    %3021 = vmatpush1.bf16.msra.mxu0 %v2155
    %3022 = vmatprep.subr.bf16.mxu0 0
    %3023 = vmatpush2.bf16.msra.mxu0 0
    %3024 = vmatprep.subr.bf16.mxu0 0
    %3025 = vmatpush2.bf16.msra.mxu0 0
    %3026 = vmatprep.subr.bf16.mxu0 0
    %3027 = vmatpush2.bf16.msra.mxu0 0
    %3028 = vmatprep.subr.bf16.mxu0 0
    %3029 = vmatpush2.bf16.msra.mxu0 0
    %3030 = vmatprep.subr.bf16.mxu0 0
    %3031 = vmatpush2.bf16.msra.mxu0 0
    %3032 = vmatprep.subr.bf16.mxu0 0
    %3033 = vmatpush2.bf16.msra.mxu0 0
    %3034 = vmatprep.subr.bf16.mxu0 0
    %3035 = vmatpush2.bf16.msra.mxu0 0
    %3036 = vmatprep.subr.bf16.mxu0 0
    %3037 = vmatpush2.bf16.msra.mxu0 0
    %3038 = vmatprep.mubr.bf16.mxu0 0
    %3039 = vmatmul.mubr.bf16.gmra.mxu0 %v2553
    %v3040 = vpop.f32.mrf.mxu0
    %v3041 = vadd.f32 %v3000, %v3040
    %v3042 = vpop.f32.mrf.mxu0
    %v3043 = vadd.f32 %v3002, %v3042
    %v3044 = vpop.f32.mrf.mxu0
    %v3045 = vpop.f32.mrf.mxu0
    %3046 = vdwg.mxu0
    %3047 = vmatprep.subr.bf16.mxu0 %v1830
    %3048 = vmatpush1.bf16.msra.mxu0 %v1829
    %3049 = vmatprep.subr.bf16.mxu0 %v1822
    %3050 = vmatpush1.bf16.msra.mxu0 %v1821
    %3051 = vmatprep.subr.bf16.mxu0 %v1814
    %3052 = vmatpush1.bf16.msra.mxu0 %v1813
    %3053 = vmatprep.subr.bf16.mxu0 %v1806
    %3054 = vmatpush1.bf16.msra.mxu0 %v1805
    %3055 = vmatprep.subr.bf16.mxu0 %v1798
    %3056 = vmatpush1.bf16.msra.mxu0 %v1797
    %3057 = vmatprep.subr.bf16.mxu0 %v1790
    %3058 = vmatpush1.bf16.msra.mxu0 %v1789
    %3059 = vmatprep.subr.bf16.mxu0 %v1782
    %3060 = vmatpush1.bf16.msra.mxu0 %v1781
    %3061 = vmatprep.subr.bf16.mxu0 %v1774
    %3062 = vmatpush1.bf16.msra.mxu0 %v1773
    %3063 = vmatprep.subr.bf16.mxu0 %v1894
    %3064 = vmatpush2.bf16.msra.mxu0 %v1893
    %3065 = vmatprep.subr.bf16.mxu0 %v1886
    %3066 = vmatpush2.bf16.msra.mxu0 %v1885
    %3067 = vmatprep.subr.bf16.mxu0 %v1878
    %3068 = vmatpush2.bf16.msra.mxu0 %v1877
    %3069 = vmatprep.subr.bf16.mxu0 %v1870
    %3070 = vmatpush2.bf16.msra.mxu0 %v1869
    %3071 = vmatprep.subr.bf16.mxu0 %v1862
    %3072 = vmatpush2.bf16.msra.mxu0 %v1861
    %3073 = vmatprep.subr.bf16.mxu0 %v1854
    %3074 = vmatpush2.bf16.msra.mxu0 %v1853
    %3075 = vmatprep.subr.bf16.mxu0 %v1846
    %3076 = vmatpush2.bf16.msra.mxu0 %v1845
    %3077 = vmatprep.subr.bf16.mxu0 %v1838
    %3078 = vmatpush2.bf16.msra.mxu0 %v1837
    %3079 = vmatprep.mubr.bf16.mxu0 %v151
    %3080 = vmatmul.mubr.bf16.gmra.mxu0 %v150
    %v3081 = vpop.f32.mrf.mxu0
    %v3082 = vadd.f32 %v578, %v3081
    %v3083 = vpop.f32.mrf.mxu0
    %v3084 = vadd.f32 %v582, %v3083
    %v3085 = vpop.f32.mrf.mxu0
    %v3086 = vpop.f32.mrf.mxu0
    %3087 = vdwg.mxu0
    %3088 = vmatprep.subr.bf16.mxu0 %v1958
    %3089 = vmatpush1.bf16.msra.mxu0 %v1957
    %3090 = vmatprep.subr.bf16.mxu0 %v1950
    %3091 = vmatpush1.bf16.msra.mxu0 %v1949
    %3092 = vmatprep.subr.bf16.mxu0 %v1942
    %3093 = vmatpush1.bf16.msra.mxu0 %v1941
    %3094 = vmatprep.subr.bf16.mxu0 %v1934
    %3095 = vmatpush1.bf16.msra.mxu0 %v1933
    %3096 = vmatprep.subr.bf16.mxu0 %v1926
    %3097 = vmatpush1.bf16.msra.mxu0 %v1925
    %3098 = vmatprep.subr.bf16.mxu0 %v1918
    %3099 = vmatpush1.bf16.msra.mxu0 %v1917
    %3100 = vmatprep.subr.bf16.mxu0 %v1910
    %3101 = vmatpush1.bf16.msra.mxu0 %v1909
    %3102 = vmatprep.subr.bf16.mxu0 %v1902
    %3103 = vmatpush1.bf16.msra.mxu0 %v1901
    %3104 = vmatprep.subr.bf16.mxu0 %v2022
    %3105 = vmatpush2.bf16.msra.mxu0 %v2021
    %3106 = vmatprep.subr.bf16.mxu0 %v2014
    %3107 = vmatpush2.bf16.msra.mxu0 %v2013
    %3108 = vmatprep.subr.bf16.mxu0 %v2006
    %3109 = vmatpush2.bf16.msra.mxu0 %v2005
    %3110 = vmatprep.subr.bf16.mxu0 %v1998
    %3111 = vmatpush2.bf16.msra.mxu0 %v1997
    %3112 = vmatprep.subr.bf16.mxu0 %v1990
    %3113 = vmatpush2.bf16.msra.mxu0 %v1989
    %3114 = vmatprep.subr.bf16.mxu0 %v1982
    %3115 = vmatpush2.bf16.msra.mxu0 %v1981
    %3116 = vmatprep.subr.bf16.mxu0 %v1974
    %3117 = vmatpush2.bf16.msra.mxu0 %v1973
    %3118 = vmatprep.subr.bf16.mxu0 %v1966
    %3119 = vmatpush2.bf16.msra.mxu0 %v1965
    %3120 = vmatprep.mubr.bf16.mxu0 %v153
    %3121 = vmatmul.mubr.bf16.gmra.mxu0 %v152
    %v3122 = vpop.f32.mrf.mxu0
    %v3123 = vadd.f32 %v3082, %v3122
    %v3124 = vpop.f32.mrf.mxu0
    %v3125 = vadd.f32 %v3084, %v3124
    %v3126 = vpop.f32.mrf.mxu0
    %v3127 = vpop.f32.mrf.mxu0
    %3128 = vdwg.mxu0
    %3129 = vmatprep.subr.bf16.mxu0 %v2086
    %3130 = vmatpush1.bf16.msra.mxu0 %v2085
    %3131 = vmatprep.subr.bf16.mxu0 %v2078
    %3132 = vmatpush1.bf16.msra.mxu0 %v2077
    %3133 = vmatprep.subr.bf16.mxu0 %v2070
    %3134 = vmatpush1.bf16.msra.mxu0 %v2069
    %3135 = vmatprep.subr.bf16.mxu0 %v2062
    %3136 = vmatpush1.bf16.msra.mxu0 %v2061
    %3137 = vmatprep.subr.bf16.mxu0 %v2054
    %3138 = vmatpush1.bf16.msra.mxu0 %v2053
    %3139 = vmatprep.subr.bf16.mxu0 %v2046
    %3140 = vmatpush1.bf16.msra.mxu0 %v2045
    %3141 = vmatprep.subr.bf16.mxu0 %v2038
    %3142 = vmatpush1.bf16.msra.mxu0 %v2037
    %3143 = vmatprep.subr.bf16.mxu0 %v2030
    %3144 = vmatpush1.bf16.msra.mxu0 %v2029
    %3145 = vmatprep.subr.bf16.mxu0 %v2150
    %3146 = vmatpush2.bf16.msra.mxu0 %v2149
    %3147 = vmatprep.subr.bf16.mxu0 %v2142
    %3148 = vmatpush2.bf16.msra.mxu0 %v2141
    %3149 = vmatprep.subr.bf16.mxu0 %v2134
    %3150 = vmatpush2.bf16.msra.mxu0 %v2133
    %3151 = vmatprep.subr.bf16.mxu0 %v2126
    %3152 = vmatpush2.bf16.msra.mxu0 %v2125
    %3153 = vmatprep.subr.bf16.mxu0 %v2118
    %3154 = vmatpush2.bf16.msra.mxu0 %v2117
    %3155 = vmatprep.subr.bf16.mxu0 %v2110
    %3156 = vmatpush2.bf16.msra.mxu0 %v2109
    %3157 = vmatprep.subr.bf16.mxu0 %v2102
    %3158 = vmatpush2.bf16.msra.mxu0 %v2101
    %3159 = vmatprep.subr.bf16.mxu0 %v2094
    %3160 = vmatpush2.bf16.msra.mxu0 %v2093
    %3161 = vmatprep.mubr.bf16.mxu0 %v155
    %3162 = vmatmul.mubr.bf16.gmra.mxu0 %v154
    %v3163 = vpop.f32.mrf.mxu0
    %v3164 = vadd.f32 %v3123, %v3163
    %v3165 = vpop.f32.mrf.mxu0
    %v3166 = vadd.f32 %v3125, %v3165
    %v3167 = vpop.f32.mrf.mxu0
    %v3168 = vpop.f32.mrf.mxu0
    %3169 = vdwg.mxu0
    %3170 = vmatprep.subr.bf16.mxu0 0
    %3171 = vmatpush1.bf16.msra.mxu0 0
    %3172 = vmatprep.subr.bf16.mxu0 0
    %3173 = vmatpush1.bf16.msra.mxu0 0
    %3174 = vmatprep.subr.bf16.mxu0 0
    %3175 = vmatpush1.bf16.msra.mxu0 0
    %3176 = vmatprep.subr.bf16.mxu0 0
    %3177 = vmatpush1.bf16.msra.mxu0 0
    %3178 = vmatprep.subr.bf16.mxu0 0
    %3179 = vmatpush1.bf16.msra.mxu0 0
    %3180 = vmatprep.subr.bf16.mxu0 0
    %3181 = vmatpush1.bf16.msra.mxu0 0
    %3182 = vmatprep.subr.bf16.mxu0 0
    %3183 = vmatpush1.bf16.msra.mxu0 0
    %3184 = vmatprep.subr.bf16.mxu0 %v2158
    %3185 = vmatpush1.bf16.msra.mxu0 %v2157
    %3186 = vmatprep.subr.bf16.mxu0 0
    %3187 = vmatpush2.bf16.msra.mxu0 0
    %3188 = vmatprep.subr.bf16.mxu0 0
    %3189 = vmatpush2.bf16.msra.mxu0 0
    %3190 = vmatprep.subr.bf16.mxu0 0
    %3191 = vmatpush2.bf16.msra.mxu0 0
    %3192 = vmatprep.subr.bf16.mxu0 0
    %3193 = vmatpush2.bf16.msra.mxu0 0
    %3194 = vmatprep.subr.bf16.mxu0 0
    %3195 = vmatpush2.bf16.msra.mxu0 0
    %3196 = vmatprep.subr.bf16.mxu0 0
    %3197 = vmatpush2.bf16.msra.mxu0 0
    %3198 = vmatprep.subr.bf16.mxu0 0
    %3199 = vmatpush2.bf16.msra.mxu0 0
    %3200 = vmatprep.subr.bf16.mxu0 0
    %3201 = vmatpush2.bf16.msra.mxu0 0
    %3202 = vmatprep.mubr.bf16.mxu0 0
    %3203 = vmatmul.mubr.bf16.gmra.mxu0 %v2553
    %v3204 = vpop.f32.mrf.mxu0
    %v3205 = vadd.f32 %v3164, %v3204
    %v3206 = vpop.f32.mrf.mxu0
    %v3207 = vadd.f32 %v3166, %v3206
    %v3208 = vpop.f32.mrf.mxu0
    %v3209 = vpop.f32.mrf.mxu0
    %3210 = vdwg.mxu0
    %vm3211 = vcmp.gt.f32.partialorder %v2713, 0.0
    %vm3212 = vcmp.gt.f32.partialorder %v2715, 0.0
    %vm3213 = vcmp.gt.f32.partialorder %v2877, 0.0
    %vm3214 = vcmp.gt.f32.partialorder %v2879, 0.0
    %vm3215 = vcmp.gt.f32.partialorder %v3041, 0.0
    %vm3216 = vcmp.gt.f32.partialorder %v3043, 0.0
    %vm3217 = vcmp.gt.f32.partialorder %v3205, 0.0
    %vm3218 = vcmp.gt.f32.partialorder %v3207, 0.0
    %v3219 = vmul.f32 %v2713, 0.2
    %v3220 = vmul.f32 %v2715, 0.2
    %v3221 = vmul.f32 %v2877, 0.2
    %v3222 = vmul.f32 %v2879, 0.2
    %v3223 = vmul.f32 %v3041, 0.2
    %v3224 = vmul.f32 %v3043, 0.2
    %v3225 = vmul.f32 %v3205, 0.2
    %v3226 = vmul.f32 %v3207, 0.2
    %v3227 = vsel %vm3211, %v2713, %v3219
    %v3228 = vsel %vm3212, %v2715, %v3220
    %v3229 = vsel %vm3213, %v2877, %v3221
    %v3230 = vsel %vm3214, %v2879, %v3222
    %v3231 = vsel %vm3215, %v3041, %v3223
    %v3232 = vsel %vm3216, %v3043, %v3224
    %v3233 = vsel %vm3217, %v3205, %v3225
    %v3234 = vsel %vm3218, %v3207, %v3226
    %v3235 = vld [vmem:[%s1] sm:$0xff]
    %v3236 = vld [vmem:[%s1 + $0x8] sm:$0xff]
    %v3237 = vld [vmem:[%s1 + $0x10] sm:$0xff]
    %v3238 = vld [vmem:[%s1 + $0x18] sm:$0xff]
    %v3239 = vld [vmem:[%s1 + $0x20] sm:$0xff]
    %v3240 = vld [vmem:[%s1 + $0x28] sm:$0xff]
    %v3241 = vld [vmem:[%s1 + $0x30] sm:$0xff]
    %v3242 = vld [vmem:[%s1 + $0x38] sm:$0xff]
    %v3243 = vmul.f32 %v3227, %v3235
    %v3244 = vmul.f32 %v3228, %v3236
    %v3245 = vmul.f32 %v3229, %v3237
    %v3246 = vmul.f32 %v3230, %v3238
    %v3247 = vmul.f32 %v3231, %v3239
    %v3248 = vmul.f32 %v3232, %v3240
    %v3249 = vmul.f32 %v3233, %v3241
    %v3250 = vmul.f32 %v3234, %v3242
    %v3251 = vpack.c.bf16 %v3243, %v3243
    %v3252 = vpack.c.bf16 %v3244, %v3244
    %v3253 = vpack.c.bf16 %v3245, %v3245
    %v3254 = vpack.c.bf16 %v3246, %v3246
    %v3255 = vpack.c.bf16 %v3247, %v3247
    %v3256 = vpack.c.bf16 %v3248, %v3248
    %v3257 = vpack.c.bf16 %v3249, %v3249
    %v3258 = vpack.c.bf16 %v3250, %v3250
    %v3259 = vld [vmem:[#allocation6] sm:$0xff]
    %v3260 = vld [vmem:[#allocation6 + $0x8] sm:$0xff]
    %v3261 = vld [vmem:[#allocation6 + $0x10] sm:$0xff]
    %v3262 = vld [vmem:[#allocation6 + $0x18] sm:$0xff]
    %v3263 = vld [vmem:[#allocation6 + $0x20] sm:$0xff]
    %v3264 = vld [vmem:[#allocation6 + $0x28] sm:$0xff]
    %v3265 = vld [vmem:[#allocation6 + $0x30] sm:$0xff]
    %v3266 = vld [vmem:[#allocation6 + $0x38] sm:$0xff]
    %v3267 = vld [vmem:[#allocation6 + $0x40] sm:$0xff]
    %v3268 = vld [vmem:[#allocation6 + $0x48] sm:$0xff]
    %v3269 = vld [vmem:[#allocation6 + $0x50] sm:$0xff]
    %v3270 = vld [vmem:[#allocation6 + $0x58] sm:$0xff]
    %v3271 = vld [vmem:[#allocation6 + $0x60] sm:$0xff]
    %v3272 = vld [vmem:[#allocation6 + $0x68] sm:$0xff]
    %v3273 = vld [vmem:[#allocation6 + $0x70] sm:$0xff]
    %v3274 = vld [vmem:[#allocation6 + $0x78] sm:$0xff]
    %v3275 = vld [vmem:[#allocation6 + $0x80] sm:$0xff]
    %v3276 = vld [vmem:[#allocation6 + $0x88] sm:$0xff]
    %v3277 = vld [vmem:[#allocation6 + $0x90] sm:$0xff]
    %v3278 = vld [vmem:[#allocation6 + $0x98] sm:$0xff]
    %v3279 = vld [vmem:[#allocation6 + $0xa0] sm:$0xff]
    %v3280 = vld [vmem:[#allocation6 + $0xa8] sm:$0xff]
    %v3281 = vld [vmem:[#allocation6 + $0xb0] sm:$0xff]
    %v3282 = vld [vmem:[#allocation6 + $0xb8] sm:$0xff]
    %v3283 = vld [vmem:[#allocation6 + $0xc0] sm:$0xff]
    %v3284 = vld [vmem:[#allocation6 + $0xc8] sm:$0xff]
    %v3285 = vld [vmem:[#allocation6 + $0xd0] sm:$0xff]
    %v3286 = vld [vmem:[#allocation6 + $0xd8] sm:$0xff]
    %v3287 = vld [vmem:[#allocation6 + $0xe0] sm:$0xff]
    %v3288 = vld [vmem:[#allocation6 + $0xe8] sm:$0xff]
    %v3289 = vld [vmem:[#allocation6 + $0xf0] sm:$0xff]
    %v3290 = vld [vmem:[#allocation6 + $0xf8] sm:$0xff]
    %v3291 = vld [vmem:[#allocation6 + $0x100] sm:$0xff]
    %v3292 = vld [vmem:[#allocation6 + $0x108] sm:$0xff]
    %v3293 = vld [vmem:[#allocation6 + $0x110] sm:$0xff]
    %v3294 = vld [vmem:[#allocation6 + $0x118] sm:$0xff]
    %v3295 = vld [vmem:[#allocation6 + $0x120] sm:$0xff]
    %v3296 = vld [vmem:[#allocation6 + $0x128] sm:$0xff]
    %v3297 = vld [vmem:[#allocation6 + $0x130] sm:$0xff]
    %v3298 = vld [vmem:[#allocation6 + $0x138] sm:$0xff]
    %v3299 = vld [vmem:[#allocation6 + $0x140] sm:$0xff]
    %v3300 = vld [vmem:[#allocation6 + $0x148] sm:$0xff]
    %v3301 = vld [vmem:[#allocation6 + $0x150] sm:$0xff]
    %v3302 = vld [vmem:[#allocation6 + $0x158] sm:$0xff]
    %v3303 = vld [vmem:[#allocation6 + $0x160] sm:$0xff]
    %v3304 = vld [vmem:[#allocation6 + $0x168] sm:$0xff]
    %v3305 = vld [vmem:[#allocation6 + $0x170] sm:$0xff]
    %v3306 = vld [vmem:[#allocation6 + $0x178] sm:$0xff]
    %v3307 = vld [vmem:[#allocation6 + $0x180] sm:$0xff]
    %v3308 = vld [vmem:[#allocation6 + $0x188] sm:$0xff]
    %v3309 = vld [vmem:[#allocation6 + $0x190] sm:$0xff]
    %v3310 = vld [vmem:[#allocation6 + $0x198] sm:$0xff]
    %v3311 = vld [vmem:[#allocation6 + $0x1a0] sm:$0xff]
    %v3312 = vld [vmem:[#allocation6 + $0x1a8] sm:$0xff]
    %v3313 = vld [vmem:[#allocation6 + $0x1b0] sm:$0xff]
    %v3314 = vld [vmem:[#allocation6 + $0x1b8] sm:$0xff]
    %v3315 = vld [vmem:[#allocation6 + $0x1c0] sm:$0xff]
    %v3316 = vld [vmem:[#allocation6 + $0x1c8] sm:$0xff]
    %v3317 = vld [vmem:[#allocation6 + $0x1d0] sm:$0xff]
    %v3318 = vld [vmem:[#allocation6 + $0x1d8] sm:$0xff]
    %v3319 = vld [vmem:[#allocation6 + $0x1e0] sm:$0xff]
    %v3320 = vld [vmem:[#allocation6 + $0x1e8] sm:$0xff]
    %v3321 = vld [vmem:[#allocation6 + $0x1f0] sm:$0xff]
    %v3322 = vld [vmem:[#allocation6 + $0x1f8] sm:$0xff]
    %v3323 = vld [vmem:[#allocation6 + $0x200] sm:$0xff]
    %v3324 = vld [vmem:[#allocation6 + $0x208] sm:$0xff]
    %v3325 = vld [vmem:[#allocation6 + $0x210] sm:$0xff]
    %v3326 = vld [vmem:[#allocation6 + $0x218] sm:$0xff]
    %v3327 = vld [vmem:[#allocation6 + $0x220] sm:$0xff]
    %v3328 = vld [vmem:[#allocation6 + $0x228] sm:$0xff]
    %v3329 = vld [vmem:[#allocation6 + $0x230] sm:$0xff]
    %v3330 = vld [vmem:[#allocation6 + $0x238] sm:$0xff]
    %v3331 = vld [vmem:[#allocation6 + $0x240] sm:$0xff]
    %v3332 = vld [vmem:[#allocation6 + $0x248] sm:$0xff]
    %v3333 = vld [vmem:[#allocation6 + $0x250] sm:$0xff]
    %v3334 = vld [vmem:[#allocation6 + $0x258] sm:$0xff]
    %v3335 = vld [vmem:[#allocation6 + $0x260] sm:$0xff]
    %v3336 = vld [vmem:[#allocation6 + $0x268] sm:$0xff]
    %v3337 = vld [vmem:[#allocation6 + $0x270] sm:$0xff]
    %v3338 = vld [vmem:[#allocation6 + $0x278] sm:$0xff]
    %v3339 = vld [vmem:[#allocation6 + $0x280] sm:$0xff]
    %v3340 = vld [vmem:[#allocation6 + $0x288] sm:$0xff]
    %v3341 = vld [vmem:[#allocation6 + $0x290] sm:$0xff]
    %v3342 = vld [vmem:[#allocation6 + $0x298] sm:$0xff]
    %v3343 = vld [vmem:[#allocation6 + $0x2a0] sm:$0xff]
    %v3344 = vld [vmem:[#allocation6 + $0x2a8] sm:$0xff]
    %v3345 = vld [vmem:[#allocation6 + $0x2b0] sm:$0xff]
    %v3346 = vld [vmem:[#allocation6 + $0x2b8] sm:$0xff]
    %v3347 = vld [vmem:[#allocation6 + $0x2c0] sm:$0xff]
    %v3348 = vld [vmem:[#allocation6 + $0x2c8] sm:$0xff]
    %v3349 = vld [vmem:[#allocation6 + $0x2d0] sm:$0xff]
    %v3350 = vld [vmem:[#allocation6 + $0x2d8] sm:$0xff]
    %v3351 = vld [vmem:[#allocation6 + $0x2e0] sm:$0xff]
    %v3352 = vld [vmem:[#allocation6 + $0x2e8] sm:$0xff]
    %v3353 = vld [vmem:[#allocation6 + $0x2f0] sm:$0xff]
    %v3354 = vld [vmem:[#allocation6 + $0x2f8] sm:$0xff]
    %v3355 = vld [vmem:[#allocation6 + $0x300] sm:$0xff]
    %v3356 = vld [vmem:[#allocation6 + $0x308] sm:$0xff]
    %v3357 = vld [vmem:[#allocation6 + $0x310] sm:$0xff]
    %v3358 = vld [vmem:[#allocation6 + $0x318] sm:$0xff]
    %v3359 = vld [vmem:[#allocation6 + $0x320] sm:$0xff]
    %v3360 = vld [vmem:[#allocation6 + $0x328] sm:$0xff]
    %v3361 = vld [vmem:[#allocation6 + $0x330] sm:$0xff]
    %v3362 = vld [vmem:[#allocation6 + $0x338] sm:$0xff]
    %v3363 = vld [vmem:[#allocation6 + $0x340] sm:$0xff]
    %v3364 = vld [vmem:[#allocation6 + $0x348] sm:$0xff]
    %v3365 = vld [vmem:[#allocation6 + $0x350] sm:$0xff]
    %v3366 = vld [vmem:[#allocation6 + $0x358] sm:$0xff]
    %v3367 = vld [vmem:[#allocation6 + $0x360] sm:$0xff]
    %v3368 = vld [vmem:[#allocation6 + $0x368] sm:$0xff]
    %v3369 = vld [vmem:[#allocation6 + $0x370] sm:$0xff]
    %v3370 = vld [vmem:[#allocation6 + $0x378] sm:$0xff]
    %v3371 = vld [vmem:[#allocation6 + $0x380] sm:$0xff]
    %v3372 = vld [vmem:[#allocation6 + $0x388] sm:$0xff]
    %v3373 = vld [vmem:[#allocation6 + $0x390] sm:$0xff]
    %v3374 = vld [vmem:[#allocation6 + $0x398] sm:$0xff]
    %v3375 = vld [vmem:[#allocation6 + $0x3a0] sm:$0xff]
    %v3376 = vld [vmem:[#allocation6 + $0x3a8] sm:$0xff]
    %v3377 = vld [vmem:[#allocation6 + $0x3b0] sm:$0xff]
    %v3378 = vld [vmem:[#allocation6 + $0x3b8] sm:$0xff]
    %v3379 = vld [vmem:[#allocation6 + $0x3c0] sm:$0xff]
    %v3380 = vld [vmem:[#allocation6 + $0x3c8] sm:$0xff]
    %v3381 = vld [vmem:[#allocation6 + $0x3d0] sm:$0xff]
    %v3382 = vld [vmem:[#allocation6 + $0x3d8] sm:$0xff]
    %v3383 = vld [vmem:[#allocation6 + $0x3e0] sm:$0xff]
    %v3384 = vld [vmem:[#allocation6 + $0x3e8] sm:$0xff]
    %v3385 = vld [vmem:[#allocation6 + $0x3f0] sm:$0xff]
    %v3386 = vld [vmem:[#allocation6 + $0x3f8] sm:$0xff]
    %v3387 = vld [vmem:[#allocation6 + $0x400] sm:$0xff]
    %v3388 = vld [vmem:[#allocation6 + $0x408] sm:$0xff]
    %v3389 = vld [vmem:[#allocation6 + $0x410] sm:$0xff]
    %v3390 = vld [vmem:[#allocation6 + $0x418] sm:$0xff]
    %v3391 = vld [vmem:[#allocation6 + $0x420] sm:$0xff]
    %v3392 = vld [vmem:[#allocation6 + $0x428] sm:$0xff]
    %v3393 = vld [vmem:[#allocation6 + $0x430] sm:$0xff]
    %v3394 = vld [vmem:[#allocation6 + $0x438] sm:$0xff]
    %v3395 = vld [vmem:[#allocation6 + $0x440] sm:$0xff]
    %v3396 = vld [vmem:[#allocation6 + $0x448] sm:$0xff]
    %v3397 = vld [vmem:[#allocation6 + $0x450] sm:$0xff]
    %v3398 = vld [vmem:[#allocation6 + $0x458] sm:$0xff]
    %v3399 = vld [vmem:[#allocation6 + $0x460] sm:$0xff]
    %v3400 = vld [vmem:[#allocation6 + $0x468] sm:$0xff]
    %v3401 = vld [vmem:[#allocation6 + $0x470] sm:$0xff]
    %v3402 = vld [vmem:[#allocation6 + $0x478] sm:$0xff]
    %v3403 = vld [vmem:[#allocation6 + $0x480] sm:$0xff]
    %v3404 = vld [vmem:[#allocation6 + $0x488] sm:$0xff]
    %v3405 = vld [vmem:[#allocation6 + $0x490] sm:$0xff]
    %v3406 = vld [vmem:[#allocation6 + $0x498] sm:$0xff]
    %v3407 = vld [vmem:[#allocation6 + $0x4a0] sm:$0xff]
    %v3408 = vld [vmem:[#allocation6 + $0x4a8] sm:$0xff]
    %v3409 = vld [vmem:[#allocation6 + $0x4b0] sm:$0xff]
    %v3410 = vld [vmem:[#allocation6 + $0x4b8] sm:$0xff]
    %v3411 = vld [vmem:[#allocation6 + $0x4c0] sm:$0xff]
    %v3412 = vld [vmem:[#allocation6 + $0x4c8] sm:$0xff]
    %v3413 = vld [vmem:[#allocation6 + $0x4d0] sm:$0xff]
    %v3414 = vld [vmem:[#allocation6 + $0x4d8] sm:$0xff]
    %v3415 = vld [vmem:[#allocation6 + $0x4e0] sm:$0xff]
    %v3416 = vld [vmem:[#allocation6 + $0x4e8] sm:$0xff]
    %v3417 = vld [vmem:[#allocation6 + $0x4f0] sm:$0xff]
    %v3418 = vld [vmem:[#allocation6 + $0x4f8] sm:$0xff]
    %v3419 = vld [vmem:[#allocation6 + $0x500] sm:$0xff]
    %v3420 = vld [vmem:[#allocation6 + $0x508] sm:$0xff]
    %v3421 = vld [vmem:[#allocation6 + $0x510] sm:$0xff]
    %v3422 = vld [vmem:[#allocation6 + $0x518] sm:$0xff]
    %v3423 = vld [vmem:[#allocation6 + $0x520] sm:$0xff]
    %v3424 = vld [vmem:[#allocation6 + $0x528] sm:$0xff]
    %v3425 = vld [vmem:[#allocation6 + $0x530] sm:$0xff]
    %v3426 = vld [vmem:[#allocation6 + $0x538] sm:$0xff]
    %v3427 = vld [vmem:[#allocation6 + $0x540] sm:$0xff]
    %v3428 = vld [vmem:[#allocation6 + $0x548] sm:$0xff]
    %v3429 = vld [vmem:[#allocation6 + $0x550] sm:$0xff]
    %v3430 = vld [vmem:[#allocation6 + $0x558] sm:$0xff]
    %v3431 = vld [vmem:[#allocation6 + $0x560] sm:$0xff]
    %v3432 = vld [vmem:[#allocation6 + $0x568] sm:$0xff]
    %v3433 = vld [vmem:[#allocation6 + $0x570] sm:$0xff]
    %v3434 = vld [vmem:[#allocation6 + $0x578] sm:$0xff]
    %v3435 = vld [vmem:[#allocation6 + $0x580] sm:$0xff]
    %v3436 = vld [vmem:[#allocation6 + $0x588] sm:$0xff]
    %v3437 = vld [vmem:[#allocation6 + $0x590] sm:$0xff]
    %v3438 = vld [vmem:[#allocation6 + $0x598] sm:$0xff]
    %v3439 = vld [vmem:[#allocation6 + $0x5a0] sm:$0xff]
    %v3440 = vld [vmem:[#allocation6 + $0x5a8] sm:$0xff]
    %v3441 = vld [vmem:[#allocation6 + $0x5b0] sm:$0xff]
    %v3442 = vld [vmem:[#allocation6 + $0x5b8] sm:$0xff]
    %v3443 = vld [vmem:[#allocation6 + $0x5c0] sm:$0xff]
    %v3444 = vld [vmem:[#allocation6 + $0x5c8] sm:$0xff]
    %v3445 = vld [vmem:[#allocation6 + $0x5d0] sm:$0xff]
    %v3446 = vld [vmem:[#allocation6 + $0x5d8] sm:$0xff]
    %v3447 = vld [vmem:[#allocation6 + $0x5e0] sm:$0xff]
    %v3448 = vld [vmem:[#allocation6 + $0x5e8] sm:$0xff]
    %v3449 = vld [vmem:[#allocation6 + $0x5f0] sm:$0xff]
    %v3450 = vld [vmem:[#allocation6 + $0x5f8] sm:$0xff]
    %v3451 = vld [vmem:[#allocation6 + $0x600] sm:$0xff]
    %v3452 = vld [vmem:[#allocation6 + $0x608] sm:$0xff]
    %v3453 = vld [vmem:[#allocation6 + $0x610] sm:$0xff]
    %v3454 = vld [vmem:[#allocation6 + $0x618] sm:$0xff]
    %v3455 = vld [vmem:[#allocation6 + $0x620] sm:$0xff]
    %v3456 = vld [vmem:[#allocation6 + $0x628] sm:$0xff]
    %v3457 = vld [vmem:[#allocation6 + $0x630] sm:$0xff]
    %v3458 = vld [vmem:[#allocation6 + $0x638] sm:$0xff]
    %v3459 = vld [vmem:[#allocation6 + $0x640] sm:$0xff]
    %v3460 = vld [vmem:[#allocation6 + $0x648] sm:$0xff]
    %v3461 = vld [vmem:[#allocation6 + $0x650] sm:$0xff]
    %v3462 = vld [vmem:[#allocation6 + $0x658] sm:$0xff]
    %v3463 = vld [vmem:[#allocation6 + $0x660] sm:$0xff]
    %v3464 = vld [vmem:[#allocation6 + $0x668] sm:$0xff]
    %v3465 = vld [vmem:[#allocation6 + $0x670] sm:$0xff]
    %v3466 = vld [vmem:[#allocation6 + $0x678] sm:$0xff]
    %v3467 = vld [vmem:[#allocation6 + $0x680] sm:$0xff]
    %v3468 = vld [vmem:[#allocation6 + $0x688] sm:$0xff]
    %v3469 = vld [vmem:[#allocation6 + $0x690] sm:$0xff]
    %v3470 = vld [vmem:[#allocation6 + $0x698] sm:$0xff]
    %v3471 = vld [vmem:[#allocation6 + $0x6a0] sm:$0xff]
    %v3472 = vld [vmem:[#allocation6 + $0x6a8] sm:$0xff]
    %v3473 = vld [vmem:[#allocation6 + $0x6b0] sm:$0xff]
    %v3474 = vld [vmem:[#allocation6 + $0x6b8] sm:$0xff]
    %v3475 = vld [vmem:[#allocation6 + $0x6c0] sm:$0xff]
    %v3476 = vld [vmem:[#allocation6 + $0x6c8] sm:$0xff]
    %v3477 = vld [vmem:[#allocation6 + $0x6d0] sm:$0xff]
    %v3478 = vld [vmem:[#allocation6 + $0x6d8] sm:$0xff]
    %v3479 = vld [vmem:[#allocation6 + $0x6e0] sm:$0xff]
    %v3480 = vld [vmem:[#allocation6 + $0x6e8] sm:$0xff]
    %v3481 = vld [vmem:[#allocation6 + $0x6f0] sm:$0xff]
    %v3482 = vld [vmem:[#allocation6 + $0x6f8] sm:$0xff]
    %v3483 = vld [vmem:[#allocation6 + $0x700] sm:$0xff]
    %v3484 = vld [vmem:[#allocation6 + $0x708] sm:$0xff]
    %v3485 = vld [vmem:[#allocation6 + $0x710] sm:$0xff]
    %v3486 = vld [vmem:[#allocation6 + $0x718] sm:$0xff]
    %v3487 = vld [vmem:[#allocation6 + $0x720] sm:$0xff]
    %v3488 = vld [vmem:[#allocation6 + $0x728] sm:$0xff]
    %v3489 = vld [vmem:[#allocation6 + $0x730] sm:$0xff]
    %v3490 = vld [vmem:[#allocation6 + $0x738] sm:$0xff]
    %v3491 = vld [vmem:[#allocation6 + $0x740] sm:$0xff]
    %v3492 = vld [vmem:[#allocation6 + $0x748] sm:$0xff]
    %v3493 = vld [vmem:[#allocation6 + $0x750] sm:$0xff]
    %v3494 = vld [vmem:[#allocation6 + $0x758] sm:$0xff]
    %v3495 = vld [vmem:[#allocation6 + $0x760] sm:$0xff]
    %v3496 = vld [vmem:[#allocation6 + $0x768] sm:$0xff]
    %v3497 = vld [vmem:[#allocation6 + $0x770] sm:$0xff]
    %v3498 = vld [vmem:[#allocation6 + $0x778] sm:$0xff]
    %v3499 = vld [vmem:[#allocation6 + $0x780] sm:$0xff]
    %v3500 = vld [vmem:[#allocation6 + $0x788] sm:$0xff]
    %v3501 = vld [vmem:[#allocation6 + $0x790] sm:$0xff]
    %v3502 = vld [vmem:[#allocation6 + $0x798] sm:$0xff]
    %v3503 = vld [vmem:[#allocation6 + $0x7a0] sm:$0xff]
    %v3504 = vld [vmem:[#allocation6 + $0x7a8] sm:$0xff]
    %v3505 = vld [vmem:[#allocation6 + $0x7b0] sm:$0xff]
    %v3506 = vld [vmem:[#allocation6 + $0x7b8] sm:$0xff]
    %v3507 = vld [vmem:[#allocation6 + $0x7c0] sm:$0xff]
    %v3508 = vld [vmem:[#allocation6 + $0x7c8] sm:$0xff]
    %v3509 = vld [vmem:[#allocation6 + $0x7d0] sm:$0xff]
    %v3510 = vld [vmem:[#allocation6 + $0x7d8] sm:$0xff]
    %v3511 = vld [vmem:[#allocation6 + $0x7e0] sm:$0xff]
    %v3512 = vld [vmem:[#allocation6 + $0x7e8] sm:$0xff]
    %v3513 = vld [vmem:[#allocation6 + $0x7f0] sm:$0xff]
    %v3514 = vld [vmem:[#allocation6 + $0x7f8] sm:$0xff]
    %v3515 = vld [vmem:[#allocation7] sm:$0xf]
    %v3517 = vlaneseq
    %v3518 = vshrl.u32 %v3517, 7
    %v3519 = vsub.s32 0, %v3518
    %v3520 = vrot.slane %v3515, %v3519
    %v3521 = vlaneseq
    %v3522 = vshrl.u32 %v3521, 7
    %v3523 = vsub.s32 1, %v3522
    %v3524 = vrot.slane %v3515, %v3523
    %v3525 = vlaneseq
    %v3526 = vshrl.u32 %v3525, 7
    %v3527 = vsub.s32 2, %v3526
    %v3528 = vrot.slane %v3515, %v3527
    %v3529 = vlaneseq
    %v3530 = vshrl.u32 %v3529, 7
    %v3531 = vsub.s32 3, %v3530
    %v3532 = vrot.slane %v3515, %v3531
    %v3793 = vunpack.c.l.b16 %v3259
    %v3794 = vunpack.c.h.b16 %v3259
    %v3795 = vunpack.c.l.b16 %v3260
    %v3796 = vunpack.c.h.b16 %v3260
    %v3797 = vunpack.c.l.b16 %v3261
    %v3798 = vunpack.c.h.b16 %v3261
    %v3799 = vunpack.c.l.b16 %v3262
    %v3800 = vunpack.c.h.b16 %v3262
    %v3801 = vunpack.c.l.b16 %v3263
    %v3802 = vunpack.c.h.b16 %v3263
    %v3803 = vunpack.c.l.b16 %v3264
    %v3804 = vunpack.c.h.b16 %v3264
    %v3805 = vunpack.c.l.b16 %v3265
    %v3806 = vunpack.c.h.b16 %v3265
    %v3807 = vunpack.c.l.b16 %v3266
    %v3808 = vunpack.c.h.b16 %v3266
    %v3809 = vunpack.c.l.b16 %v3267
    %v3810 = vunpack.c.h.b16 %v3267
    %v3811 = vunpack.c.l.b16 %v3268
    %v3812 = vunpack.c.h.b16 %v3268
    %v3813 = vunpack.c.l.b16 %v3269
    %v3814 = vunpack.c.h.b16 %v3269
    %v3815 = vunpack.c.l.b16 %v3270
    %v3816 = vunpack.c.h.b16 %v3270
    %v3817 = vunpack.c.l.b16 %v3271
    %v3818 = vunpack.c.h.b16 %v3271
    %v3819 = vunpack.c.l.b16 %v3272
    %v3820 = vunpack.c.h.b16 %v3272
    %v3821 = vunpack.c.l.b16 %v3273
    %v3822 = vunpack.c.h.b16 %v3273
    %v3823 = vunpack.c.l.b16 %v3274
    %v3824 = vunpack.c.h.b16 %v3274
    %v3825 = vunpack.c.l.b16 %v3275
    %v3826 = vunpack.c.h.b16 %v3275
    %v3827 = vunpack.c.l.b16 %v3276
    %v3828 = vunpack.c.h.b16 %v3276
    %v3829 = vunpack.c.l.b16 %v3277
    %v3830 = vunpack.c.h.b16 %v3277
    %v3831 = vunpack.c.l.b16 %v3278
    %v3832 = vunpack.c.h.b16 %v3278
    %v3833 = vunpack.c.l.b16 %v3279
    %v3834 = vunpack.c.h.b16 %v3279
    %v3835 = vunpack.c.l.b16 %v3280
    %v3836 = vunpack.c.h.b16 %v3280
    %v3837 = vunpack.c.l.b16 %v3281
    %v3838 = vunpack.c.h.b16 %v3281
    %v3839 = vunpack.c.l.b16 %v3282
    %v3840 = vunpack.c.h.b16 %v3282
    %v3841 = vunpack.c.l.b16 %v3283
    %v3842 = vunpack.c.h.b16 %v3283
    %v3843 = vunpack.c.l.b16 %v3284
    %v3844 = vunpack.c.h.b16 %v3284
    %v3845 = vunpack.c.l.b16 %v3285
    %v3846 = vunpack.c.h.b16 %v3285
    %v3847 = vunpack.c.l.b16 %v3286
    %v3848 = vunpack.c.h.b16 %v3286
    %v3849 = vunpack.c.l.b16 %v3287
    %v3850 = vunpack.c.h.b16 %v3287
    %v3851 = vunpack.c.l.b16 %v3288
    %v3852 = vunpack.c.h.b16 %v3288
    %v3853 = vunpack.c.l.b16 %v3289
    %v3854 = vunpack.c.h.b16 %v3289
    %v3855 = vunpack.c.l.b16 %v3290
    %v3856 = vunpack.c.h.b16 %v3290
    %v3857 = vunpack.c.l.b16 %v3291
    %v3858 = vunpack.c.h.b16 %v3291
    %v3859 = vunpack.c.l.b16 %v3292
    %v3860 = vunpack.c.h.b16 %v3292
    %v3861 = vunpack.c.l.b16 %v3293
    %v3862 = vunpack.c.h.b16 %v3293
    %v3863 = vunpack.c.l.b16 %v3294
    %v3864 = vunpack.c.h.b16 %v3294
    %v3865 = vunpack.c.l.b16 %v3295
    %v3866 = vunpack.c.h.b16 %v3295
    %v3867 = vunpack.c.l.b16 %v3296
    %v3868 = vunpack.c.h.b16 %v3296
    %v3869 = vunpack.c.l.b16 %v3297
    %v3870 = vunpack.c.h.b16 %v3297
    %v3871 = vunpack.c.l.b16 %v3298
    %v3872 = vunpack.c.h.b16 %v3298
    %v3873 = vunpack.c.l.b16 %v3299
    %v3874 = vunpack.c.h.b16 %v3299
    %v3875 = vunpack.c.l.b16 %v3300
    %v3876 = vunpack.c.h.b16 %v3300
    %v3877 = vunpack.c.l.b16 %v3301
    %v3878 = vunpack.c.h.b16 %v3301
    %v3879 = vunpack.c.l.b16 %v3302
    %v3880 = vunpack.c.h.b16 %v3302
    %v3881 = vunpack.c.l.b16 %v3303
    %v3882 = vunpack.c.h.b16 %v3303
    %v3883 = vunpack.c.l.b16 %v3304
    %v3884 = vunpack.c.h.b16 %v3304
    %v3885 = vunpack.c.l.b16 %v3305
    %v3886 = vunpack.c.h.b16 %v3305
    %v3887 = vunpack.c.l.b16 %v3306
    %v3888 = vunpack.c.h.b16 %v3306
    %v3889 = vunpack.c.l.b16 %v3307
    %v3890 = vunpack.c.h.b16 %v3307
    %v3891 = vunpack.c.l.b16 %v3308
    %v3892 = vunpack.c.h.b16 %v3308
    %v3893 = vunpack.c.l.b16 %v3309
    %v3894 = vunpack.c.h.b16 %v3309
    %v3895 = vunpack.c.l.b16 %v3310
    %v3896 = vunpack.c.h.b16 %v3310
    %v3897 = vunpack.c.l.b16 %v3311
    %v3898 = vunpack.c.h.b16 %v3311
    %v3899 = vunpack.c.l.b16 %v3312
    %v3900 = vunpack.c.h.b16 %v3312
    %v3901 = vunpack.c.l.b16 %v3313
    %v3902 = vunpack.c.h.b16 %v3313
    %v3903 = vunpack.c.l.b16 %v3314
    %v3904 = vunpack.c.h.b16 %v3314
    %v3905 = vunpack.c.l.b16 %v3315
    %v3906 = vunpack.c.h.b16 %v3315
    %v3907 = vunpack.c.l.b16 %v3316
    %v3908 = vunpack.c.h.b16 %v3316
    %v3909 = vunpack.c.l.b16 %v3317
    %v3910 = vunpack.c.h.b16 %v3317
    %v3911 = vunpack.c.l.b16 %v3318
    %v3912 = vunpack.c.h.b16 %v3318
    %v3913 = vunpack.c.l.b16 %v3319
    %v3914 = vunpack.c.h.b16 %v3319
    %v3915 = vunpack.c.l.b16 %v3320
    %v3916 = vunpack.c.h.b16 %v3320
    %v3917 = vunpack.c.l.b16 %v3321
    %v3918 = vunpack.c.h.b16 %v3321
    %v3919 = vunpack.c.l.b16 %v3322
    %v3920 = vunpack.c.h.b16 %v3322
    %v3921 = vunpack.c.l.b16 %v3323
    %v3922 = vunpack.c.h.b16 %v3323
    %v3923 = vunpack.c.l.b16 %v3324
    %v3924 = vunpack.c.h.b16 %v3324
    %v3925 = vunpack.c.l.b16 %v3325
    %v3926 = vunpack.c.h.b16 %v3325
    %v3927 = vunpack.c.l.b16 %v3326
    %v3928 = vunpack.c.h.b16 %v3326
    %v3929 = vunpack.c.l.b16 %v3327
    %v3930 = vunpack.c.h.b16 %v3327
    %v3931 = vunpack.c.l.b16 %v3328
    %v3932 = vunpack.c.h.b16 %v3328
    %v3933 = vunpack.c.l.b16 %v3329
    %v3934 = vunpack.c.h.b16 %v3329
    %v3935 = vunpack.c.l.b16 %v3330
    %v3936 = vunpack.c.h.b16 %v3330
    %v3937 = vunpack.c.l.b16 %v3331
    %v3938 = vunpack.c.h.b16 %v3331
    %v3939 = vunpack.c.l.b16 %v3332
    %v3940 = vunpack.c.h.b16 %v3332
    %v3941 = vunpack.c.l.b16 %v3333
    %v3942 = vunpack.c.h.b16 %v3333
    %v3943 = vunpack.c.l.b16 %v3334
    %v3944 = vunpack.c.h.b16 %v3334
    %v3945 = vunpack.c.l.b16 %v3335
    %v3946 = vunpack.c.h.b16 %v3335
    %v3947 = vunpack.c.l.b16 %v3336
    %v3948 = vunpack.c.h.b16 %v3336
    %v3949 = vunpack.c.l.b16 %v3337
    %v3950 = vunpack.c.h.b16 %v3337
    %v3951 = vunpack.c.l.b16 %v3338
    %v3952 = vunpack.c.h.b16 %v3338
    %v3953 = vunpack.c.l.b16 %v3339
    %v3954 = vunpack.c.h.b16 %v3339
    %v3955 = vunpack.c.l.b16 %v3340
    %v3956 = vunpack.c.h.b16 %v3340
    %v3957 = vunpack.c.l.b16 %v3341
    %v3958 = vunpack.c.h.b16 %v3341
    %v3959 = vunpack.c.l.b16 %v3342
    %v3960 = vunpack.c.h.b16 %v3342
    %v3961 = vunpack.c.l.b16 %v3343
    %v3962 = vunpack.c.h.b16 %v3343
    %v3963 = vunpack.c.l.b16 %v3344
    %v3964 = vunpack.c.h.b16 %v3344
    %v3965 = vunpack.c.l.b16 %v3345
    %v3966 = vunpack.c.h.b16 %v3345
    %v3967 = vunpack.c.l.b16 %v3346
    %v3968 = vunpack.c.h.b16 %v3346
    %v3969 = vunpack.c.l.b16 %v3347
    %v3970 = vunpack.c.h.b16 %v3347
    %v3971 = vunpack.c.l.b16 %v3348
    %v3972 = vunpack.c.h.b16 %v3348
    %v3973 = vunpack.c.l.b16 %v3349
    %v3974 = vunpack.c.h.b16 %v3349
    %v3975 = vunpack.c.l.b16 %v3350
    %v3976 = vunpack.c.h.b16 %v3350
    %v3977 = vunpack.c.l.b16 %v3351
    %v3978 = vunpack.c.h.b16 %v3351
    %v3979 = vunpack.c.l.b16 %v3352
    %v3980 = vunpack.c.h.b16 %v3352
    %v3981 = vunpack.c.l.b16 %v3353
    %v3982 = vunpack.c.h.b16 %v3353
    %v3983 = vunpack.c.l.b16 %v3354
    %v3984 = vunpack.c.h.b16 %v3354
    %v3985 = vunpack.c.l.b16 %v3355
    %v3986 = vunpack.c.h.b16 %v3355
    %v3987 = vunpack.c.l.b16 %v3356
    %v3988 = vunpack.c.h.b16 %v3356
    %v3989 = vunpack.c.l.b16 %v3357
    %v3990 = vunpack.c.h.b16 %v3357
    %v3991 = vunpack.c.l.b16 %v3358
    %v3992 = vunpack.c.h.b16 %v3358
    %v3993 = vunpack.c.l.b16 %v3359
    %v3994 = vunpack.c.h.b16 %v3359
    %v3995 = vunpack.c.l.b16 %v3360
    %v3996 = vunpack.c.h.b16 %v3360
    %v3997 = vunpack.c.l.b16 %v3361
    %v3998 = vunpack.c.h.b16 %v3361
    %v3999 = vunpack.c.l.b16 %v3362
    %v4000 = vunpack.c.h.b16 %v3362
    %v4001 = vunpack.c.l.b16 %v3363
    %v4002 = vunpack.c.h.b16 %v3363
    %v4003 = vunpack.c.l.b16 %v3364
    %v4004 = vunpack.c.h.b16 %v3364
    %v4005 = vunpack.c.l.b16 %v3365
    %v4006 = vunpack.c.h.b16 %v3365
    %v4007 = vunpack.c.l.b16 %v3366
    %v4008 = vunpack.c.h.b16 %v3366
    %v4009 = vunpack.c.l.b16 %v3367
    %v4010 = vunpack.c.h.b16 %v3367
    %v4011 = vunpack.c.l.b16 %v3368
    %v4012 = vunpack.c.h.b16 %v3368
    %v4013 = vunpack.c.l.b16 %v3369
    %v4014 = vunpack.c.h.b16 %v3369
    %v4015 = vunpack.c.l.b16 %v3370
    %v4016 = vunpack.c.h.b16 %v3370
    %v4017 = vunpack.c.l.b16 %v3371
    %v4018 = vunpack.c.h.b16 %v3371
    %v4019 = vunpack.c.l.b16 %v3372
    %v4020 = vunpack.c.h.b16 %v3372
    %v4021 = vunpack.c.l.b16 %v3373
    %v4022 = vunpack.c.h.b16 %v3373
    %v4023 = vunpack.c.l.b16 %v3374
    %v4024 = vunpack.c.h.b16 %v3374
    %v4025 = vunpack.c.l.b16 %v3375
    %v4026 = vunpack.c.h.b16 %v3375
    %v4027 = vunpack.c.l.b16 %v3376
    %v4028 = vunpack.c.h.b16 %v3376
    %v4029 = vunpack.c.l.b16 %v3377
    %v4030 = vunpack.c.h.b16 %v3377
    %v4031 = vunpack.c.l.b16 %v3378
    %v4032 = vunpack.c.h.b16 %v3378
    %v4033 = vunpack.c.l.b16 %v3379
    %v4034 = vunpack.c.h.b16 %v3379
    %v4035 = vunpack.c.l.b16 %v3380
    %v4036 = vunpack.c.h.b16 %v3380
    %v4037 = vunpack.c.l.b16 %v3381
    %v4038 = vunpack.c.h.b16 %v3381
    %v4039 = vunpack.c.l.b16 %v3382
    %v4040 = vunpack.c.h.b16 %v3382
    %v4041 = vunpack.c.l.b16 %v3383
    %v4042 = vunpack.c.h.b16 %v3383
    %v4043 = vunpack.c.l.b16 %v3384
    %v4044 = vunpack.c.h.b16 %v3384
    %v4045 = vunpack.c.l.b16 %v3385
    %v4046 = vunpack.c.h.b16 %v3385
    %v4047 = vunpack.c.l.b16 %v3386
    %v4048 = vunpack.c.h.b16 %v3386
    %v4049 = vunpack.c.l.b16 %v3387
    %v4050 = vunpack.c.h.b16 %v3387
    %v4051 = vunpack.c.l.b16 %v3388
    %v4052 = vunpack.c.h.b16 %v3388
    %v4053 = vunpack.c.l.b16 %v3389
    %v4054 = vunpack.c.h.b16 %v3389
    %v4055 = vunpack.c.l.b16 %v3390
    %v4056 = vunpack.c.h.b16 %v3390
    %v4057 = vunpack.c.l.b16 %v3391
    %v4058 = vunpack.c.h.b16 %v3391
    %v4059 = vunpack.c.l.b16 %v3392
    %v4060 = vunpack.c.h.b16 %v3392
    %v4061 = vunpack.c.l.b16 %v3393
    %v4062 = vunpack.c.h.b16 %v3393
    %v4063 = vunpack.c.l.b16 %v3394
    %v4064 = vunpack.c.h.b16 %v3394
    %v4065 = vunpack.c.l.b16 %v3395
    %v4066 = vunpack.c.h.b16 %v3395
    %v4067 = vunpack.c.l.b16 %v3396
    %v4068 = vunpack.c.h.b16 %v3396
    %v4069 = vunpack.c.l.b16 %v3397
    %v4070 = vunpack.c.h.b16 %v3397
    %v4071 = vunpack.c.l.b16 %v3398
    %v4072 = vunpack.c.h.b16 %v3398
    %v4073 = vunpack.c.l.b16 %v3399
    %v4074 = vunpack.c.h.b16 %v3399
    %v4075 = vunpack.c.l.b16 %v3400
    %v4076 = vunpack.c.h.b16 %v3400
    %v4077 = vunpack.c.l.b16 %v3401
    %v4078 = vunpack.c.h.b16 %v3401
    %v4079 = vunpack.c.l.b16 %v3402
    %v4080 = vunpack.c.h.b16 %v3402
    %v4081 = vunpack.c.l.b16 %v3403
    %v4082 = vunpack.c.h.b16 %v3403
    %v4083 = vunpack.c.l.b16 %v3404
    %v4084 = vunpack.c.h.b16 %v3404
    %v4085 = vunpack.c.l.b16 %v3405
    %v4086 = vunpack.c.h.b16 %v3405
    %v4087 = vunpack.c.l.b16 %v3406
    %v4088 = vunpack.c.h.b16 %v3406
    %v4089 = vunpack.c.l.b16 %v3407
    %v4090 = vunpack.c.h.b16 %v3407
    %v4091 = vunpack.c.l.b16 %v3408
    %v4092 = vunpack.c.h.b16 %v3408
    %v4093 = vunpack.c.l.b16 %v3409
    %v4094 = vunpack.c.h.b16 %v3409
    %v4095 = vunpack.c.l.b16 %v3410
    %v4096 = vunpack.c.h.b16 %v3410
    %v4097 = vunpack.c.l.b16 %v3411
    %v4098 = vunpack.c.h.b16 %v3411
    %v4099 = vunpack.c.l.b16 %v3412
    %v4100 = vunpack.c.h.b16 %v3412
    %v4101 = vunpack.c.l.b16 %v3413
    %v4102 = vunpack.c.h.b16 %v3413
    %v4103 = vunpack.c.l.b16 %v3414
    %v4104 = vunpack.c.h.b16 %v3414
    %v4105 = vunpack.c.l.b16 %v3415
    %v4106 = vunpack.c.h.b16 %v3415
    %v4107 = vunpack.c.l.b16 %v3416
    %v4108 = vunpack.c.h.b16 %v3416
    %v4109 = vunpack.c.l.b16 %v3417
    %v4110 = vunpack.c.h.b16 %v3417
    %v4111 = vunpack.c.l.b16 %v3418
    %v4112 = vunpack.c.h.b16 %v3418
    %v4113 = vunpack.c.l.b16 %v3419
    %v4114 = vunpack.c.h.b16 %v3419
    %v4115 = vunpack.c.l.b16 %v3420
    %v4116 = vunpack.c.h.b16 %v3420
    %v4117 = vunpack.c.l.b16 %v3421
    %v4118 = vunpack.c.h.b16 %v3421
    %v4119 = vunpack.c.l.b16 %v3422
    %v4120 = vunpack.c.h.b16 %v3422
    %v4121 = vunpack.c.l.b16 %v3423
    %v4122 = vunpack.c.h.b16 %v3423
    %v4123 = vunpack.c.l.b16 %v3424
    %v4124 = vunpack.c.h.b16 %v3424
    %v4125 = vunpack.c.l.b16 %v3425
    %v4126 = vunpack.c.h.b16 %v3425
    %v4127 = vunpack.c.l.b16 %v3426
    %v4128 = vunpack.c.h.b16 %v3426
    %v4129 = vunpack.c.l.b16 %v3427
    %v4130 = vunpack.c.h.b16 %v3427
    %v4131 = vunpack.c.l.b16 %v3428
    %v4132 = vunpack.c.h.b16 %v3428
    %v4133 = vunpack.c.l.b16 %v3429
    %v4134 = vunpack.c.h.b16 %v3429
    %v4135 = vunpack.c.l.b16 %v3430
    %v4136 = vunpack.c.h.b16 %v3430
    %v4137 = vunpack.c.l.b16 %v3431
    %v4138 = vunpack.c.h.b16 %v3431
    %v4139 = vunpack.c.l.b16 %v3432
    %v4140 = vunpack.c.h.b16 %v3432
    %v4141 = vunpack.c.l.b16 %v3433
    %v4142 = vunpack.c.h.b16 %v3433
    %v4143 = vunpack.c.l.b16 %v3434
    %v4144 = vunpack.c.h.b16 %v3434
    %v4145 = vunpack.c.l.b16 %v3435
    %v4146 = vunpack.c.h.b16 %v3435
    %v4147 = vunpack.c.l.b16 %v3436
    %v4148 = vunpack.c.h.b16 %v3436
    %v4149 = vunpack.c.l.b16 %v3437
    %v4150 = vunpack.c.h.b16 %v3437
    %v4151 = vunpack.c.l.b16 %v3438
    %v4152 = vunpack.c.h.b16 %v3438
    %v4153 = vunpack.c.l.b16 %v3439
    %v4154 = vunpack.c.h.b16 %v3439
    %v4155 = vunpack.c.l.b16 %v3440
    %v4156 = vunpack.c.h.b16 %v3440
    %v4157 = vunpack.c.l.b16 %v3441
    %v4158 = vunpack.c.h.b16 %v3441
    %v4159 = vunpack.c.l.b16 %v3442
    %v4160 = vunpack.c.h.b16 %v3442
    %v4161 = vunpack.c.l.b16 %v3443
    %v4162 = vunpack.c.h.b16 %v3443
    %v4163 = vunpack.c.l.b16 %v3444
    %v4164 = vunpack.c.h.b16 %v3444
    %v4165 = vunpack.c.l.b16 %v3445
    %v4166 = vunpack.c.h.b16 %v3445
    %v4167 = vunpack.c.l.b16 %v3446
    %v4168 = vunpack.c.h.b16 %v3446
    %v4169 = vunpack.c.l.b16 %v3447
    %v4170 = vunpack.c.h.b16 %v3447
    %v4171 = vunpack.c.l.b16 %v3448
    %v4172 = vunpack.c.h.b16 %v3448
    %v4173 = vunpack.c.l.b16 %v3449
    %v4174 = vunpack.c.h.b16 %v3449
    %v4175 = vunpack.c.l.b16 %v3450
    %v4176 = vunpack.c.h.b16 %v3450
    %v4177 = vunpack.c.l.b16 %v3451
    %v4178 = vunpack.c.h.b16 %v3451
    %v4179 = vunpack.c.l.b16 %v3452
    %v4180 = vunpack.c.h.b16 %v3452
    %v4181 = vunpack.c.l.b16 %v3453
    %v4182 = vunpack.c.h.b16 %v3453
    %v4183 = vunpack.c.l.b16 %v3454
    %v4184 = vunpack.c.h.b16 %v3454
    %v4185 = vunpack.c.l.b16 %v3455
    %v4186 = vunpack.c.h.b16 %v3455
    %v4187 = vunpack.c.l.b16 %v3456
    %v4188 = vunpack.c.h.b16 %v3456
    %v4189 = vunpack.c.l.b16 %v3457
    %v4190 = vunpack.c.h.b16 %v3457
    %v4191 = vunpack.c.l.b16 %v3458
    %v4192 = vunpack.c.h.b16 %v3458
    %v4193 = vunpack.c.l.b16 %v3459
    %v4194 = vunpack.c.h.b16 %v3459
    %v4195 = vunpack.c.l.b16 %v3460
    %v4196 = vunpack.c.h.b16 %v3460
    %v4197 = vunpack.c.l.b16 %v3461
    %v4198 = vunpack.c.h.b16 %v3461
    %v4199 = vunpack.c.l.b16 %v3462
    %v4200 = vunpack.c.h.b16 %v3462
    %v4201 = vunpack.c.l.b16 %v3463
    %v4202 = vunpack.c.h.b16 %v3463
    %v4203 = vunpack.c.l.b16 %v3464
    %v4204 = vunpack.c.h.b16 %v3464
    %v4205 = vunpack.c.l.b16 %v3465
    %v4206 = vunpack.c.h.b16 %v3465
    %v4207 = vunpack.c.l.b16 %v3466
    %v4208 = vunpack.c.h.b16 %v3466
    %v4209 = vunpack.c.l.b16 %v3467
    %v4210 = vunpack.c.h.b16 %v3467
    %v4211 = vunpack.c.l.b16 %v3468
    %v4212 = vunpack.c.h.b16 %v3468
    %v4213 = vunpack.c.l.b16 %v3469
    %v4214 = vunpack.c.h.b16 %v3469
    %v4215 = vunpack.c.l.b16 %v3470
    %v4216 = vunpack.c.h.b16 %v3470
    %v4217 = vunpack.c.l.b16 %v3471
    %v4218 = vunpack.c.h.b16 %v3471
    %v4219 = vunpack.c.l.b16 %v3472
    %v4220 = vunpack.c.h.b16 %v3472
    %v4221 = vunpack.c.l.b16 %v3473
    %v4222 = vunpack.c.h.b16 %v3473
    %v4223 = vunpack.c.l.b16 %v3474
    %v4224 = vunpack.c.h.b16 %v3474
    %v4225 = vunpack.c.l.b16 %v3475
    %v4226 = vunpack.c.h.b16 %v3475
    %v4227 = vunpack.c.l.b16 %v3476
    %v4228 = vunpack.c.h.b16 %v3476
    %v4229 = vunpack.c.l.b16 %v3477
    %v4230 = vunpack.c.h.b16 %v3477
    %v4231 = vunpack.c.l.b16 %v3478
    %v4232 = vunpack.c.h.b16 %v3478
    %v4233 = vunpack.c.l.b16 %v3479
    %v4234 = vunpack.c.h.b16 %v3479
    %v4235 = vunpack.c.l.b16 %v3480
    %v4236 = vunpack.c.h.b16 %v3480
    %v4237 = vunpack.c.l.b16 %v3481
    %v4238 = vunpack.c.h.b16 %v3481
    %v4239 = vunpack.c.l.b16 %v3482
    %v4240 = vunpack.c.h.b16 %v3482
    %v4241 = vunpack.c.l.b16 %v3483
    %v4242 = vunpack.c.h.b16 %v3483
    %v4243 = vunpack.c.l.b16 %v3484
    %v4244 = vunpack.c.h.b16 %v3484
    %v4245 = vunpack.c.l.b16 %v3485
    %v4246 = vunpack.c.h.b16 %v3485
    %v4247 = vunpack.c.l.b16 %v3486
    %v4248 = vunpack.c.h.b16 %v3486
    %v4249 = vunpack.c.l.b16 %v3487
    %v4250 = vunpack.c.h.b16 %v3487
    %v4251 = vunpack.c.l.b16 %v3488
    %v4252 = vunpack.c.h.b16 %v3488
    %v4253 = vunpack.c.l.b16 %v3489
    %v4254 = vunpack.c.h.b16 %v3489
    %v4255 = vunpack.c.l.b16 %v3490
    %v4256 = vunpack.c.h.b16 %v3490
    %v4257 = vunpack.c.l.b16 %v3491
    %v4258 = vunpack.c.h.b16 %v3491
    %v4259 = vunpack.c.l.b16 %v3492
    %v4260 = vunpack.c.h.b16 %v3492
    %v4261 = vunpack.c.l.b16 %v3493
    %v4262 = vunpack.c.h.b16 %v3493
    %v4263 = vunpack.c.l.b16 %v3494
    %v4264 = vunpack.c.h.b16 %v3494
    %v4265 = vunpack.c.l.b16 %v3495
    %v4266 = vunpack.c.h.b16 %v3495
    %v4267 = vunpack.c.l.b16 %v3496
    %v4268 = vunpack.c.h.b16 %v3496
    %v4269 = vunpack.c.l.b16 %v3497
    %v4270 = vunpack.c.h.b16 %v3497
    %v4271 = vunpack.c.l.b16 %v3498
    %v4272 = vunpack.c.h.b16 %v3498
    %v4273 = vunpack.c.l.b16 %v3499
    %v4274 = vunpack.c.h.b16 %v3499
    %v4275 = vunpack.c.l.b16 %v3500
    %v4276 = vunpack.c.h.b16 %v3500
    %v4277 = vunpack.c.l.b16 %v3501
    %v4278 = vunpack.c.h.b16 %v3501
    %v4279 = vunpack.c.l.b16 %v3502
    %v4280 = vunpack.c.h.b16 %v3502
    %v4281 = vunpack.c.l.b16 %v3503
    %v4282 = vunpack.c.h.b16 %v3503
    %v4283 = vunpack.c.l.b16 %v3504
    %v4284 = vunpack.c.h.b16 %v3504
    %v4285 = vunpack.c.l.b16 %v3505
    %v4286 = vunpack.c.h.b16 %v3505
    %v4287 = vunpack.c.l.b16 %v3506
    %v4288 = vunpack.c.h.b16 %v3506
    %v4289 = vunpack.c.l.b16 %v3507
    %v4290 = vunpack.c.h.b16 %v3507
    %v4291 = vunpack.c.l.b16 %v3508
    %v4292 = vunpack.c.h.b16 %v3508
    %v4293 = vunpack.c.l.b16 %v3509
    %v4294 = vunpack.c.h.b16 %v3509
    %v4295 = vunpack.c.l.b16 %v3510
    %v4296 = vunpack.c.h.b16 %v3510
    %v4297 = vunpack.c.l.b16 %v3511
    %v4298 = vunpack.c.h.b16 %v3511
    %v4299 = vunpack.c.l.b16 %v3512
    %v4300 = vunpack.c.h.b16 %v3512
    %v4301 = vunpack.c.l.b16 %v3513
    %v4302 = vunpack.c.h.b16 %v3513
    %v4303 = vunpack.c.l.b16 %v3514
    %v4304 = vunpack.c.h.b16 %v3514
    %v4305 = vpack.c.b16 %v3797, %v3793
    %v4306 = vpack.c.b16 %v3798, %v3794
    %v4307 = vpack.c.b16 %v3799, %v3795
    %v4308 = vpack.c.b16 %v3800, %v3796
    %v4309 = vpack.c.b16 %v3805, %v3801
    %v4310 = vpack.c.b16 %v3806, %v3802
    %v4311 = vpack.c.b16 %v3807, %v3803
    %v4312 = vpack.c.b16 %v3808, %v3804
    %v4313 = vpack.c.b16 %v3813, %v3809
    %v4314 = vpack.c.b16 %v3814, %v3810
    %v4315 = vpack.c.b16 %v3815, %v3811
    %v4316 = vpack.c.b16 %v3816, %v3812
    %v4317 = vpack.c.b16 %v3821, %v3817
    %v4318 = vpack.c.b16 %v3822, %v3818
    %v4319 = vpack.c.b16 %v3823, %v3819
    %v4320 = vpack.c.b16 %v3824, %v3820
    %v4321 = vpack.c.b16 %v3829, %v3825
    %v4322 = vpack.c.b16 %v3830, %v3826
    %v4323 = vpack.c.b16 %v3831, %v3827
    %v4324 = vpack.c.b16 %v3832, %v3828
    %v4325 = vpack.c.b16 %v3837, %v3833
    %v4326 = vpack.c.b16 %v3838, %v3834
    %v4327 = vpack.c.b16 %v3839, %v3835
    %v4328 = vpack.c.b16 %v3840, %v3836
    %v4329 = vpack.c.b16 %v3845, %v3841
    %v4330 = vpack.c.b16 %v3846, %v3842
    %v4331 = vpack.c.b16 %v3847, %v3843
    %v4332 = vpack.c.b16 %v3848, %v3844
    %v4333 = vpack.c.b16 %v3853, %v3849
    %v4334 = vpack.c.b16 %v3854, %v3850
    %v4335 = vpack.c.b16 %v3855, %v3851
    %v4336 = vpack.c.b16 %v3856, %v3852
    %v4337 = vpack.c.b16 %v3861, %v3857
    %v4338 = vpack.c.b16 %v3862, %v3858
    %v4339 = vpack.c.b16 %v3863, %v3859
    %v4340 = vpack.c.b16 %v3864, %v3860
    %v4341 = vpack.c.b16 %v3869, %v3865
    %v4342 = vpack.c.b16 %v3870, %v3866
    %v4343 = vpack.c.b16 %v3871, %v3867
    %v4344 = vpack.c.b16 %v3872, %v3868
    %v4345 = vpack.c.b16 %v3877, %v3873
    %v4346 = vpack.c.b16 %v3878, %v3874
    %v4347 = vpack.c.b16 %v3879, %v3875
    %v4348 = vpack.c.b16 %v3880, %v3876
    %v4349 = vpack.c.b16 %v3885, %v3881
    %v4350 = vpack.c.b16 %v3886, %v3882
    %v4351 = vpack.c.b16 %v3887, %v3883
    %v4352 = vpack.c.b16 %v3888, %v3884
    %v4353 = vpack.c.b16 %v3893, %v3889
    %v4354 = vpack.c.b16 %v3894, %v3890
    %v4355 = vpack.c.b16 %v3895, %v3891
    %v4356 = vpack.c.b16 %v3896, %v3892
    %v4357 = vpack.c.b16 %v3901, %v3897
    %v4358 = vpack.c.b16 %v3902, %v3898
    %v4359 = vpack.c.b16 %v3903, %v3899
    %v4360 = vpack.c.b16 %v3904, %v3900
    %v4361 = vpack.c.b16 %v3909, %v3905
    %v4362 = vpack.c.b16 %v3910, %v3906
    %v4363 = vpack.c.b16 %v3911, %v3907
    %v4364 = vpack.c.b16 %v3912, %v3908
    %v4365 = vpack.c.b16 %v3917, %v3913
    %v4366 = vpack.c.b16 %v3918, %v3914
    %v4367 = vpack.c.b16 %v3919, %v3915
    %v4368 = vpack.c.b16 %v3920, %v3916
    %v4369 = vpack.c.b16 %v3925, %v3921
    %v4370 = vpack.c.b16 %v3926, %v3922
    %v4371 = vpack.c.b16 %v3927, %v3923
    %v4372 = vpack.c.b16 %v3928, %v3924
    %v4373 = vpack.c.b16 %v3933, %v3929
    %v4374 = vpack.c.b16 %v3934, %v3930
    %v4375 = vpack.c.b16 %v3935, %v3931
    %v4376 = vpack.c.b16 %v3936, %v3932
    %v4377 = vpack.c.b16 %v3941, %v3937
    %v4378 = vpack.c.b16 %v3942, %v3938
    %v4379 = vpack.c.b16 %v3943, %v3939
    %v4380 = vpack.c.b16 %v3944, %v3940
    %v4381 = vpack.c.b16 %v3949, %v3945
    %v4382 = vpack.c.b16 %v3950, %v3946
    %v4383 = vpack.c.b16 %v3951, %v3947
    %v4384 = vpack.c.b16 %v3952, %v3948
    %v4385 = vpack.c.b16 %v3957, %v3953
    %v4386 = vpack.c.b16 %v3958, %v3954
    %v4387 = vpack.c.b16 %v3959, %v3955
    %v4388 = vpack.c.b16 %v3960, %v3956
    %v4389 = vpack.c.b16 %v3965, %v3961
    %v4390 = vpack.c.b16 %v3966, %v3962
    %v4391 = vpack.c.b16 %v3967, %v3963
    %v4392 = vpack.c.b16 %v3968, %v3964
    %v4393 = vpack.c.b16 %v3973, %v3969
    %v4394 = vpack.c.b16 %v3974, %v3970
    %v4395 = vpack.c.b16 %v3975, %v3971
    %v4396 = vpack.c.b16 %v3976, %v3972
    %v4397 = vpack.c.b16 %v3981, %v3977
    %v4398 = vpack.c.b16 %v3982, %v3978
    %v4399 = vpack.c.b16 %v3983, %v3979
    %v4400 = vpack.c.b16 %v3984, %v3980
    %v4401 = vpack.c.b16 %v3989, %v3985
    %v4402 = vpack.c.b16 %v3990, %v3986
    %v4403 = vpack.c.b16 %v3991, %v3987
    %v4404 = vpack.c.b16 %v3992, %v3988
    %v4405 = vpack.c.b16 %v3997, %v3993
    %v4406 = vpack.c.b16 %v3998, %v3994
    %v4407 = vpack.c.b16 %v3999, %v3995
    %v4408 = vpack.c.b16 %v4000, %v3996
    %v4409 = vpack.c.b16 %v4005, %v4001
    %v4410 = vpack.c.b16 %v4006, %v4002
    %v4411 = vpack.c.b16 %v4007, %v4003
    %v4412 = vpack.c.b16 %v4008, %v4004
    %v4413 = vpack.c.b16 %v4013, %v4009
    %v4414 = vpack.c.b16 %v4014, %v4010
    %v4415 = vpack.c.b16 %v4015, %v4011
    %v4416 = vpack.c.b16 %v4016, %v4012
    %v4417 = vpack.c.b16 %v4021, %v4017
    %v4418 = vpack.c.b16 %v4022, %v4018
    %v4419 = vpack.c.b16 %v4023, %v4019
    %v4420 = vpack.c.b16 %v4024, %v4020
    %v4421 = vpack.c.b16 %v4029, %v4025
    %v4422 = vpack.c.b16 %v4030, %v4026
    %v4423 = vpack.c.b16 %v4031, %v4027
    %v4424 = vpack.c.b16 %v4032, %v4028
    %v4425 = vpack.c.b16 %v4037, %v4033
    %v4426 = vpack.c.b16 %v4038, %v4034
    %v4427 = vpack.c.b16 %v4039, %v4035
    %v4428 = vpack.c.b16 %v4040, %v4036
    %v4429 = vpack.c.b16 %v4045, %v4041
    %v4430 = vpack.c.b16 %v4046, %v4042
    %v4431 = vpack.c.b16 %v4047, %v4043
    %v4432 = vpack.c.b16 %v4048, %v4044
    %v4433 = vpack.c.b16 %v4053, %v4049
    %v4434 = vpack.c.b16 %v4054, %v4050
    %v4435 = vpack.c.b16 %v4055, %v4051
    %v4436 = vpack.c.b16 %v4056, %v4052
    %v4437 = vpack.c.b16 %v4061, %v4057
    %v4438 = vpack.c.b16 %v4062, %v4058
    %v4439 = vpack.c.b16 %v4063, %v4059
    %v4440 = vpack.c.b16 %v4064, %v4060
    %v4441 = vpack.c.b16 %v4069, %v4065
    %v4442 = vpack.c.b16 %v4070, %v4066
    %v4443 = vpack.c.b16 %v4071, %v4067
    %v4444 = vpack.c.b16 %v4072, %v4068
    %v4445 = vpack.c.b16 %v4077, %v4073
    %v4446 = vpack.c.b16 %v4078, %v4074
    %v4447 = vpack.c.b16 %v4079, %v4075
    %v4448 = vpack.c.b16 %v4080, %v4076
    %v4449 = vpack.c.b16 %v4085, %v4081
    %v4450 = vpack.c.b16 %v4086, %v4082
    %v4451 = vpack.c.b16 %v4087, %v4083
    %v4452 = vpack.c.b16 %v4088, %v4084
    %v4453 = vpack.c.b16 %v4093, %v4089
    %v4454 = vpack.c.b16 %v4094, %v4090
    %v4455 = vpack.c.b16 %v4095, %v4091
    %v4456 = vpack.c.b16 %v4096, %v4092
    %v4457 = vpack.c.b16 %v4101, %v4097
    %v4458 = vpack.c.b16 %v4102, %v4098
    %v4459 = vpack.c.b16 %v4103, %v4099
    %v4460 = vpack.c.b16 %v4104, %v4100
    %v4461 = vpack.c.b16 %v4109, %v4105
    %v4462 = vpack.c.b16 %v4110, %v4106
    %v4463 = vpack.c.b16 %v4111, %v4107
    %v4464 = vpack.c.b16 %v4112, %v4108
    %v4465 = vpack.c.b16 %v4117, %v4113
    %v4466 = vpack.c.b16 %v4118, %v4114
    %v4467 = vpack.c.b16 %v4119, %v4115
    %v4468 = vpack.c.b16 %v4120, %v4116
    %v4469 = vpack.c.b16 %v4125, %v4121
    %v4470 = vpack.c.b16 %v4126, %v4122
    %v4471 = vpack.c.b16 %v4127, %v4123
    %v4472 = vpack.c.b16 %v4128, %v4124
    %v4473 = vpack.c.b16 %v4133, %v4129
    %v4474 = vpack.c.b16 %v4134, %v4130
    %v4475 = vpack.c.b16 %v4135, %v4131
    %v4476 = vpack.c.b16 %v4136, %v4132
    %v4477 = vpack.c.b16 %v4141, %v4137
    %v4478 = vpack.c.b16 %v4142, %v4138
    %v4479 = vpack.c.b16 %v4143, %v4139
    %v4480 = vpack.c.b16 %v4144, %v4140
    %v4481 = vpack.c.b16 %v4149, %v4145
    %v4482 = vpack.c.b16 %v4150, %v4146
    %v4483 = vpack.c.b16 %v4151, %v4147
    %v4484 = vpack.c.b16 %v4152, %v4148
    %v4485 = vpack.c.b16 %v4157, %v4153
    %v4486 = vpack.c.b16 %v4158, %v4154
    %v4487 = vpack.c.b16 %v4159, %v4155
    %v4488 = vpack.c.b16 %v4160, %v4156
    %v4489 = vpack.c.b16 %v4165, %v4161
    %v4490 = vpack.c.b16 %v4166, %v4162
    %v4491 = vpack.c.b16 %v4167, %v4163
    %v4492 = vpack.c.b16 %v4168, %v4164
    %v4493 = vpack.c.b16 %v4173, %v4169
    %v4494 = vpack.c.b16 %v4174, %v4170
    %v4495 = vpack.c.b16 %v4175, %v4171
    %v4496 = vpack.c.b16 %v4176, %v4172
    %v4497 = vpack.c.b16 %v4181, %v4177
    %v4498 = vpack.c.b16 %v4182, %v4178
    %v4499 = vpack.c.b16 %v4183, %v4179
    %v4500 = vpack.c.b16 %v4184, %v4180
    %v4501 = vpack.c.b16 %v4189, %v4185
    %v4502 = vpack.c.b16 %v4190, %v4186
    %v4503 = vpack.c.b16 %v4191, %v4187
    %v4504 = vpack.c.b16 %v4192, %v4188
    %v4505 = vpack.c.b16 %v4197, %v4193
    %v4506 = vpack.c.b16 %v4198, %v4194
    %v4507 = vpack.c.b16 %v4199, %v4195
    %v4508 = vpack.c.b16 %v4200, %v4196
    %v4509 = vpack.c.b16 %v4205, %v4201
    %v4510 = vpack.c.b16 %v4206, %v4202
    %v4511 = vpack.c.b16 %v4207, %v4203
    %v4512 = vpack.c.b16 %v4208, %v4204
    %v4513 = vpack.c.b16 %v4213, %v4209
    %v4514 = vpack.c.b16 %v4214, %v4210
    %v4515 = vpack.c.b16 %v4215, %v4211
    %v4516 = vpack.c.b16 %v4216, %v4212
    %v4517 = vpack.c.b16 %v4221, %v4217
    %v4518 = vpack.c.b16 %v4222, %v4218
    %v4519 = vpack.c.b16 %v4223, %v4219
    %v4520 = vpack.c.b16 %v4224, %v4220
    %v4521 = vpack.c.b16 %v4229, %v4225
    %v4522 = vpack.c.b16 %v4230, %v4226
    %v4523 = vpack.c.b16 %v4231, %v4227
    %v4524 = vpack.c.b16 %v4232, %v4228
    %v4525 = vpack.c.b16 %v4237, %v4233
    %v4526 = vpack.c.b16 %v4238, %v4234
    %v4527 = vpack.c.b16 %v4239, %v4235
    %v4528 = vpack.c.b16 %v4240, %v4236
    %v4529 = vpack.c.b16 %v4245, %v4241
    %v4530 = vpack.c.b16 %v4246, %v4242
    %v4531 = vpack.c.b16 %v4247, %v4243
    %v4532 = vpack.c.b16 %v4248, %v4244
    %v4533 = vpack.c.b16 %v4253, %v4249
    %v4534 = vpack.c.b16 %v4254, %v4250
    %v4535 = vpack.c.b16 %v4255, %v4251
    %v4536 = vpack.c.b16 %v4256, %v4252
    %v4537 = vpack.c.b16 %v4261, %v4257
    %v4538 = vpack.c.b16 %v4262, %v4258
    %v4539 = vpack.c.b16 %v4263, %v4259
    %v4540 = vpack.c.b16 %v4264, %v4260
    %v4541 = vpack.c.b16 %v4269, %v4265
    %v4542 = vpack.c.b16 %v4270, %v4266
    %v4543 = vpack.c.b16 %v4271, %v4267
    %v4544 = vpack.c.b16 %v4272, %v4268
    %v4545 = vpack.c.b16 %v4277, %v4273
    %v4546 = vpack.c.b16 %v4278, %v4274
    %v4547 = vpack.c.b16 %v4279, %v4275
    %v4548 = vpack.c.b16 %v4280, %v4276
    %v4549 = vpack.c.b16 %v4285, %v4281
    %v4550 = vpack.c.b16 %v4286, %v4282
    %v4551 = vpack.c.b16 %v4287, %v4283
    %v4552 = vpack.c.b16 %v4288, %v4284
    %v4553 = vpack.c.b16 %v4293, %v4289
    %v4554 = vpack.c.b16 %v4294, %v4290
    %v4555 = vpack.c.b16 %v4295, %v4291
    %v4556 = vpack.c.b16 %v4296, %v4292
    %v4557 = vpack.c.b16 %v4301, %v4297
    %v4558 = vpack.c.b16 %v4302, %v4298
    %v4559 = vpack.c.b16 %v4303, %v4299
    %v4560 = vpack.c.b16 %v4304, %v4300
    %4817 = vmatprep.subr.bf16.mxu0 %v4334
    %4818 = vmatpush1.bf16.msra.mxu0 %v4333
    %4819 = vmatprep.subr.bf16.mxu0 %v4330
    %4820 = vmatpush1.bf16.msra.mxu0 %v4329
    %4821 = vmatprep.subr.bf16.mxu0 %v4326
    %4822 = vmatpush1.bf16.msra.mxu0 %v4325
    %4823 = vmatprep.subr.bf16.mxu0 %v4322
    %4824 = vmatpush1.bf16.msra.mxu0 %v4321
    %4825 = vmatprep.subr.bf16.mxu0 %v4318
    %4826 = vmatpush1.bf16.msra.mxu0 %v4317
    %4827 = vmatprep.subr.bf16.mxu0 %v4314
    %4828 = vmatpush1.bf16.msra.mxu0 %v4313
    %4829 = vmatprep.subr.bf16.mxu0 %v4310
    %4830 = vmatpush1.bf16.msra.mxu0 %v4309
    %4831 = vmatprep.subr.bf16.mxu0 %v4306
    %4832 = vmatpush1.bf16.msra.mxu0 %v4305
    %4833 = vmatprep.subr.bf16.mxu0 %v4366
    %4834 = vmatpush2.bf16.msra.mxu0 %v4365
    %4835 = vmatprep.subr.bf16.mxu0 %v4362
    %4836 = vmatpush2.bf16.msra.mxu0 %v4361
    %4837 = vmatprep.subr.bf16.mxu0 %v4358
    %4838 = vmatpush2.bf16.msra.mxu0 %v4357
    %4839 = vmatprep.subr.bf16.mxu0 %v4354
    %4840 = vmatpush2.bf16.msra.mxu0 %v4353
    %4841 = vmatprep.subr.bf16.mxu0 %v4350
    %4842 = vmatpush2.bf16.msra.mxu0 %v4349
    %4843 = vmatprep.subr.bf16.mxu0 %v4346
    %4844 = vmatpush2.bf16.msra.mxu0 %v4345
    %4845 = vmatprep.subr.bf16.mxu0 %v4342
    %4846 = vmatpush2.bf16.msra.mxu0 %v4341
    %4847 = vmatprep.subr.bf16.mxu0 %v4338
    %4848 = vmatpush2.bf16.msra.mxu0 %v4337
    %4849 = vmatprep.mubr.bf16.mxu0 %v3252
    %4850 = vmatmul.mubr.bf16.gmra.mxu0 %v3251
    %v4851 = vpop.f32.mrf.mxu0
    %v4852 = vadd.f32 %v3520, %v4851
    %v4853 = vpop.f32.mrf.mxu0
    %v4854 = vadd.f32 %v3524, %v4853
    %v4855 = vpop.f32.mrf.mxu0
    %v4856 = vpop.f32.mrf.mxu0
    %4857 = vdwg.mxu0
    %4858 = vmatprep.subr.bf16.mxu0 %v4398
    %4859 = vmatpush1.bf16.msra.mxu0 %v4397
    %4860 = vmatprep.subr.bf16.mxu0 %v4394
    %4861 = vmatpush1.bf16.msra.mxu0 %v4393
    %4862 = vmatprep.subr.bf16.mxu0 %v4390
    %4863 = vmatpush1.bf16.msra.mxu0 %v4389
    %4864 = vmatprep.subr.bf16.mxu0 %v4386
    %4865 = vmatpush1.bf16.msra.mxu0 %v4385
    %4866 = vmatprep.subr.bf16.mxu0 %v4382
    %4867 = vmatpush1.bf16.msra.mxu0 %v4381
    %4868 = vmatprep.subr.bf16.mxu0 %v4378
    %4869 = vmatpush1.bf16.msra.mxu0 %v4377
    %4870 = vmatprep.subr.bf16.mxu0 %v4374
    %4871 = vmatpush1.bf16.msra.mxu0 %v4373
    %4872 = vmatprep.subr.bf16.mxu0 %v4370
    %4873 = vmatpush1.bf16.msra.mxu0 %v4369
    %4874 = vmatprep.subr.bf16.mxu0 %v4430
    %4875 = vmatpush2.bf16.msra.mxu0 %v4429
    %4876 = vmatprep.subr.bf16.mxu0 %v4426
    %4877 = vmatpush2.bf16.msra.mxu0 %v4425
    %4878 = vmatprep.subr.bf16.mxu0 %v4422
    %4879 = vmatpush2.bf16.msra.mxu0 %v4421
    %4880 = vmatprep.subr.bf16.mxu0 %v4418
    %4881 = vmatpush2.bf16.msra.mxu0 %v4417
    %4882 = vmatprep.subr.bf16.mxu0 %v4414
    %4883 = vmatpush2.bf16.msra.mxu0 %v4413
    %4884 = vmatprep.subr.bf16.mxu0 %v4410
    %4885 = vmatpush2.bf16.msra.mxu0 %v4409
    %4886 = vmatprep.subr.bf16.mxu0 %v4406
    %4887 = vmatpush2.bf16.msra.mxu0 %v4405
    %4888 = vmatprep.subr.bf16.mxu0 %v4402
    %4889 = vmatpush2.bf16.msra.mxu0 %v4401
    %4890 = vmatprep.mubr.bf16.mxu0 %v3254
    %4891 = vmatmul.mubr.bf16.gmra.mxu0 %v3253
    %v4892 = vpop.f32.mrf.mxu0
    %v4893 = vadd.f32 %v4852, %v4892
    %v4894 = vpop.f32.mrf.mxu0
    %v4895 = vadd.f32 %v4854, %v4894
    %v4896 = vpop.f32.mrf.mxu0
    %v4897 = vpop.f32.mrf.mxu0
    %4898 = vdwg.mxu0
    %4899 = vmatprep.subr.bf16.mxu0 %v4462
    %4900 = vmatpush1.bf16.msra.mxu0 %v4461
    %4901 = vmatprep.subr.bf16.mxu0 %v4458
    %4902 = vmatpush1.bf16.msra.mxu0 %v4457
    %4903 = vmatprep.subr.bf16.mxu0 %v4454
    %4904 = vmatpush1.bf16.msra.mxu0 %v4453
    %4905 = vmatprep.subr.bf16.mxu0 %v4450
    %4906 = vmatpush1.bf16.msra.mxu0 %v4449
    %4907 = vmatprep.subr.bf16.mxu0 %v4446
    %4908 = vmatpush1.bf16.msra.mxu0 %v4445
    %4909 = vmatprep.subr.bf16.mxu0 %v4442
    %4910 = vmatpush1.bf16.msra.mxu0 %v4441
    %4911 = vmatprep.subr.bf16.mxu0 %v4438
    %4912 = vmatpush1.bf16.msra.mxu0 %v4437
    %4913 = vmatprep.subr.bf16.mxu0 %v4434
    %4914 = vmatpush1.bf16.msra.mxu0 %v4433
    %4915 = vmatprep.subr.bf16.mxu0 %v4494
    %4916 = vmatpush2.bf16.msra.mxu0 %v4493
    %4917 = vmatprep.subr.bf16.mxu0 %v4490
    %4918 = vmatpush2.bf16.msra.mxu0 %v4489
    %4919 = vmatprep.subr.bf16.mxu0 %v4486
    %4920 = vmatpush2.bf16.msra.mxu0 %v4485
    %4921 = vmatprep.subr.bf16.mxu0 %v4482
    %4922 = vmatpush2.bf16.msra.mxu0 %v4481
    %4923 = vmatprep.subr.bf16.mxu0 %v4478
    %4924 = vmatpush2.bf16.msra.mxu0 %v4477
    %4925 = vmatprep.subr.bf16.mxu0 %v4474
    %4926 = vmatpush2.bf16.msra.mxu0 %v4473
    %4927 = vmatprep.subr.bf16.mxu0 %v4470
    %4928 = vmatpush2.bf16.msra.mxu0 %v4469
    %4929 = vmatprep.subr.bf16.mxu0 %v4466
    %4930 = vmatpush2.bf16.msra.mxu0 %v4465
    %4931 = vmatprep.mubr.bf16.mxu0 %v3256
    %4932 = vmatmul.mubr.bf16.gmra.mxu0 %v3255
    %v4933 = vpop.f32.mrf.mxu0
    %v4934 = vadd.f32 %v4893, %v4933
    %v4935 = vpop.f32.mrf.mxu0
    %v4936 = vadd.f32 %v4895, %v4935
    %v4937 = vpop.f32.mrf.mxu0
    %v4938 = vpop.f32.mrf.mxu0
    %4939 = vdwg.mxu0
    %4940 = vmatprep.subr.bf16.mxu0 %v4526
    %4941 = vmatpush1.bf16.msra.mxu0 %v4525
    %4942 = vmatprep.subr.bf16.mxu0 %v4522
    %4943 = vmatpush1.bf16.msra.mxu0 %v4521
    %4944 = vmatprep.subr.bf16.mxu0 %v4518
    %4945 = vmatpush1.bf16.msra.mxu0 %v4517
    %4946 = vmatprep.subr.bf16.mxu0 %v4514
    %4947 = vmatpush1.bf16.msra.mxu0 %v4513
    %4948 = vmatprep.subr.bf16.mxu0 %v4510
    %4949 = vmatpush1.bf16.msra.mxu0 %v4509
    %4950 = vmatprep.subr.bf16.mxu0 %v4506
    %4951 = vmatpush1.bf16.msra.mxu0 %v4505
    %4952 = vmatprep.subr.bf16.mxu0 %v4502
    %4953 = vmatpush1.bf16.msra.mxu0 %v4501
    %4954 = vmatprep.subr.bf16.mxu0 %v4498
    %4955 = vmatpush1.bf16.msra.mxu0 %v4497
    %4956 = vmatprep.subr.bf16.mxu0 %v4558
    %4957 = vmatpush2.bf16.msra.mxu0 %v4557
    %4958 = vmatprep.subr.bf16.mxu0 %v4554
    %4959 = vmatpush2.bf16.msra.mxu0 %v4553
    %4960 = vmatprep.subr.bf16.mxu0 %v4550
    %4961 = vmatpush2.bf16.msra.mxu0 %v4549
    %4962 = vmatprep.subr.bf16.mxu0 %v4546
    %4963 = vmatpush2.bf16.msra.mxu0 %v4545
    %4964 = vmatprep.subr.bf16.mxu0 %v4542
    %4965 = vmatpush2.bf16.msra.mxu0 %v4541
    %4966 = vmatprep.subr.bf16.mxu0 %v4538
    %4967 = vmatpush2.bf16.msra.mxu0 %v4537
    %4968 = vmatprep.subr.bf16.mxu0 %v4534
    %4969 = vmatpush2.bf16.msra.mxu0 %v4533
    %4970 = vmatprep.subr.bf16.mxu0 %v4530
    %4971 = vmatpush2.bf16.msra.mxu0 %v4529
    %4972 = vmatprep.mubr.bf16.mxu0 %v3258
    %4973 = vmatmul.mubr.bf16.gmra.mxu0 %v3257
    %v4974 = vpop.f32.mrf.mxu0
    %v4975 = vadd.f32 %v4934, %v4974
    %v4976 = vpop.f32.mrf.mxu0
    %v4977 = vadd.f32 %v4936, %v4976
    %v4978 = vpop.f32.mrf.mxu0
    %v4979 = vpop.f32.mrf.mxu0
    %4980 = vdwg.mxu0
    %4981 = vmatprep.subr.bf16.mxu0 %v4336
    %4982 = vmatpush1.bf16.msra.mxu0 %v4335
    %4983 = vmatprep.subr.bf16.mxu0 %v4332
    %4984 = vmatpush1.bf16.msra.mxu0 %v4331
    %4985 = vmatprep.subr.bf16.mxu0 %v4328
    %4986 = vmatpush1.bf16.msra.mxu0 %v4327
    %4987 = vmatprep.subr.bf16.mxu0 %v4324
    %4988 = vmatpush1.bf16.msra.mxu0 %v4323
    %4989 = vmatprep.subr.bf16.mxu0 %v4320
    %4990 = vmatpush1.bf16.msra.mxu0 %v4319
    %4991 = vmatprep.subr.bf16.mxu0 %v4316
    %4992 = vmatpush1.bf16.msra.mxu0 %v4315
    %4993 = vmatprep.subr.bf16.mxu0 %v4312
    %4994 = vmatpush1.bf16.msra.mxu0 %v4311
    %4995 = vmatprep.subr.bf16.mxu0 %v4308
    %4996 = vmatpush1.bf16.msra.mxu0 %v4307
    %4997 = vmatprep.subr.bf16.mxu0 %v4368
    %4998 = vmatpush2.bf16.msra.mxu0 %v4367
    %4999 = vmatprep.subr.bf16.mxu0 %v4364
    %5000 = vmatpush2.bf16.msra.mxu0 %v4363
    %5001 = vmatprep.subr.bf16.mxu0 %v4360
    %5002 = vmatpush2.bf16.msra.mxu0 %v4359
    %5003 = vmatprep.subr.bf16.mxu0 %v4356
    %5004 = vmatpush2.bf16.msra.mxu0 %v4355
    %5005 = vmatprep.subr.bf16.mxu0 %v4352
    %5006 = vmatpush2.bf16.msra.mxu0 %v4351
    %5007 = vmatprep.subr.bf16.mxu0 %v4348
    %5008 = vmatpush2.bf16.msra.mxu0 %v4347
    %5009 = vmatprep.subr.bf16.mxu0 %v4344
    %5010 = vmatpush2.bf16.msra.mxu0 %v4343
    %5011 = vmatprep.subr.bf16.mxu0 %v4340
    %5012 = vmatpush2.bf16.msra.mxu0 %v4339
    %5013 = vmatprep.mubr.bf16.mxu0 %v3252
    %5014 = vmatmul.mubr.bf16.gmra.mxu0 %v3251
    %v5015 = vpop.f32.mrf.mxu0
    %v5016 = vadd.f32 %v3528, %v5015
    %v5017 = vpop.f32.mrf.mxu0
    %v5018 = vadd.f32 %v3532, %v5017
    %v5019 = vpop.f32.mrf.mxu0
    %v5020 = vpop.f32.mrf.mxu0
    %5021 = vdwg.mxu0
    %5022 = vmatprep.subr.bf16.mxu0 %v4400
    %5023 = vmatpush1.bf16.msra.mxu0 %v4399
    %5024 = vmatprep.subr.bf16.mxu0 %v4396
    %5025 = vmatpush1.bf16.msra.mxu0 %v4395
    %5026 = vmatprep.subr.bf16.mxu0 %v4392
    %5027 = vmatpush1.bf16.msra.mxu0 %v4391
    %5028 = vmatprep.subr.bf16.mxu0 %v4388
    %5029 = vmatpush1.bf16.msra.mxu0 %v4387
    %5030 = vmatprep.subr.bf16.mxu0 %v4384
    %5031 = vmatpush1.bf16.msra.mxu0 %v4383
    %5032 = vmatprep.subr.bf16.mxu0 %v4380
    %5033 = vmatpush1.bf16.msra.mxu0 %v4379
    %5034 = vmatprep.subr.bf16.mxu0 %v4376
    %5035 = vmatpush1.bf16.msra.mxu0 %v4375
    %5036 = vmatprep.subr.bf16.mxu0 %v4372
    %5037 = vmatpush1.bf16.msra.mxu0 %v4371
    %5038 = vmatprep.subr.bf16.mxu0 %v4432
    %5039 = vmatpush2.bf16.msra.mxu0 %v4431
    %5040 = vmatprep.subr.bf16.mxu0 %v4428
    %5041 = vmatpush2.bf16.msra.mxu0 %v4427
    %5042 = vmatprep.subr.bf16.mxu0 %v4424
    %5043 = vmatpush2.bf16.msra.mxu0 %v4423
    %5044 = vmatprep.subr.bf16.mxu0 %v4420
    %5045 = vmatpush2.bf16.msra.mxu0 %v4419
    %5046 = vmatprep.subr.bf16.mxu0 %v4416
    %5047 = vmatpush2.bf16.msra.mxu0 %v4415
    %5048 = vmatprep.subr.bf16.mxu0 %v4412
    %5049 = vmatpush2.bf16.msra.mxu0 %v4411
    %5050 = vmatprep.subr.bf16.mxu0 %v4408
    %5051 = vmatpush2.bf16.msra.mxu0 %v4407
    %5052 = vmatprep.subr.bf16.mxu0 %v4404
    %5053 = vmatpush2.bf16.msra.mxu0 %v4403
    %5054 = vmatprep.mubr.bf16.mxu0 %v3254
    %5055 = vmatmul.mubr.bf16.gmra.mxu0 %v3253
    %v5056 = vpop.f32.mrf.mxu0
    %v5057 = vadd.f32 %v5016, %v5056
    %v5058 = vpop.f32.mrf.mxu0
    %v5059 = vadd.f32 %v5018, %v5058
    %v5060 = vpop.f32.mrf.mxu0
    %v5061 = vpop.f32.mrf.mxu0
    %5062 = vdwg.mxu0
    %5063 = vmatprep.subr.bf16.mxu0 %v4464
    %5064 = vmatpush1.bf16.msra.mxu0 %v4463
    %5065 = vmatprep.subr.bf16.mxu0 %v4460
    %5066 = vmatpush1.bf16.msra.mxu0 %v4459
    %5067 = vmatprep.subr.bf16.mxu0 %v4456
    %5068 = vmatpush1.bf16.msra.mxu0 %v4455
    %5069 = vmatprep.subr.bf16.mxu0 %v4452
    %5070 = vmatpush1.bf16.msra.mxu0 %v4451
    %5071 = vmatprep.subr.bf16.mxu0 %v4448
    %5072 = vmatpush1.bf16.msra.mxu0 %v4447
    %5073 = vmatprep.subr.bf16.mxu0 %v4444
    %5074 = vmatpush1.bf16.msra.mxu0 %v4443
    %5075 = vmatprep.subr.bf16.mxu0 %v4440
    %5076 = vmatpush1.bf16.msra.mxu0 %v4439
    %5077 = vmatprep.subr.bf16.mxu0 %v4436
    %5078 = vmatpush1.bf16.msra.mxu0 %v4435
    %5079 = vmatprep.subr.bf16.mxu0 %v4496
    %5080 = vmatpush2.bf16.msra.mxu0 %v4495
    %5081 = vmatprep.subr.bf16.mxu0 %v4492
    %5082 = vmatpush2.bf16.msra.mxu0 %v4491
    %5083 = vmatprep.subr.bf16.mxu0 %v4488
    %5084 = vmatpush2.bf16.msra.mxu0 %v4487
    %5085 = vmatprep.subr.bf16.mxu0 %v4484
    %5086 = vmatpush2.bf16.msra.mxu0 %v4483
    %5087 = vmatprep.subr.bf16.mxu0 %v4480
    %5088 = vmatpush2.bf16.msra.mxu0 %v4479
    %5089 = vmatprep.subr.bf16.mxu0 %v4476
    %5090 = vmatpush2.bf16.msra.mxu0 %v4475
    %5091 = vmatprep.subr.bf16.mxu0 %v4472
    %5092 = vmatpush2.bf16.msra.mxu0 %v4471
    %5093 = vmatprep.subr.bf16.mxu0 %v4468
    %5094 = vmatpush2.bf16.msra.mxu0 %v4467
    %5095 = vmatprep.mubr.bf16.mxu0 %v3256
    %5096 = vmatmul.mubr.bf16.gmra.mxu0 %v3255
    %v5097 = vpop.f32.mrf.mxu0
    %v5098 = vadd.f32 %v5057, %v5097
    %v5099 = vpop.f32.mrf.mxu0
    %v5100 = vadd.f32 %v5059, %v5099
    %v5101 = vpop.f32.mrf.mxu0
    %v5102 = vpop.f32.mrf.mxu0
    %5103 = vdwg.mxu0
    %5104 = vmatprep.subr.bf16.mxu0 %v4528
    %5105 = vmatpush1.bf16.msra.mxu0 %v4527
    %5106 = vmatprep.subr.bf16.mxu0 %v4524
    %5107 = vmatpush1.bf16.msra.mxu0 %v4523
    %5108 = vmatprep.subr.bf16.mxu0 %v4520
    %5109 = vmatpush1.bf16.msra.mxu0 %v4519
    %5110 = vmatprep.subr.bf16.mxu0 %v4516
    %5111 = vmatpush1.bf16.msra.mxu0 %v4515
    %5112 = vmatprep.subr.bf16.mxu0 %v4512
    %5113 = vmatpush1.bf16.msra.mxu0 %v4511
    %5114 = vmatprep.subr.bf16.mxu0 %v4508
    %5115 = vmatpush1.bf16.msra.mxu0 %v4507
    %5116 = vmatprep.subr.bf16.mxu0 %v4504
    %5117 = vmatpush1.bf16.msra.mxu0 %v4503
    %5118 = vmatprep.subr.bf16.mxu0 %v4500
    %5119 = vmatpush1.bf16.msra.mxu0 %v4499
    %5120 = vmatprep.subr.bf16.mxu0 %v4560
    %5121 = vmatpush2.bf16.msra.mxu0 %v4559
    %5122 = vmatprep.subr.bf16.mxu0 %v4556
    %5123 = vmatpush2.bf16.msra.mxu0 %v4555
    %5124 = vmatprep.subr.bf16.mxu0 %v4552
    %5125 = vmatpush2.bf16.msra.mxu0 %v4551
    %5126 = vmatprep.subr.bf16.mxu0 %v4548
    %5127 = vmatpush2.bf16.msra.mxu0 %v4547
    %5128 = vmatprep.subr.bf16.mxu0 %v4544
    %5129 = vmatpush2.bf16.msra.mxu0 %v4543
    %5130 = vmatprep.subr.bf16.mxu0 %v4540
    %5131 = vmatpush2.bf16.msra.mxu0 %v4539
    %5132 = vmatprep.subr.bf16.mxu0 %v4536
    %5133 = vmatpush2.bf16.msra.mxu0 %v4535
    %5134 = vmatprep.subr.bf16.mxu0 %v4532
    %5135 = vmatpush2.bf16.msra.mxu0 %v4531
    %5136 = vmatprep.mubr.bf16.mxu0 %v3258
    %5137 = vmatmul.mubr.bf16.gmra.mxu0 %v3257
    %v5138 = vpop.f32.mrf.mxu0
    %v5139 = vadd.f32 %v5098, %v5138
    %v5140 = vpop.f32.mrf.mxu0
    %v5141 = vadd.f32 %v5100, %v5140
    %v5142 = vpop.f32.mrf.mxu0
    %v5143 = vpop.f32.mrf.mxu0
    %5144 = vdwg.mxu0
    %vm5145 = vcmp.gt.f32.partialorder %v4975, 0.0
    %vm5146 = vcmp.gt.f32.partialorder %v4977, 0.0
    %vm5147 = vcmp.gt.f32.partialorder %v5139, 0.0
    %vm5148 = vcmp.gt.f32.partialorder %v5141, 0.0
    %v5149 = vmul.f32 %v4975, 0.2
    %v5150 = vmul.f32 %v4977, 0.2
    %v5151 = vmul.f32 %v5139, 0.2
    %v5152 = vmul.f32 %v5141, 0.2
    %v5153 = vsel %vm5145, %v4975, %v5149
    %v5154 = vsel %vm5146, %v4977, %v5150
    %v5155 = vsel %vm5147, %v5139, %v5151
    %v5156 = vsel %vm5148, %v5141, %v5152
    %v5157 = vld [vmem:[%s2] sm:$0xff]
    %v5158 = vld [vmem:[%s2 + $0x8] sm:$0xff]
    %v5159 = vld [vmem:[%s2 + $0x10] sm:$0xff]
    %v5160 = vld [vmem:[%s2 + $0x18] sm:$0xff]
    %v5161 = vmul.f32 %v5153, %v5157
    %v5162 = vmul.f32 %v5154, %v5158
    %v5163 = vmul.f32 %v5155, %v5159
    %v5164 = vmul.f32 %v5156, %v5160
    %v5165 = vpack.c.bf16 %v5161, %v5161
    %v5166 = vpack.c.bf16 %v5162, %v5162
    %v5167 = vpack.c.bf16 %v5163, %v5163
    %v5168 = vpack.c.bf16 %v5164, %v5164
    %v5169 = vld [vmem:[#allocation9] sm:$0xff]
    %v5170 = vld [vmem:[#allocation9 + $0x8] sm:$0xff]
    %v5171 = vld [vmem:[#allocation9 + $0x10] sm:$0xff]
    %v5172 = vld [vmem:[#allocation9 + $0x18] sm:$0xff]
    %v5173 = vld [vmem:[#allocation9 + $0x20] sm:$0xff]
    %v5174 = vld [vmem:[#allocation9 + $0x28] sm:$0xff]
    %v5175 = vld [vmem:[#allocation9 + $0x30] sm:$0xff]
    %v5176 = vld [vmem:[#allocation9 + $0x38] sm:$0xff]
    %v5177 = vld [vmem:[#allocation9 + $0x40] sm:$0xff]
    %v5178 = vld [vmem:[#allocation9 + $0x48] sm:$0xff]
    %v5179 = vld [vmem:[#allocation9 + $0x50] sm:$0xff]
    %v5180 = vld [vmem:[#allocation9 + $0x58] sm:$0xff]
    %v5181 = vld [vmem:[#allocation9 + $0x60] sm:$0xff]
    %v5182 = vld [vmem:[#allocation9 + $0x68] sm:$0xff]
    %v5183 = vld [vmem:[#allocation9 + $0x70] sm:$0xff]
    %v5184 = vld [vmem:[#allocation9 + $0x78] sm:$0xff]
    %v5185 = vld [vmem:[#allocation9 + $0x80] sm:$0xff]
    %v5186 = vld [vmem:[#allocation9 + $0x88] sm:$0xff]
    %v5187 = vld [vmem:[#allocation9 + $0x90] sm:$0xff]
    %v5188 = vld [vmem:[#allocation9 + $0x98] sm:$0xff]
    %v5189 = vld [vmem:[#allocation9 + $0xa0] sm:$0xff]
    %v5190 = vld [vmem:[#allocation9 + $0xa8] sm:$0xff]
    %v5191 = vld [vmem:[#allocation9 + $0xb0] sm:$0xff]
    %v5192 = vld [vmem:[#allocation9 + $0xb8] sm:$0xff]
    %v5193 = vld [vmem:[#allocation9 + $0xc0] sm:$0xff]
    %v5194 = vld [vmem:[#allocation9 + $0xc8] sm:$0xff]
    %v5195 = vld [vmem:[#allocation9 + $0xd0] sm:$0xff]
    %v5196 = vld [vmem:[#allocation9 + $0xd8] sm:$0xff]
    %v5197 = vld [vmem:[#allocation9 + $0xe0] sm:$0xff]
    %v5198 = vld [vmem:[#allocation9 + $0xe8] sm:$0xff]
    %v5199 = vld [vmem:[#allocation9 + $0xf0] sm:$0xff]
    %v5200 = vld [vmem:[#allocation9 + $0xf8] sm:$0xff]
    %v5201 = vld [vmem:[#allocation9 + $0x100] sm:$0xff]
    %v5202 = vld [vmem:[#allocation9 + $0x108] sm:$0xff]
    %v5203 = vld [vmem:[#allocation9 + $0x110] sm:$0xff]
    %v5204 = vld [vmem:[#allocation9 + $0x118] sm:$0xff]
    %v5205 = vld [vmem:[#allocation9 + $0x120] sm:$0xff]
    %v5206 = vld [vmem:[#allocation9 + $0x128] sm:$0xff]
    %v5207 = vld [vmem:[#allocation9 + $0x130] sm:$0xff]
    %v5208 = vld [vmem:[#allocation9 + $0x138] sm:$0xff]
    %v5209 = vld [vmem:[#allocation9 + $0x140] sm:$0xff]
    %v5210 = vld [vmem:[#allocation9 + $0x148] sm:$0xff]
    %v5211 = vld [vmem:[#allocation9 + $0x150] sm:$0xff]
    %v5212 = vld [vmem:[#allocation9 + $0x158] sm:$0xff]
    %v5213 = vld [vmem:[#allocation9 + $0x160] sm:$0xff]
    %v5214 = vld [vmem:[#allocation9 + $0x168] sm:$0xff]
    %v5215 = vld [vmem:[#allocation9 + $0x170] sm:$0xff]
    %v5216 = vld [vmem:[#allocation9 + $0x178] sm:$0xff]
    %v5217 = vld [vmem:[#allocation9 + $0x180] sm:$0xff]
    %v5218 = vld [vmem:[#allocation9 + $0x188] sm:$0xff]
    %v5219 = vld [vmem:[#allocation9 + $0x190] sm:$0xff]
    %v5220 = vld [vmem:[#allocation9 + $0x198] sm:$0xff]
    %v5221 = vld [vmem:[#allocation9 + $0x1a0] sm:$0xff]
    %v5222 = vld [vmem:[#allocation9 + $0x1a8] sm:$0xff]
    %v5223 = vld [vmem:[#allocation9 + $0x1b0] sm:$0xff]
    %v5224 = vld [vmem:[#allocation9 + $0x1b8] sm:$0xff]
    %v5225 = vld [vmem:[#allocation9 + $0x1c0] sm:$0xff]
    %v5226 = vld [vmem:[#allocation9 + $0x1c8] sm:$0xff]
    %v5227 = vld [vmem:[#allocation9 + $0x1d0] sm:$0xff]
    %v5228 = vld [vmem:[#allocation9 + $0x1d8] sm:$0xff]
    %v5229 = vld [vmem:[#allocation9 + $0x1e0] sm:$0xff]
    %v5230 = vld [vmem:[#allocation9 + $0x1e8] sm:$0xff]
    %v5231 = vld [vmem:[#allocation9 + $0x1f0] sm:$0xff]
    %v5232 = vld [vmem:[#allocation9 + $0x1f8] sm:$0xff]
    %v5233 = vld [vmem:[#allocation10] sm:$0x3]
    %v5235 = vlaneseq
    %v5236 = vshrl.u32 %v5235, 7
    %v5237 = vsub.s32 0, %v5236
    %v5238 = vrot.slane %v5233, %v5237
    %v5239 = vlaneseq
    %v5240 = vshrl.u32 %v5239, 7
    %v5241 = vsub.s32 1, %v5240
    %v5242 = vrot.slane %v5233, %v5241
    %v5309 = vunpack.c.l.b16 %v5169
    %v5310 = vunpack.c.h.b16 %v5169
    %v5311 = vunpack.c.l.b16 %v5170
    %v5312 = vunpack.c.h.b16 %v5170
    %v5313 = vunpack.c.l.b16 %v5171
    %v5314 = vunpack.c.h.b16 %v5171
    %v5315 = vunpack.c.l.b16 %v5172
    %v5316 = vunpack.c.h.b16 %v5172
    %v5317 = vunpack.c.l.b16 %v5173
    %v5318 = vunpack.c.h.b16 %v5173
    %v5319 = vunpack.c.l.b16 %v5174
    %v5320 = vunpack.c.h.b16 %v5174
    %v5321 = vunpack.c.l.b16 %v5175
    %v5322 = vunpack.c.h.b16 %v5175
    %v5323 = vunpack.c.l.b16 %v5176
    %v5324 = vunpack.c.h.b16 %v5176
    %v5325 = vunpack.c.l.b16 %v5177
    %v5326 = vunpack.c.h.b16 %v5177
    %v5327 = vunpack.c.l.b16 %v5178
    %v5328 = vunpack.c.h.b16 %v5178
    %v5329 = vunpack.c.l.b16 %v5179
    %v5330 = vunpack.c.h.b16 %v5179
    %v5331 = vunpack.c.l.b16 %v5180
    %v5332 = vunpack.c.h.b16 %v5180
    %v5333 = vunpack.c.l.b16 %v5181
    %v5334 = vunpack.c.h.b16 %v5181
    %v5335 = vunpack.c.l.b16 %v5182
    %v5336 = vunpack.c.h.b16 %v5182
    %v5337 = vunpack.c.l.b16 %v5183
    %v5338 = vunpack.c.h.b16 %v5183
    %v5339 = vunpack.c.l.b16 %v5184
    %v5340 = vunpack.c.h.b16 %v5184
    %v5341 = vunpack.c.l.b16 %v5185
    %v5342 = vunpack.c.h.b16 %v5185
    %v5343 = vunpack.c.l.b16 %v5186
    %v5344 = vunpack.c.h.b16 %v5186
    %v5345 = vunpack.c.l.b16 %v5187
    %v5346 = vunpack.c.h.b16 %v5187
    %v5347 = vunpack.c.l.b16 %v5188
    %v5348 = vunpack.c.h.b16 %v5188
    %v5349 = vunpack.c.l.b16 %v5189
    %v5350 = vunpack.c.h.b16 %v5189
    %v5351 = vunpack.c.l.b16 %v5190
    %v5352 = vunpack.c.h.b16 %v5190
    %v5353 = vunpack.c.l.b16 %v5191
    %v5354 = vunpack.c.h.b16 %v5191
    %v5355 = vunpack.c.l.b16 %v5192
    %v5356 = vunpack.c.h.b16 %v5192
    %v5357 = vunpack.c.l.b16 %v5193
    %v5358 = vunpack.c.h.b16 %v5193
    %v5359 = vunpack.c.l.b16 %v5194
    %v5360 = vunpack.c.h.b16 %v5194
    %v5361 = vunpack.c.l.b16 %v5195
    %v5362 = vunpack.c.h.b16 %v5195
    %v5363 = vunpack.c.l.b16 %v5196
    %v5364 = vunpack.c.h.b16 %v5196
    %v5365 = vunpack.c.l.b16 %v5197
    %v5366 = vunpack.c.h.b16 %v5197
    %v5367 = vunpack.c.l.b16 %v5198
    %v5368 = vunpack.c.h.b16 %v5198
    %v5369 = vunpack.c.l.b16 %v5199
    %v5370 = vunpack.c.h.b16 %v5199
    %v5371 = vunpack.c.l.b16 %v5200
    %v5372 = vunpack.c.h.b16 %v5200
    %v5373 = vunpack.c.l.b16 %v5201
    %v5374 = vunpack.c.h.b16 %v5201
    %v5375 = vunpack.c.l.b16 %v5202
    %v5376 = vunpack.c.h.b16 %v5202
    %v5377 = vunpack.c.l.b16 %v5203
    %v5378 = vunpack.c.h.b16 %v5203
    %v5379 = vunpack.c.l.b16 %v5204
    %v5380 = vunpack.c.h.b16 %v5204
    %v5381 = vunpack.c.l.b16 %v5205
    %v5382 = vunpack.c.h.b16 %v5205
    %v5383 = vunpack.c.l.b16 %v5206
    %v5384 = vunpack.c.h.b16 %v5206
    %v5385 = vunpack.c.l.b16 %v5207
    %v5386 = vunpack.c.h.b16 %v5207
    %v5387 = vunpack.c.l.b16 %v5208
    %v5388 = vunpack.c.h.b16 %v5208
    %v5389 = vunpack.c.l.b16 %v5209
    %v5390 = vunpack.c.h.b16 %v5209
    %v5391 = vunpack.c.l.b16 %v5210
    %v5392 = vunpack.c.h.b16 %v5210
    %v5393 = vunpack.c.l.b16 %v5211
    %v5394 = vunpack.c.h.b16 %v5211
    %v5395 = vunpack.c.l.b16 %v5212
    %v5396 = vunpack.c.h.b16 %v5212
    %v5397 = vunpack.c.l.b16 %v5213
    %v5398 = vunpack.c.h.b16 %v5213
    %v5399 = vunpack.c.l.b16 %v5214
    %v5400 = vunpack.c.h.b16 %v5214
    %v5401 = vunpack.c.l.b16 %v5215
    %v5402 = vunpack.c.h.b16 %v5215
    %v5403 = vunpack.c.l.b16 %v5216
    %v5404 = vunpack.c.h.b16 %v5216
    %v5405 = vunpack.c.l.b16 %v5217
    %v5406 = vunpack.c.h.b16 %v5217
    %v5407 = vunpack.c.l.b16 %v5218
    %v5408 = vunpack.c.h.b16 %v5218
    %v5409 = vunpack.c.l.b16 %v5219
    %v5410 = vunpack.c.h.b16 %v5219
    %v5411 = vunpack.c.l.b16 %v5220
    %v5412 = vunpack.c.h.b16 %v5220
    %v5413 = vunpack.c.l.b16 %v5221
    %v5414 = vunpack.c.h.b16 %v5221
    %v5415 = vunpack.c.l.b16 %v5222
    %v5416 = vunpack.c.h.b16 %v5222
    %v5417 = vunpack.c.l.b16 %v5223
    %v5418 = vunpack.c.h.b16 %v5223
    %v5419 = vunpack.c.l.b16 %v5224
    %v5420 = vunpack.c.h.b16 %v5224
    %v5421 = vunpack.c.l.b16 %v5225
    %v5422 = vunpack.c.h.b16 %v5225
    %v5423 = vunpack.c.l.b16 %v5226
    %v5424 = vunpack.c.h.b16 %v5226
    %v5425 = vunpack.c.l.b16 %v5227
    %v5426 = vunpack.c.h.b16 %v5227
    %v5427 = vunpack.c.l.b16 %v5228
    %v5428 = vunpack.c.h.b16 %v5228
    %v5429 = vunpack.c.l.b16 %v5229
    %v5430 = vunpack.c.h.b16 %v5229
    %v5431 = vunpack.c.l.b16 %v5230
    %v5432 = vunpack.c.h.b16 %v5230
    %v5433 = vunpack.c.l.b16 %v5231
    %v5434 = vunpack.c.h.b16 %v5231
    %v5435 = vunpack.c.l.b16 %v5232
    %v5436 = vunpack.c.h.b16 %v5232
    %v5437 = vpack.c.b16 %v5311, %v5309
    %v5438 = vpack.c.b16 %v5312, %v5310
    %v5439 = vpack.c.b16 %v5315, %v5313
    %v5440 = vpack.c.b16 %v5316, %v5314
    %v5441 = vpack.c.b16 %v5319, %v5317
    %v5442 = vpack.c.b16 %v5320, %v5318
    %v5443 = vpack.c.b16 %v5323, %v5321
    %v5444 = vpack.c.b16 %v5324, %v5322
    %v5445 = vpack.c.b16 %v5327, %v5325
    %v5446 = vpack.c.b16 %v5328, %v5326
    %v5447 = vpack.c.b16 %v5331, %v5329
    %v5448 = vpack.c.b16 %v5332, %v5330
    %v5449 = vpack.c.b16 %v5335, %v5333
    %v5450 = vpack.c.b16 %v5336, %v5334
    %v5451 = vpack.c.b16 %v5339, %v5337
    %v5452 = vpack.c.b16 %v5340, %v5338
    %v5453 = vpack.c.b16 %v5343, %v5341
    %v5454 = vpack.c.b16 %v5344, %v5342
    %v5455 = vpack.c.b16 %v5347, %v5345
    %v5456 = vpack.c.b16 %v5348, %v5346
    %v5457 = vpack.c.b16 %v5351, %v5349
    %v5458 = vpack.c.b16 %v5352, %v5350
    %v5459 = vpack.c.b16 %v5355, %v5353
    %v5460 = vpack.c.b16 %v5356, %v5354
    %v5461 = vpack.c.b16 %v5359, %v5357
    %v5462 = vpack.c.b16 %v5360, %v5358
    %v5463 = vpack.c.b16 %v5363, %v5361
    %v5464 = vpack.c.b16 %v5364, %v5362
    %v5465 = vpack.c.b16 %v5367, %v5365
    %v5466 = vpack.c.b16 %v5368, %v5366
    %v5467 = vpack.c.b16 %v5371, %v5369
    %v5468 = vpack.c.b16 %v5372, %v5370
    %v5469 = vpack.c.b16 %v5375, %v5373
    %v5470 = vpack.c.b16 %v5376, %v5374
    %v5471 = vpack.c.b16 %v5379, %v5377
    %v5472 = vpack.c.b16 %v5380, %v5378
    %v5473 = vpack.c.b16 %v5383, %v5381
    %v5474 = vpack.c.b16 %v5384, %v5382
    %v5475 = vpack.c.b16 %v5387, %v5385
    %v5476 = vpack.c.b16 %v5388, %v5386
    %v5477 = vpack.c.b16 %v5391, %v5389
    %v5478 = vpack.c.b16 %v5392, %v5390
    %v5479 = vpack.c.b16 %v5395, %v5393
    %v5480 = vpack.c.b16 %v5396, %v5394
    %v5481 = vpack.c.b16 %v5399, %v5397
    %v5482 = vpack.c.b16 %v5400, %v5398
    %v5483 = vpack.c.b16 %v5403, %v5401
    %v5484 = vpack.c.b16 %v5404, %v5402
    %v5485 = vpack.c.b16 %v5407, %v5405
    %v5486 = vpack.c.b16 %v5408, %v5406
    %v5487 = vpack.c.b16 %v5411, %v5409
    %v5488 = vpack.c.b16 %v5412, %v5410
    %v5489 = vpack.c.b16 %v5415, %v5413
    %v5490 = vpack.c.b16 %v5416, %v5414
    %v5491 = vpack.c.b16 %v5419, %v5417
    %v5492 = vpack.c.b16 %v5420, %v5418
    %v5493 = vpack.c.b16 %v5423, %v5421
    %v5494 = vpack.c.b16 %v5424, %v5422
    %v5495 = vpack.c.b16 %v5427, %v5425
    %v5496 = vpack.c.b16 %v5428, %v5426
    %v5497 = vpack.c.b16 %v5431, %v5429
    %v5498 = vpack.c.b16 %v5432, %v5430
    %v5499 = vpack.c.b16 %v5435, %v5433
    %v5500 = vpack.c.b16 %v5436, %v5434
    %5565 = vmatprep.subr.bf16.mxu0 %v5452
    %5566 = vmatpush1.bf16.msra.mxu0 %v5451
    %5567 = vmatprep.subr.bf16.mxu0 %v5450
    %5568 = vmatpush1.bf16.msra.mxu0 %v5449
    %5569 = vmatprep.subr.bf16.mxu0 %v5448
    %5570 = vmatpush1.bf16.msra.mxu0 %v5447
    %5571 = vmatprep.subr.bf16.mxu0 %v5446
    %5572 = vmatpush1.bf16.msra.mxu0 %v5445
    %5573 = vmatprep.subr.bf16.mxu0 %v5444
    %5574 = vmatpush1.bf16.msra.mxu0 %v5443
    %5575 = vmatprep.subr.bf16.mxu0 %v5442
    %5576 = vmatpush1.bf16.msra.mxu0 %v5441
    %5577 = vmatprep.subr.bf16.mxu0 %v5440
    %5578 = vmatpush1.bf16.msra.mxu0 %v5439
    %5579 = vmatprep.subr.bf16.mxu0 %v5438
    %5580 = vmatpush1.bf16.msra.mxu0 %v5437
    %5581 = vmatprep.subr.bf16.mxu0 %v5468
    %5582 = vmatpush2.bf16.msra.mxu0 %v5467
    %5583 = vmatprep.subr.bf16.mxu0 %v5466
    %5584 = vmatpush2.bf16.msra.mxu0 %v5465
    %5585 = vmatprep.subr.bf16.mxu0 %v5464
    %5586 = vmatpush2.bf16.msra.mxu0 %v5463
    %5587 = vmatprep.subr.bf16.mxu0 %v5462
    %5588 = vmatpush2.bf16.msra.mxu0 %v5461
    %5589 = vmatprep.subr.bf16.mxu0 %v5460
    %5590 = vmatpush2.bf16.msra.mxu0 %v5459
    %5591 = vmatprep.subr.bf16.mxu0 %v5458
    %5592 = vmatpush2.bf16.msra.mxu0 %v5457
    %5593 = vmatprep.subr.bf16.mxu0 %v5456
    %5594 = vmatpush2.bf16.msra.mxu0 %v5455
    %5595 = vmatprep.subr.bf16.mxu0 %v5454
    %5596 = vmatpush2.bf16.msra.mxu0 %v5453
    %5597 = vmatprep.mubr.bf16.mxu0 %v5166
    %5598 = vmatmul.mubr.bf16.gmra.mxu0 %v5165
    %v5599 = vpop.f32.mrf.mxu0
    %v5600 = vadd.f32 %v5238, %v5599
    %v5601 = vpop.f32.mrf.mxu0
    %v5602 = vadd.f32 %v5242, %v5601
    %v5603 = vpop.f32.mrf.mxu0
    %v5604 = vpop.f32.mrf.mxu0
    %5605 = vdwg.mxu0
    %5606 = vmatprep.subr.bf16.mxu0 %v5484
    %5607 = vmatpush1.bf16.msra.mxu0 %v5483
    %5608 = vmatprep.subr.bf16.mxu0 %v5482
    %5609 = vmatpush1.bf16.msra.mxu0 %v5481
    %5610 = vmatprep.subr.bf16.mxu0 %v5480
    %5611 = vmatpush1.bf16.msra.mxu0 %v5479
    %5612 = vmatprep.subr.bf16.mxu0 %v5478
    %5613 = vmatpush1.bf16.msra.mxu0 %v5477
    %5614 = vmatprep.subr.bf16.mxu0 %v5476
    %5615 = vmatpush1.bf16.msra.mxu0 %v5475
    %5616 = vmatprep.subr.bf16.mxu0 %v5474
    %5617 = vmatpush1.bf16.msra.mxu0 %v5473
    %5618 = vmatprep.subr.bf16.mxu0 %v5472
    %5619 = vmatpush1.bf16.msra.mxu0 %v5471
    %5620 = vmatprep.subr.bf16.mxu0 %v5470
    %5621 = vmatpush1.bf16.msra.mxu0 %v5469
    %5622 = vmatprep.subr.bf16.mxu0 %v5500
    %5623 = vmatpush2.bf16.msra.mxu0 %v5499
    %5624 = vmatprep.subr.bf16.mxu0 %v5498
    %5625 = vmatpush2.bf16.msra.mxu0 %v5497
    %5626 = vmatprep.subr.bf16.mxu0 %v5496
    %5627 = vmatpush2.bf16.msra.mxu0 %v5495
    %5628 = vmatprep.subr.bf16.mxu0 %v5494
    %5629 = vmatpush2.bf16.msra.mxu0 %v5493
    %5630 = vmatprep.subr.bf16.mxu0 %v5492
    %5631 = vmatpush2.bf16.msra.mxu0 %v5491
    %5632 = vmatprep.subr.bf16.mxu0 %v5490
    %5633 = vmatpush2.bf16.msra.mxu0 %v5489
    %5634 = vmatprep.subr.bf16.mxu0 %v5488
    %5635 = vmatpush2.bf16.msra.mxu0 %v5487
    %5636 = vmatprep.subr.bf16.mxu0 %v5486
    %5637 = vmatpush2.bf16.msra.mxu0 %v5485
    %5638 = vmatprep.mubr.bf16.mxu0 %v5168
    %5639 = vmatmul.mubr.bf16.gmra.mxu0 %v5167
    %v5640 = vpop.f32.mrf.mxu0
    %v5641 = vadd.f32 %v5600, %v5640
    %v5642 = vpop.f32.mrf.mxu0
    %v5643 = vadd.f32 %v5602, %v5642
    %v5644 = vpop.f32.mrf.mxu0
    %v5645 = vpop.f32.mrf.mxu0
    %5646 = vdwg.mxu0
    %vm5647 = vcmp.gt.f32.partialorder %v5641, 0.0
    %vm5648 = vcmp.gt.f32.partialorder %v5643, 0.0
    %v5649 = vmul.f32 %v5641, 0.2
    %v5650 = vmul.f32 %v5643, 0.2
    %v5651 = vsel %vm5647, %v5641, %v5649
    %v5652 = vsel %vm5648, %v5643, %v5650
    %v5653 = vld [vmem:[%s3] sm:$0xff]
    %v5654 = vld [vmem:[%s3 + $0x8] sm:$0xff]
    %v5655 = vmul.f32 %v5651, %v5653
    %v5656 = vmul.f32 %v5652, %v5654
    %v5657 = vpack.c.bf16 %v5655, %v5655
    %v5658 = vpack.c.bf16 %v5656, %v5656
    %v5659 = vld [vmem:[#allocation12] sm:$0xf]
    %v5660 = vld [vmem:[#allocation12 + $0x4] sm:$0xf]
    %v5661 = vld [vmem:[#allocation12 + $0x8] sm:$0xf]
    %v5662 = vld [vmem:[#allocation12 + $0xc] sm:$0xf]
    %v5663 = vld [vmem:[#allocation12 + $0x10] sm:$0xf]
    %v5664 = vld [vmem:[#allocation12 + $0x14] sm:$0xf]
    %v5665 = vld [vmem:[#allocation12 + $0x18] sm:$0xf]
    %v5666 = vld [vmem:[#allocation12 + $0x1c] sm:$0xf]
    %v5667 = vld [vmem:[#allocation12 + $0x20] sm:$0xf]
    %v5668 = vld [vmem:[#allocation12 + $0x24] sm:$0xf]
    %v5669 = vld [vmem:[#allocation12 + $0x28] sm:$0xf]
    %v5670 = vld [vmem:[#allocation12 + $0x2c] sm:$0xf]
    %v5671 = vld [vmem:[#allocation12 + $0x30] sm:$0xf]
    %v5672 = vld [vmem:[#allocation12 + $0x34] sm:$0xf]
    %v5673 = vld [vmem:[#allocation12 + $0x38] sm:$0xf]
    %v5674 = vld [vmem:[#allocation12 + $0x3c] sm:$0xf]
    %v5675 = vld [vmem:[#allocation12 + $0x40] sm:$0xf]
    %v5676 = vld [vmem:[#allocation12 + $0x44] sm:$0xf]
    %v5677 = vld [vmem:[#allocation12 + $0x48] sm:$0xf]
    %v5678 = vld [vmem:[#allocation12 + $0x4c] sm:$0xf]
    %v5679 = vld [vmem:[#allocation12 + $0x50] sm:$0xf]
    %v5680 = vld [vmem:[#allocation12 + $0x54] sm:$0xf]
    %v5681 = vld [vmem:[#allocation12 + $0x58] sm:$0xf]
    %v5682 = vld [vmem:[#allocation12 + $0x5c] sm:$0xf]
    %v5683 = vld [vmem:[#allocation12 + $0x60] sm:$0xf]
    %v5684 = vld [vmem:[#allocation12 + $0x64] sm:$0xf]
    %v5685 = vld [vmem:[#allocation12 + $0x68] sm:$0xf]
    %v5686 = vld [vmem:[#allocation12 + $0x6c] sm:$0xf]
    %v5687 = vld [vmem:[#allocation12 + $0x70] sm:$0xf]
    %v5688 = vld [vmem:[#allocation12 + $0x74] sm:$0xf]
    %v5689 = vld [vmem:[#allocation12 + $0x78] sm:$0xf]
    %v5690 = vld [vmem:[#allocation12 + $0x7c] sm:$0xf]
    %v5691 = vld [vmem:[#allocation13] sm:$0x1]
    %v5693 = vlaneseq
    %v5694 = vshrl.u32 %v5693, 7
    %v5695 = vsub.s32 0, %v5694
    %v5696 = vrot.slane %v5691, %v5695
    %v5730 = vunpack.c.l.b16 %v5659
    %v5731 = vunpack.c.l.b16 %v5660
    %v5732 = vunpack.c.l.b16 %v5661
    %v5733 = vunpack.c.l.b16 %v5662
    %v5734 = vunpack.c.l.b16 %v5663
    %v5735 = vunpack.c.l.b16 %v5664
    %v5736 = vunpack.c.l.b16 %v5665
    %v5737 = vunpack.c.l.b16 %v5666
    %v5738 = vunpack.c.l.b16 %v5667
    %v5739 = vunpack.c.l.b16 %v5668
    %v5740 = vunpack.c.l.b16 %v5669
    %v5741 = vunpack.c.l.b16 %v5670
    %v5742 = vunpack.c.l.b16 %v5671
    %v5743 = vunpack.c.l.b16 %v5672
    %v5744 = vunpack.c.l.b16 %v5673
    %v5745 = vunpack.c.l.b16 %v5674
    %v5746 = vunpack.c.l.b16 %v5675
    %v5747 = vunpack.c.l.b16 %v5676
    %v5748 = vunpack.c.l.b16 %v5677
    %v5749 = vunpack.c.l.b16 %v5678
    %v5750 = vunpack.c.l.b16 %v5679
    %v5751 = vunpack.c.l.b16 %v5680
    %v5752 = vunpack.c.l.b16 %v5681
    %v5753 = vunpack.c.l.b16 %v5682
    %v5754 = vunpack.c.l.b16 %v5683
    %v5755 = vunpack.c.l.b16 %v5684
    %v5756 = vunpack.c.l.b16 %v5685
    %v5757 = vunpack.c.l.b16 %v5686
    %v5758 = vunpack.c.l.b16 %v5687
    %v5759 = vunpack.c.l.b16 %v5688
    %v5760 = vunpack.c.l.b16 %v5689
    %v5761 = vunpack.c.l.b16 %v5690
    %v5762 = vpack.c.b16 %v5731, %v5730
    %v5763 = vpack.c.b16 %v5733, %v5732
    %v5764 = vpack.c.b16 %v5735, %v5734
    %v5765 = vpack.c.b16 %v5737, %v5736
    %v5766 = vpack.c.b16 %v5739, %v5738
    %v5767 = vpack.c.b16 %v5741, %v5740
    %v5768 = vpack.c.b16 %v5743, %v5742
    %v5769 = vpack.c.b16 %v5745, %v5744
    %v5770 = vpack.c.b16 %v5747, %v5746
    %v5771 = vpack.c.b16 %v5749, %v5748
    %v5772 = vpack.c.b16 %v5751, %v5750
    %v5773 = vpack.c.b16 %v5753, %v5752
    %v5774 = vpack.c.b16 %v5755, %v5754
    %v5775 = vpack.c.b16 %v5757, %v5756
    %v5776 = vpack.c.b16 %v5759, %v5758
    %v5777 = vpack.c.b16 %v5761, %v5760
    %5794 = vmatprep.subr.bf16.mxu0 0
    %5795 = vmatpush1.bf16.msra.mxu0 %v5769
    %5796 = vmatprep.subr.bf16.mxu0 0
    %5797 = vmatpush1.bf16.msra.mxu0 %v5768
    %5798 = vmatprep.subr.bf16.mxu0 0
    %5799 = vmatpush1.bf16.msra.mxu0 %v5767
    %5800 = vmatprep.subr.bf16.mxu0 0
    %5801 = vmatpush1.bf16.msra.mxu0 %v5766
    %5802 = vmatprep.subr.bf16.mxu0 0
    %5803 = vmatpush1.bf16.msra.mxu0 %v5765
    %5804 = vmatprep.subr.bf16.mxu0 0
    %5805 = vmatpush1.bf16.msra.mxu0 %v5764
    %5806 = vmatprep.subr.bf16.mxu0 0
    %5807 = vmatpush1.bf16.msra.mxu0 %v5763
    %5808 = vmatprep.subr.bf16.mxu0 0
    %5809 = vmatpush1.bf16.msra.mxu0 %v5762
    %5810 = vmatprep.subr.bf16.mxu0 0
    %5811 = vmatpush2.bf16.msra.mxu0 %v5777
    %5812 = vmatprep.subr.bf16.mxu0 0
    %5813 = vmatpush2.bf16.msra.mxu0 %v5776
    %5814 = vmatprep.subr.bf16.mxu0 0
    %5815 = vmatpush2.bf16.msra.mxu0 %v5775
    %5816 = vmatprep.subr.bf16.mxu0 0
    %5817 = vmatpush2.bf16.msra.mxu0 %v5774
    %5818 = vmatprep.subr.bf16.mxu0 0
    %5819 = vmatpush2.bf16.msra.mxu0 %v5773
    %5820 = vmatprep.subr.bf16.mxu0 0
    %5821 = vmatpush2.bf16.msra.mxu0 %v5772
    %5822 = vmatprep.subr.bf16.mxu0 0
    %5823 = vmatpush2.bf16.msra.mxu0 %v5771
    %5824 = vmatprep.subr.bf16.mxu0 0
    %5825 = vmatpush2.bf16.msra.mxu0 %v5770
    %5826 = vmatprep.mubr.bf16.mxu0 %v5658
    %5827 = vmatmul.mubr.bf16.gmra.mxu0 %v5657
    %v5828 = vpop.f32.mrf.mxu0
    %v5829 = vadd.f32 %v5696, %v5828
    %v5830 = vpop.f32.mrf.mxu0
    %v5831 = vpop.f32.mrf.mxu0
    %v5832 = vpop.f32.mrf.mxu0
    %5833 = vdwg.mxu0
    %v5834 = vxor.u32 %v5829, 2147483648
    %v5835 = vmul.f32 %v5834, 1.442695
    %v5836 = vpow.pop %v5835
    %v5837 = vadd.f32 %v5836, 1.0
    %v5838 = vrcp.pop %v5837
    %v5839 = vmul.f32 1.0, %v5838
    %5840 = vst [vmem:[%s12] sm:$0xff] %v5839
    // Predicated region
    $region82: #{discriminator_forward.3} parent=1 // pred_check
      _
    $region83: #{discriminator_forward.3} parent=1 // pred_check_branch
      %5842 = sbr.rel (0) target = $region85
    $region84: #{discriminator_forward.3} parent=1 // pred_region
      _
    $region85: #{discriminator_forward.3} parent=1 // pred_fallthru
      _
    // Predicated region
    $region86: #{discriminator_forward.3} parent=1 // pred_check
      _
    $region87: #{discriminator_forward.3} parent=1 // pred_check_branch
      %5844 = sbr.rel (0) target = $region89
    $region88: #{discriminator_forward.3} parent=1 // pred_region
      _
    $region89: #{discriminator_forward.3} parent=1 // pred_fallthru
      _
    %5845 = vsyncpa [#allocation3], 1
    %5846 = vsyncpa [#allocation5], 1
    %5847 = vsyncpa [#allocation8], 1
    %5848 = vsyncpa [#allocation11], 1
    %5849 = vsyncpa [#allocation14], 1

</llo_original>
